<compile_context>
chip_gen: v5e
topology: v5e:2x2
jax: 0.10.0
libtpu: 0.0.40
codegen_flags: <defaults>
</compile_context>

<pallas_src>
import functools

import jax
import jax.numpy as jnp
from jax.experimental import pallas as pl
from jax.experimental.pallas import tpu as pltpu


# --------------------------------------------------------------------------- #
# Kernel
# --------------------------------------------------------------------------- #
def _mha_kernel(q_ref, k_ref, v_ref,
                wq_ref, wk_ref, wv_ref, wfc_ref,
                gamma_ref, beta_ref,
                o_ref,
                *, n_head, d_k, d_v, eps, exp_dtype):
    BB, Lq, d_model = q_ref.shape
    _, Lk, _ = k_ref.shape

    # ---- activations: q stays f32 for the residual, bf16 copies feed the MXU
    resid = q_ref[...].reshape(BB * Lq, d_model)                  # f32
    qb = resid.astype(jnp.bfloat16)
    kb = k_ref[...].reshape(BB * Lk, d_model)                     # bf16 input
    vb = v_ref[...].reshape(BB * Lk, d_model)                     # bf16 input

    # ---- projections: one wide MXU matmul each (N = n_head*d_k / n_head*d_v)
    # 1/sqrt(d_k) is already folded into wq by the wrapper.
    Q = jnp.dot(qb, wq_ref[...], preferred_element_type=jnp.float32)
    K = jnp.dot(kb, wk_ref[...], preferred_element_type=jnp.float32)
    V = jnp.dot(vb, wv_ref[...], preferred_element_type=jnp.float32)

    Q = Q.astype(jnp.bfloat16).reshape(BB, Lq, n_head * d_k)
    K = K.astype(jnp.bfloat16).reshape(BB, Lk, n_head * d_k)
    V = V.astype(jnp.bfloat16).reshape(BB, Lk, n_head * d_v)

    # ---- per-head scaled dot-product attention (unrolled, batched over BB)
    ctxs = []
    for h in range(n_head):
        Qh = Q[:, :, h * d_k:(h + 1) * d_k]
        Kh = K[:, :, h * d_k:(h + 1) * d_k]
        Vh = V[:, :, h * d_v:(h + 1) * d_v]

        s = jnp.einsum("bqd,bkd->bqk", Qh, Kh,
                       preferred_element_type=jnp.float32)        # (BB, Lq, Lk)
        s = s - jnp.max(s, axis=-1, keepdims=True)
        # exp on the EUP (bf16 path on v6e/v7x); denominator summed in f32.
        p = jnp.exp(s.astype(exp_dtype)).astype(jnp.float32)
        inv = pl.reciprocal(jnp.sum(p, axis=-1, keepdims=True), approx=True)
        attn = (p * inv).astype(jnp.bfloat16)

        ctxs.append(jnp.einsum("bqk,bkd->bqd", attn, Vh,
                               preferred_element_type=jnp.float32)
                    .astype(jnp.bfloat16))                        # (BB, Lq, d_v)

    # ---- output projection: single matmul with K = n_head*d_v
    ctx = jnp.concatenate(ctxs, axis=-1).reshape(BB * Lq, n_head * d_v)
    out = jnp.dot(ctx, wfc_ref[...], preferred_element_type=jnp.float32)

    # ---- residual add + LayerNorm (f32)
    out = out + resid
    mean = jnp.mean(out, axis=-1, keepdims=True)
    var = jnp.mean((out - mean) ** 2, axis=-1, keepdims=True)
    y = (out - mean) * jax.lax.rsqrt(var + eps)
    y = y * gamma_ref[...] + beta_ref[...]
    o_ref[...] = y.reshape(BB, Lq, d_model).astype(o_ref.dtype)


# --------------------------------------------------------------------------- #
# Block-size selection from a generation-aware VMEM budget
# --------------------------------------------------------------------------- #
def _physical_vmem_bytes():
    try:
        info = pltpu.get_tpu_info()
        return int(getattr(info, "vmem_capacity_bytes", 64 << 20))
    except Exception:
        return 64 << 20   # conservative (v7x per-TC)


def _estimate_vmem_bytes(bb, Lq, Lk, d_model, n_head, d_k, d_v):
    hdk, hdv = n_head * d_k, n_head * d_v
    b = 0
    # double-buffered pipelined input / output blocks
    b += 2 * bb * Lq * d_model * 4           # q (f32)
    b += 2 * 2 * bb * Lk * d_model * 2       # k + v (bf16)
    b += 2 * bb * Lq * d_model * 4           # output (f32)
    # resident all-head weights (bf16), counted with a second buffer
    b += 2 * 2 * (2 * d_model * hdk + 2 * d_model * hdv)
    # major in-kernel intermediates (f32 projections + bf16 copies, scores,
    # probs, per-head/concat context, fc output + LayerNorm temps)
    b += bb * Lq * hdk * 6 + bb * Lk * hdk * 6 + bb * Lk * hdv * 6
    b += 2 * bb * Lq * Lk * 4
    b += 2 * bb * Lq * hdv * 2
    b += 3 * bb * Lq * d_model * 4
    return b


def _pick_block_b(B, Lq, Lk, d_model, n_head, d_k, d_v, budget):
    divisors = [d for d in range(1, B + 1) if B % d == 0]
    fitting = [d for d in divisors
               if _estimate_vmem_bytes(d, Lq, Lk, d_model, n_head, d_k, d_v)
               <= budget]
    if not fitting:
        return 1
    # prefer >= 2 blocks on the parallel axis (two TensorCores on v7x)
    pref = [d for d in fitting if B // d >= 2]
    return max(pref) if pref else max(fitting)


def _use_bf16_exp():
    # bf16 EUP exists on v6e and newer; v2-v5 keep exp in f32.
    try:
        kind = jax.devices()[0].device_kind.lower()
    except Exception:
        return False
    return not any(t in kind for t in ("v2", "v3", "v4", "v5"))


# --------------------------------------------------------------------------- #
# Wrapper
# --------------------------------------------------------------------------- #
def multi_head_attention(q, k, v, params, *, n_head, d_k, d_v, eps=1e-6,
                         block_b=None):
    """q, k, v: (B, L, d_model) float32. Returns (B, Lq, d_model) float32."""
    B, Lq, d_model = q.shape
    _, Lk, _ = k.shape
    _, Lv, _ = v.shape
    assert Lk == Lv, "module semantics require len_k == len_v"

    phys_vmem = _physical_vmem_bytes()
    budget = int(phys_vmem * 0.55)
    vmem_limit = int(phys_vmem * 0.75)

    if block_b is None:
        block_b = _pick_block_b(B, Lq, Lk, d_model, n_head, d_k, d_v, budget)
    BB = block_b
    assert B % BB == 0

    # Parameter prep (one-time, XLA side):
    #  * fold 1/sqrt(d_k) into wq,
    #  * cast all weights to bf16 (halves weight DMA; f32 accumulation on MXU),
    #  * cast k/v activations to bf16 (halves their DMA, removes in-kernel cast).
    scale = 1.0 / (float(d_k) ** 0.5)
    wq = (params["wq"] * scale).astype(jnp.bfloat16)          # (d_model, H*dk)
    wk = params["wk"].astype(jnp.bfloat16)                    # (d_model, H*dk)
    wv = params["wv"].astype(jnp.bfloat16)                    # (d_model, H*dv)
    wfc = params["wfc"].astype(jnp.bfloat16)                  # (H*dv, d_model)
    gamma = params["gamma"].astype(jnp.float32)               # (1, d_model)
    beta = params["beta"].astype(jnp.float32)                 # (1, d_model)
    k_bf = k.astype(jnp.bfloat16)
    v_bf = v.astype(jnp.bfloat16)

    exp_dtype = jnp.bfloat16 if _use_bf16_exp() else jnp.float32
    kernel = functools.partial(_mha_kernel, n_head=n_head, d_k=d_k, d_v=d_v,
                               eps=eps, exp_dtype=exp_dtype)

    return pl.pallas_call(
        kernel,
        out_shape=jax.ShapeDtypeStruct((B, Lq, d_model), jnp.float32),
        grid=(B // BB,),
        in_specs=[
            pl.BlockSpec((BB, Lq, d_model), lambda b: (b, 0, 0)),       # q f32
            pl.BlockSpec((BB, Lk, d_model), lambda b: (b, 0, 0)),       # k bf16
            pl.BlockSpec((BB, Lv, d_model), lambda b: (b, 0, 0)),       # v bf16
            # Whole weights, constant block index -> fetched once, stay resident.
            pl.BlockSpec((d_model, n_head * d_k), lambda b: (0, 0)),    # wq
            pl.BlockSpec((d_model, n_head * d_k), lambda b: (0, 0)),    # wk
            pl.BlockSpec((d_model, n_head * d_v), lambda b: (0, 0)),    # wv
            pl.BlockSpec((n_head * d_v, d_model), lambda b: (0, 0)),    # wfc
            pl.BlockSpec((1, d_model), lambda b: (0, 0)),               # gamma
            pl.BlockSpec((1, d_model), lambda b: (0, 0)),               # beta
        ],
        out_specs=pl.BlockSpec((BB, Lq, d_model), lambda b: (b, 0, 0)),
        compiler_params=pltpu.CompilerParams(
            dimension_semantics=("parallel",),
            vmem_limit_bytes=vmem_limit),
    )(q, k_bf, v_bf, wq, wk, wv, wfc, gamma, beta)


# --------------------------------------------------------------------------- #
# Params / reference / demo
# --------------------------------------------------------------------------- #
def init_params(key, n_head, d_model, d_k, d_v):
    k1, k2, k3, k4 = jax.random.split(key, 4)
    scale = 0.02
    return {
        # stored as (in_features, out_features) == PyTorch weight.T
        "wq":  scale * jax.random.normal(k1, (d_model, n_head * d_k), jnp.float32),
        "wk":  scale * jax.random.normal(k2, (d_model, n_head * d_k), jnp.float32),
        "wv":  scale * jax.random.normal(k3, (d_model, n_head * d_v), jnp.float32),
        "wfc": scale * jax.random.normal(k4, (n_head * d_v, d_model), jnp.float32),
        # LayerNorm default init: gamma=1, beta=0
        "gamma": jnp.ones((1, d_model), jnp.float32),
        "beta":  jnp.zeros((1, d_model), jnp.float32),
    }


def reference_jax(q, k, v, params, *, n_head, d_k, d_v, eps=1e-6):
    """Pure-JAX f32 reference mirroring the PyTorch forward (eval mode)."""
    B, Lq, d_model = q.shape
    Lk = k.shape[1]
    residual = q
    Q = (q @ params["wq"]).reshape(B, Lq, n_head, d_k).transpose(0, 2, 1, 3)
    K = (k @ params["wk"]).reshape(B, Lk, n_head, d_k).transpose(0, 2, 1, 3)
    V = (v @ params["wv"]).reshape(B, Lk, n_head, d_v).transpose(0, 2, 1, 3)
    attn = jnp.einsum("bhqd,bhkd->bhqk", Q / (d_k ** 0.5), K)
    attn = jax.nn.softmax(attn, axis=-1)
    out = jnp.einsum("bhqk,bhkd->bhqd", attn, V)
    out = out.transpose(0, 2, 1, 3).reshape(B, Lq, n_head * d_v)
    out = out @ params["wfc"] + residual
    mean = out.mean(-1, keepdims=True)
    var = ((out - mean) ** 2).mean(-1, keepdims=True)
    return (out - mean) / jnp.sqrt(var + eps) * params["gamma"][0] + params["beta"][0]


if __name__ == "__main__":
    # Small but lane-dense shapes (d_model, L multiples of 128; H*d_k = 128).
    n_head, d_model, d_k, d_v = 4, 128, 32, 32
    B, L = 4, 128

    key = jax.random.PRNGKey(0)
    kp, kq, kk, kv = jax.random.split(key, 4)
    params = init_params(kp, n_head, d_model, d_k, d_v)
    q = jax.random.normal(kq, (B, L, d_model), jnp.float32)
    k = jax.random.normal(kk, (B, L, d_model), jnp.float32)
    v = jax.random.normal(kv, (B, L, d_model), jnp.float32)

    out = multi_head_attention(q, k, v, params, n_head=n_head, d_k=d_k, d_v=d_v)
    out = jax.block_until_ready(out)

    ref = reference_jax(q, k, v, params, n_head=n_head, d_k=d_k, d_v=d_v)
    assert out.shape == (B, L, d_model)
    # bf16 MXU inputs (f32 accumulation) + approx reciprocal -> relaxed tolerance.
    assert jnp.allclose(out, ref, atol=5e-2, rtol=5e-2), "mismatch vs reference"

    print("KERNEL_OK")
</pallas_src>

<mosaic_0001>
module attributes {stable_mosaic.version = 11 : i64} {
  func.func @_mha_kernel(%arg0: i32, %arg1: memref<2x128x128xf32, #tpu.memory_space<vmem>>, %arg2: memref<2x128x128xbf16, #tpu.memory_space<vmem>>, %arg3: memref<2x128x128xbf16, #tpu.memory_space<vmem>>, %arg4: memref<128x128xbf16, #tpu.memory_space<vmem>>, %arg5: memref<128x128xbf16, #tpu.memory_space<vmem>>, %arg6: memref<128x128xbf16, #tpu.memory_space<vmem>>, %arg7: memref<128x128xbf16, #tpu.memory_space<vmem>>, %arg8: memref<1x128xf32, #tpu.memory_space<vmem>>, %arg9: memref<1x128xf32, #tpu.memory_space<vmem>>, %arg10: memref<2x128x128xf32, #tpu.memory_space<vmem>>) attributes {dimension_semantics = [#tpu.dimension_semantics<parallel>], iteration_bounds = array<i64: 2>, scalar_prefetch = 0 : i64, scratch_operands = 0 : i64, tpu.core_type = #tpu.core_type<tc>, window_params = [{transform_indices = @transform_0, window_bounds = array<i64: 2, 128, 128>}, {transform_indices = @transform_1, window_bounds = array<i64: 2, 128, 128>}, {transform_indices = @transform_2, window_bounds = array<i64: 2, 128, 128>}, {pipeline_mode = #tpu.pipeline_mode<synchronous>, transform_indices = @transform_3, window_bounds = array<i64: 128, 128>}, {pipeline_mode = #tpu.pipeline_mode<synchronous>, transform_indices = @transform_4, window_bounds = array<i64: 128, 128>}, {pipeline_mode = #tpu.pipeline_mode<synchronous>, transform_indices = @transform_5, window_bounds = array<i64: 128, 128>}, {pipeline_mode = #tpu.pipeline_mode<synchronous>, transform_indices = @transform_6, window_bounds = array<i64: 128, 128>}, {pipeline_mode = #tpu.pipeline_mode<synchronous>, transform_indices = @transform_7, window_bounds = array<i64: 1, 128>}, {pipeline_mode = #tpu.pipeline_mode<synchronous>, transform_indices = @transform_8, window_bounds = array<i64: 1, 128>}, {transform_indices = @transform_9, window_bounds = array<i64: 2, 128, 128>}]} {
    %c0 = arith.constant 0 : index
    %c0_0 = arith.constant 0 : index
    %c0_1 = arith.constant 0 : index
    %0 = vector.load %arg1[%c0, %c0_0, %c0_1] : memref<2x128x128xf32, #tpu.memory_space<vmem>>, vector<2x128x128xf32>
    %1 = vector.shape_cast %0 : vector<2x128x128xf32> to vector<256x128xf32>
    %2 = arith.truncf %1 : vector<256x128xf32> to vector<256x128xbf16>
    %c0_2 = arith.constant 0 : index
    %c0_3 = arith.constant 0 : index
    %c0_4 = arith.constant 0 : index
    %3 = vector.load %arg2[%c0_2, %c0_3, %c0_4] : memref<2x128x128xbf16, #tpu.memory_space<vmem>>, vector<2x128x128xbf16>
    %4 = vector.shape_cast %3 : vector<2x128x128xbf16> to vector<256x128xbf16>
    %c0_5 = arith.constant 0 : index
    %c0_6 = arith.constant 0 : index
    %c0_7 = arith.constant 0 : index
    %5 = vector.load %arg3[%c0_5, %c0_6, %c0_7] : memref<2x128x128xbf16, #tpu.memory_space<vmem>>, vector<2x128x128xbf16>
    %6 = vector.shape_cast %5 : vector<2x128x128xbf16> to vector<256x128xbf16>
    %c0_8 = arith.constant 0 : index
    %c0_9 = arith.constant 0 : index
    %7 = vector.load %arg4[%c0_8, %c0_9] : memref<128x128xbf16, #tpu.memory_space<vmem>>, vector<128x128xbf16>
    %cst = arith.constant dense<0.000000e+00> : vector<256x128xf32>
    %8 = tpu.matmul %2, %7, %cst {dimension_numbers = #tpu.dot_dimension_numbers<[1], [0], [0], [1], [0, 0, 1, 1], [], []>} : vector<256x128xbf16>, vector<128x128xbf16>, vector<256x128xf32> -> vector<256x128xf32>
    %c0_10 = arith.constant 0 : index
    %c0_11 = arith.constant 0 : index
    %9 = vector.load %arg5[%c0_10, %c0_11] : memref<128x128xbf16, #tpu.memory_space<vmem>>, vector<128x128xbf16>
    %cst_12 = arith.constant dense<0.000000e+00> : vector<256x128xf32>
    %10 = tpu.matmul %4, %9, %cst_12 {dimension_numbers = #tpu.dot_dimension_numbers<[1], [0], [0], [1], [0, 0, 1, 1], [], []>} : vector<256x128xbf16>, vector<128x128xbf16>, vector<256x128xf32> -> vector<256x128xf32>
    %c0_13 = arith.constant 0 : index
    %c0_14 = arith.constant 0 : index
    %11 = vector.load %arg6[%c0_13, %c0_14] : memref<128x128xbf16, #tpu.memory_space<vmem>>, vector<128x128xbf16>
    %cst_15 = arith.constant dense<0.000000e+00> : vector<256x128xf32>
    %12 = tpu.matmul %6, %11, %cst_15 {dimension_numbers = #tpu.dot_dimension_numbers<[1], [0], [0], [1], [0, 0, 1, 1], [], []>} : vector<256x128xbf16>, vector<128x128xbf16>, vector<256x128xf32> -> vector<256x128xf32>
    %13 = arith.truncf %8 : vector<256x128xf32> to vector<256x128xbf16>
    %14 = vector.shape_cast %13 : vector<256x128xbf16> to vector<2x128x128xbf16>
    %15 = arith.truncf %10 : vector<256x128xf32> to vector<256x128xbf16>
    %16 = vector.shape_cast %15 : vector<256x128xbf16> to vector<2x128x128xbf16>
    %17 = arith.truncf %12 : vector<256x128xf32> to vector<256x128xbf16>
    %18 = vector.shape_cast %17 : vector<256x128xbf16> to vector<2x128x128xbf16>
    %19 = vector.extract_strided_slice %14 {offsets = [0, 0, 0], sizes = [2, 128, 32], strides = [1, 1, 1]} : vector<2x128x128xbf16> to vector<2x128x32xbf16>
    %20 = vector.extract_strided_slice %16 {offsets = [0, 0, 0], sizes = [2, 128, 32], strides = [1, 1, 1]} : vector<2x128x128xbf16> to vector<2x128x32xbf16>
    %21 = vector.extract_strided_slice %18 {offsets = [0, 0, 0], sizes = [2, 128, 32], strides = [1, 1, 1]} : vector<2x128x128xbf16> to vector<2x128x32xbf16>
    "tpu.trace_start"() <{level = 10 : i32, message = "bqd,bkd->bqk"}> : () -> ()
    %cst_16 = arith.constant dense<0.000000e+00> : vector<2x128x128xf32>
    %22 = tpu.matmul %19, %20, %cst_16 {dimension_numbers = #tpu.dot_dimension_numbers<[2], [2], [1], [1], [0, 0, 0, 1, 1, 1], [0], [0]>} : vector<2x128x32xbf16>, vector<2x128x32xbf16>, vector<2x128x128xf32> -> vector<2x128x128xf32>
    "tpu.trace_stop"() : () -> ()
    %cst_17 = arith.constant dense<0xFF800000> : vector<2x128xf32>
    %23 = vector.multi_reduction <maximumf>, %22, %cst_17 [2] : vector<2x128x128xf32> to vector<2x128xf32>
    %24 = vector.shape_cast %23 : vector<2x128xf32> to vector<2x128x1xf32>
    %25 = vector.broadcast %24 : vector<2x128x1xf32> to vector<2x128x128xf32>
    %26 = arith.subf %22, %25 : vector<2x128x128xf32>
    %27 = arith.truncf %26 : vector<2x128x128xf32> to vector<2x128x128xbf16>
    %28 = math.exp %27 : vector<2x128x128xbf16>
    %29 = arith.extf %28 : vector<2x128x128xbf16> to vector<2x128x128xf32>
    %cst_18 = arith.constant dense<0.000000e+00> : vector<2x128xf32>
    %30 = vector.multi_reduction <add>, %29, %cst_18 [2] : vector<2x128x128xf32> to vector<2x128xf32>
    %31 = vector.shape_cast %30 : vector<2x128xf32> to vector<2x128x1xf32>
    %32 = tpu.reciprocal %31 {approx = true} : vector<2x128x1xf32> -> vector<2x128x1xf32>
    %33 = vector.broadcast %32 : vector<2x128x1xf32> to vector<2x128x128xf32>
    %34 = arith.mulf %29, %33 : vector<2x128x128xf32>
    %35 = arith.truncf %34 : vector<2x128x128xf32> to vector<2x128x128xbf16>
    "tpu.trace_start"() <{level = 10 : i32, message = "bqk,bkd->bqd"}> : () -> ()
    %cst_19 = arith.constant dense<0.000000e+00> : vector<2x128x32xf32>
    %36 = tpu.matmul %35, %21, %cst_19 {dimension_numbers = #tpu.dot_dimension_numbers<[2], [1], [1], [2], [0, 0, 0, 1, 1, 2], [0], [0]>} : vector<2x128x128xbf16>, vector<2x128x32xbf16>, vector<2x128x32xf32> -> vector<2x128x32xf32>
    "tpu.trace_stop"() : () -> ()
    %37 = arith.truncf %36 : vector<2x128x32xf32> to vector<2x128x32xbf16>
    %38 = vector.extract_strided_slice %14 {offsets = [0, 0, 32], sizes = [2, 128, 32], strides = [1, 1, 1]} : vector<2x128x128xbf16> to vector<2x128x32xbf16>
    %39 = vector.extract_strided_slice %16 {offsets = [0, 0, 32], sizes = [2, 128, 32], strides = [1, 1, 1]} : vector<2x128x128xbf16> to vector<2x128x32xbf16>
    %40 = vector.extract_strided_slice %18 {offsets = [0, 0, 32], sizes = [2, 128, 32], strides = [1, 1, 1]} : vector<2x128x128xbf16> to vector<2x128x32xbf16>
    "tpu.trace_start"() <{level = 10 : i32, message = "bqd,bkd->bqk"}> : () -> ()
    %cst_20 = arith.constant dense<0.000000e+00> : vector<2x128x128xf32>
    %41 = tpu.matmul %38, %39, %cst_20 {dimension_numbers = #tpu.dot_dimension_numbers<[2], [2], [1], [1], [0, 0, 0, 1, 1, 1], [0], [0]>} : vector<2x128x32xbf16>, vector<2x128x32xbf16>, vector<2x128x128xf32> -> vector<2x128x128xf32>
    "tpu.trace_stop"() : () -> ()
    %cst_21 = arith.constant dense<0xFF800000> : vector<2x128xf32>
    %42 = vector.multi_reduction <maximumf>, %41, %cst_21 [2] : vector<2x128x128xf32> to vector<2x128xf32>
    %43 = vector.shape_cast %42 : vector<2x128xf32> to vector<2x128x1xf32>
    %44 = vector.broadcast %43 : vector<2x128x1xf32> to vector<2x128x128xf32>
    %45 = arith.subf %41, %44 : vector<2x128x128xf32>
    %46 = arith.truncf %45 : vector<2x128x128xf32> to vector<2x128x128xbf16>
    %47 = math.exp %46 : vector<2x128x128xbf16>
    %48 = arith.extf %47 : vector<2x128x128xbf16> to vector<2x128x128xf32>
    %cst_22 = arith.constant dense<0.000000e+00> : vector<2x128xf32>
    %49 = vector.multi_reduction <add>, %48, %cst_22 [2] : vector<2x128x128xf32> to vector<2x128xf32>
    %50 = vector.shape_cast %49 : vector<2x128xf32> to vector<2x128x1xf32>
    %51 = tpu.reciprocal %50 {approx = true} : vector<2x128x1xf32> -> vector<2x128x1xf32>
    %52 = vector.broadcast %51 : vector<2x128x1xf32> to vector<2x128x128xf32>
    %53 = arith.mulf %48, %52 : vector<2x128x128xf32>
    %54 = arith.truncf %53 : vector<2x128x128xf32> to vector<2x128x128xbf16>
    "tpu.trace_start"() <{level = 10 : i32, message = "bqk,bkd->bqd"}> : () -> ()
    %cst_23 = arith.constant dense<0.000000e+00> : vector<2x128x32xf32>
    %55 = tpu.matmul %54, %40, %cst_23 {dimension_numbers = #tpu.dot_dimension_numbers<[2], [1], [1], [2], [0, 0, 0, 1, 1, 2], [0], [0]>} : vector<2x128x128xbf16>, vector<2x128x32xbf16>, vector<2x128x32xf32> -> vector<2x128x32xf32>
    "tpu.trace_stop"() : () -> ()
    %56 = arith.truncf %55 : vector<2x128x32xf32> to vector<2x128x32xbf16>
    %57 = vector.extract_strided_slice %14 {offsets = [0, 0, 64], sizes = [2, 128, 32], strides = [1, 1, 1]} : vector<2x128x128xbf16> to vector<2x128x32xbf16>
    %58 = vector.extract_strided_slice %16 {offsets = [0, 0, 64], sizes = [2, 128, 32], strides = [1, 1, 1]} : vector<2x128x128xbf16> to vector<2x128x32xbf16>
    %59 = vector.extract_strided_slice %18 {offsets = [0, 0, 64], sizes = [2, 128, 32], strides = [1, 1, 1]} : vector<2x128x128xbf16> to vector<2x128x32xbf16>
    "tpu.trace_start"() <{level = 10 : i32, message = "bqd,bkd->bqk"}> : () -> ()
    %cst_24 = arith.constant dense<0.000000e+00> : vector<2x128x128xf32>
    %60 = tpu.matmul %57, %58, %cst_24 {dimension_numbers = #tpu.dot_dimension_numbers<[2], [2], [1], [1], [0, 0, 0, 1, 1, 1], [0], [0]>} : vector<2x128x32xbf16>, vector<2x128x32xbf16>, vector<2x128x128xf32> -> vector<2x128x128xf32>
    "tpu.trace_stop"() : () -> ()
    %cst_25 = arith.constant dense<0xFF800000> : vector<2x128xf32>
    %61 = vector.multi_reduction <maximumf>, %60, %cst_25 [2] : vector<2x128x128xf32> to vector<2x128xf32>
    %62 = vector.shape_cast %61 : vector<2x128xf32> to vector<2x128x1xf32>
    %63 = vector.broadcast %62 : vector<2x128x1xf32> to vector<2x128x128xf32>
    %64 = arith.subf %60, %63 : vector<2x128x128xf32>
    %65 = arith.truncf %64 : vector<2x128x128xf32> to vector<2x128x128xbf16>
    %66 = math.exp %65 : vector<2x128x128xbf16>
    %67 = arith.extf %66 : vector<2x128x128xbf16> to vector<2x128x128xf32>
    %cst_26 = arith.constant dense<0.000000e+00> : vector<2x128xf32>
    %68 = vector.multi_reduction <add>, %67, %cst_26 [2] : vector<2x128x128xf32> to vector<2x128xf32>
    %69 = vector.shape_cast %68 : vector<2x128xf32> to vector<2x128x1xf32>
    %70 = tpu.reciprocal %69 {approx = true} : vector<2x128x1xf32> -> vector<2x128x1xf32>
    %71 = vector.broadcast %70 : vector<2x128x1xf32> to vector<2x128x128xf32>
    %72 = arith.mulf %67, %71 : vector<2x128x128xf32>
    %73 = arith.truncf %72 : vector<2x128x128xf32> to vector<2x128x128xbf16>
    "tpu.trace_start"() <{level = 10 : i32, message = "bqk,bkd->bqd"}> : () -> ()
    %cst_27 = arith.constant dense<0.000000e+00> : vector<2x128x32xf32>
    %74 = tpu.matmul %73, %59, %cst_27 {dimension_numbers = #tpu.dot_dimension_numbers<[2], [1], [1], [2], [0, 0, 0, 1, 1, 2], [0], [0]>} : vector<2x128x128xbf16>, vector<2x128x32xbf16>, vector<2x128x32xf32> -> vector<2x128x32xf32>
    "tpu.trace_stop"() : () -> ()
    %75 = arith.truncf %74 : vector<2x128x32xf32> to vector<2x128x32xbf16>
    %76 = vector.extract_strided_slice %14 {offsets = [0, 0, 96], sizes = [2, 128, 32], strides = [1, 1, 1]} : vector<2x128x128xbf16> to vector<2x128x32xbf16>
    %77 = vector.extract_strided_slice %16 {offsets = [0, 0, 96], sizes = [2, 128, 32], strides = [1, 1, 1]} : vector<2x128x128xbf16> to vector<2x128x32xbf16>
    %78 = vector.extract_strided_slice %18 {offsets = [0, 0, 96], sizes = [2, 128, 32], strides = [1, 1, 1]} : vector<2x128x128xbf16> to vector<2x128x32xbf16>
    "tpu.trace_start"() <{level = 10 : i32, message = "bqd,bkd->bqk"}> : () -> ()
    %cst_28 = arith.constant dense<0.000000e+00> : vector<2x128x128xf32>
    %79 = tpu.matmul %76, %77, %cst_28 {dimension_numbers = #tpu.dot_dimension_numbers<[2], [2], [1], [1], [0, 0, 0, 1, 1, 1], [0], [0]>} : vector<2x128x32xbf16>, vector<2x128x32xbf16>, vector<2x128x128xf32> -> vector<2x128x128xf32>
    "tpu.trace_stop"() : () -> ()
    %cst_29 = arith.constant dense<0xFF800000> : vector<2x128xf32>
    %80 = vector.multi_reduction <maximumf>, %79, %cst_29 [2] : vector<2x128x128xf32> to vector<2x128xf32>
    %81 = vector.shape_cast %80 : vector<2x128xf32> to vector<2x128x1xf32>
    %82 = vector.broadcast %81 : vector<2x128x1xf32> to vector<2x128x128xf32>
    %83 = arith.subf %79, %82 : vector<2x128x128xf32>
    %84 = arith.truncf %83 : vector<2x128x128xf32> to vector<2x128x128xbf16>
    %85 = math.exp %84 : vector<2x128x128xbf16>
    %86 = arith.extf %85 : vector<2x128x128xbf16> to vector<2x128x128xf32>
    %cst_30 = arith.constant dense<0.000000e+00> : vector<2x128xf32>
    %87 = vector.multi_reduction <add>, %86, %cst_30 [2] : vector<2x128x128xf32> to vector<2x128xf32>
    %88 = vector.shape_cast %87 : vector<2x128xf32> to vector<2x128x1xf32>
    %89 = tpu.reciprocal %88 {approx = true} : vector<2x128x1xf32> -> vector<2x128x1xf32>
    %90 = vector.broadcast %89 : vector<2x128x1xf32> to vector<2x128x128xf32>
    %91 = arith.mulf %86, %90 : vector<2x128x128xf32>
    %92 = arith.truncf %91 : vector<2x128x128xf32> to vector<2x128x128xbf16>
    "tpu.trace_start"() <{level = 10 : i32, message = "bqk,bkd->bqd"}> : () -> ()
    %cst_31 = arith.constant dense<0.000000e+00> : vector<2x128x32xf32>
    %93 = tpu.matmul %92, %78, %cst_31 {dimension_numbers = #tpu.dot_dimension_numbers<[2], [1], [1], [2], [0, 0, 0, 1, 1, 2], [0], [0]>} : vector<2x128x128xbf16>, vector<2x128x32xbf16>, vector<2x128x32xf32> -> vector<2x128x32xf32>
    "tpu.trace_stop"() : () -> ()
    %94 = arith.truncf %93 : vector<2x128x32xf32> to vector<2x128x32xbf16>
    %95 = tpu.concatenate %37, %56, %75, %94 in 2 : vector<2x128x32xbf16>, vector<2x128x32xbf16>, vector<2x128x32xbf16>, vector<2x128x32xbf16> -> vector<2x128x128xbf16>
    %96 = vector.shape_cast %95 : vector<2x128x128xbf16> to vector<256x128xbf16>
    %c0_32 = arith.constant 0 : index
    %c0_33 = arith.constant 0 : index
    %97 = vector.load %arg7[%c0_32, %c0_33] : memref<128x128xbf16, #tpu.memory_space<vmem>>, vector<128x128xbf16>
    %cst_34 = arith.constant dense<0.000000e+00> : vector<256x128xf32>
    %98 = tpu.matmul %96, %97, %cst_34 {dimension_numbers = #tpu.dot_dimension_numbers<[1], [0], [0], [1], [0, 0, 1, 1], [], []>} : vector<256x128xbf16>, vector<128x128xbf16>, vector<256x128xf32> -> vector<256x128xf32>
    %99 = arith.addf %98, %1 : vector<256x128xf32>
    %cst_35 = arith.constant dense<0.000000e+00> : vector<256xf32>
    %100 = vector.multi_reduction <add>, %99, %cst_35 [1] : vector<256x128xf32> to vector<256xf32>
    %101 = vector.shape_cast %100 : vector<256xf32> to vector<256x1xf32>
    %cst_36 = arith.constant 1.280000e+02 : f32
    %102 = vector.broadcast %cst_36 : f32 to vector<256x1xf32>
    %103 = arith.divf %101, %102 : vector<256x1xf32>
    %104 = vector.broadcast %103 : vector<256x1xf32> to vector<256x128xf32>
    %105 = arith.subf %99, %104 : vector<256x128xf32>
    %106 = arith.mulf %105, %105 : vector<256x128xf32>
    %cst_37 = arith.constant dense<0.000000e+00> : vector<256xf32>
    %107 = vector.multi_reduction <add>, %106, %cst_37 [1] : vector<256x128xf32> to vector<256xf32>
    %108 = vector.shape_cast %107 : vector<256xf32> to vector<256x1xf32>
    %cst_38 = arith.constant 1.280000e+02 : f32
    %109 = vector.broadcast %cst_38 : f32 to vector<256x1xf32>
    %110 = arith.divf %108, %109 : vector<256x1xf32>
    %111 = vector.broadcast %103 : vector<256x1xf32> to vector<256x128xf32>
    %112 = arith.subf %99, %111 : vector<256x128xf32>
    %cst_39 = arith.constant 9.99999997E-7 : f32
    %113 = vector.broadcast %cst_39 : f32 to vector<256x1xf32>
    %114 = arith.addf %110, %113 : vector<256x1xf32>
    %115 = math.rsqrt %114 : vector<256x1xf32>
    %116 = vector.broadcast %115 : vector<256x1xf32> to vector<256x128xf32>
    %117 = arith.mulf %112, %116 : vector<256x128xf32>
    %c0_40 = arith.constant 0 : index
    %c0_41 = arith.constant 0 : index
    %118 = vector.load %arg8[%c0_40, %c0_41] : memref<1x128xf32, #tpu.memory_space<vmem>>, vector<1x128xf32>
    %119 = vector.broadcast %118 : vector<1x128xf32> to vector<256x128xf32>
    %120 = arith.mulf %117, %119 : vector<256x128xf32>
    %c0_42 = arith.constant 0 : index
    %c0_43 = arith.constant 0 : index
    %121 = vector.load %arg9[%c0_42, %c0_43] : memref<1x128xf32, #tpu.memory_space<vmem>>, vector<1x128xf32>
    %122 = vector.broadcast %121 : vector<1x128xf32> to vector<256x128xf32>
    %123 = arith.addf %120, %122 : vector<256x128xf32>
    %124 = vector.shape_cast %123 : vector<256x128xf32> to vector<2x128x128xf32>
    %c0_44 = arith.constant 0 : index
    %c0_45 = arith.constant 0 : index
    %c0_46 = arith.constant 0 : index
    %125 = vector.load %arg10[%c0_44, %c0_45, %c0_46] : memref<2x128x128xf32, #tpu.memory_space<vmem>>, vector<2x128x128xf32>
    tpu.vector_store %arg10[%c0_44, %c0_45, %c0_46], %124 {strides = array<i32>} : memref<2x128x128xf32, #tpu.memory_space<vmem>>, vector<2x128x128xf32>,
    return
  }
  func.func @transform_0(%arg0: i32) -> (i32, i32, i32) {
    %c0_i32 = arith.constant 0 : i32
    %c0_i32_0 = arith.constant 0 : i32
    %c0_i32_1 = arith.constant 0 : i32
    return %arg0, %c0_i32, %c0_i32_0 : i32, i32, i32
  }
  func.func @transform_1(%arg0: i32) -> (i32, i32, i32) {
    %c0_i32 = arith.constant 0 : i32
    %c0_i32_0 = arith.constant 0 : i32
    %c0_i32_1 = arith.constant 0 : i32
    return %arg0, %c0_i32, %c0_i32_0 : i32, i32, i32
  }
  func.func @transform_2(%arg0: i32) -> (i32, i32, i32) {
    %c0_i32 = arith.constant 0 : i32
    %c0_i32_0 = arith.constant 0 : i32
    %c0_i32_1 = arith.constant 0 : i32
    return %arg0, %c0_i32, %c0_i32_0 : i32, i32, i32
  }
  func.func @transform_3(%arg0: i32) -> (i32, i32) {
    %c0_i32 = arith.constant 0 : i32
    %c0_i32_0 = arith.constant 0 : i32
    %c0_i32_1 = arith.constant 0 : i32
    return %c0_i32, %c0_i32_0 : i32, i32
  }
  func.func @transform_4(%arg0: i32) -> (i32, i32) {
    %c0_i32 = arith.constant 0 : i32
    %c0_i32_0 = arith.constant 0 : i32
    %c0_i32_1 = arith.constant 0 : i32
    return %c0_i32, %c0_i32_0 : i32, i32
  }
  func.func @transform_5(%arg0: i32) -> (i32, i32) {
    %c0_i32 = arith.constant 0 : i32
    %c0_i32_0 = arith.constant 0 : i32
    %c0_i32_1 = arith.constant 0 : i32
    return %c0_i32, %c0_i32_0 : i32, i32
  }
  func.func @transform_6(%arg0: i32) -> (i32, i32) {
    %c0_i32 = arith.constant 0 : i32
    %c0_i32_0 = arith.constant 0 : i32
    %c0_i32_1 = arith.constant 0 : i32
    return %c0_i32, %c0_i32_0 : i32, i32
  }
  func.func @transform_7(%arg0: i32) -> (i32, i32) {
    %c0_i32 = arith.constant 0 : i32
    %c0_i32_0 = arith.constant 0 : i32
    %c0_i32_1 = arith.constant 0 : i32
    return %c0_i32, %c0_i32_0 : i32, i32
  }
  func.func @transform_8(%arg0: i32) -> (i32, i32) {
    %c0_i32 = arith.constant 0 : i32
    %c0_i32_0 = arith.constant 0 : i32
    %c0_i32_1 = arith.constant 0 : i32
    return %c0_i32, %c0_i32_0 : i32, i32
  }
  func.func @transform_9(%arg0: i32) -> (i32, i32, i32) {
    %c0_i32 = arith.constant 0 : i32
    %c0_i32_0 = arith.constant 0 : i32
    %c0_i32_1 = arith.constant 0 : i32
    return %arg0, %c0_i32, %c0_i32_0 : i32, i32, i32
  }
}

</mosaic_0001>

<llo_original>
// kernel: tpu_custom_call.1
$region0: #{tpu_custom_call.1}
  #allocation0 [shape = 'u32[]', space=smem, size = 0x4, offset = 0x4, fixed_abs, tag = 'smem constant byte address 0x4 - core index']
  #allocation1 [shape = 'u32[72,128]{1,0:T(1,128)}', space=vmem, size = 0x9000, scoped, tag = 'internal scratch']
  %s0 = inlined_call_operand.hbm [shape: f32[4,128,128], index: 0, kind: input, shape index: {}]
  %s1 = inlined_call_operand.hbm [shape: bf16[4,128,128], index: 1, kind: input, shape index: {}]
  %s2 = inlined_call_operand.hbm [shape: bf16[4,128,128], index: 2, kind: input, shape index: {}]
  %s3 = inlined_call_operand.hbm [shape: bf16[128,128], index: 3, kind: input, shape index: {}]
  %s4 = inlined_call_operand.hbm [shape: bf16[128,128], index: 4, kind: input, shape index: {}]
  %s5 = inlined_call_operand.hbm [shape: bf16[128,128], index: 5, kind: input, shape index: {}]
  %s6 = inlined_call_operand.hbm [shape: bf16[128,128], index: 6, kind: input, shape index: {}]
  %s7 = inlined_call_operand.vmem [shape: f32[1,128], index: 7, kind: input, shape index: {}]
  %s8 = inlined_call_operand.vmem [shape: f32[1,128], index: 8, kind: input, shape index: {}]
  %s9 = inlined_call_operand.hbm [shape: f32[4,128,128], index: 9, kind: output, shape index: {}]
  %s10 = sld [smem:[#allocation0]]
  $region97: #{tpu_custom_call.1} parent=0
    _
  %s12 = ssub.s32 1, %s10
  %s13 = scalar_select 0, %s12, %s10
  $region1: #{tpu_custom_call.1} parent=0
    #allocation2 [shape = 'u8[262144]{0}', space=vmem, size = 0x40000, scoped, tag = 'input window, operand 0']
    #allocation3 [shape = 's32[2]{0}', space=sflag, size = 0x8, scoped, tag = 'scoped memory for tpu_custom_call.1']
    #allocation4 [shape = 's32[2]{0}', space=sflag, size = 0x8, scoped, tag = 'scoped memory for tpu_custom_call.1']
    #allocation5 [shape = 'u8[131072]{0}', space=vmem, size = 0x20000, scoped, tag = 'input window, operand 1']
    #allocation6 [shape = 's32[2]{0}', space=sflag, size = 0x8, scoped, tag = 'scoped memory for tpu_custom_call.1']
    #allocation7 [shape = 'u8[131072]{0}', space=vmem, size = 0x20000, scoped, tag = 'input window, operand 2']
    #allocation8 [shape = 'u8[32768]{0}', space=vmem, size = 0x8000, scoped, tag = 'input window, operand 3, single buffered']
    #allocation9 [shape = 's32[1]{0}', space=sflag, size = 0x4, scoped, tag = 'scoped memory for tpu_custom_call.1']
    #allocation10 [shape = 'u8[32768]{0}', space=vmem, size = 0x8000, scoped, tag = 'input window, operand 4, single buffered']
    #allocation11 [shape = 'u8[32768]{0}', space=vmem, size = 0x8000, scoped, tag = 'input window, operand 5, single buffered']
    #allocation12 [shape = 's32[1]{0}', space=sflag, size = 0x4, scoped, tag = 'scoped memory for tpu_custom_call.1']
    #allocation13 [shape = 'u8[32768]{0}', space=vmem, size = 0x8000, scoped, tag = 'input window, operand 6, single buffered']
    #allocation14 [shape = 'u8[262144]{0}', space=vmem, size = 0x40000, scoped, tag = 'output window, operand 0']
    %14 = vsyncpa [#allocation3], 0
    %s15 = scalar_lea.sflag [#allocation3], 1
    %16 = vsyncpa %s15, 0
    %17 = vsyncpa [#allocation6], 0
    %s18 = scalar_lea.sflag [#allocation6], 1
    %19 = vsyncpa %s18, 0
    %20 = vsyncpa [#allocation9], 0
    %21 = vsyncpa [#allocation12], 0
    %22 = vsyncpa [#allocation4], 0
    %s23 = scalar_lea.sflag [#allocation4], 1
    %24 = vsyncpa %s23, 0
    loop: start=0, step=1, limit=4
    $region2: #{tpu_custom_call.1} parent=1 // loop_pre_header
      _
    $region3: #{tpu_custom_call.1} parent=1 // loop_header
      %s26 = sphi 0, %s30
      %p27 = scmp.ge.s32.totalorder %s26, 4
      %s36 = sphi 0, %s38
      %s39 = sphi 0, %s36
      %s40 = sphi 0, %s39
      %s56 = sphi 0, %s40
      %s62 = sphi 0, %s64
      %s65 = sphi 0, %s62
      %s66 = sphi 0, %s65
      %s82 = sphi 0, %s66
      %s88 = sphi 0, %s90
      %s91 = sphi 0, %s88
      %s92 = sphi 0, %s91
      %s108 = sphi 0, %s92
      %s112 = sphi 0, %s112
      %s114 = sphi 0, %s112
      %s115 = sphi 0, %s114
      %s129 = sphi 0, %s115
      %s133 = sphi 0, %s133
      %s135 = sphi 0, %s133
      %s136 = sphi 0, %s135
      %s150 = sphi 0, %s136
      %s154 = sphi 0, %s154
      %s156 = sphi 0, %s154
      %s157 = sphi 0, %s156
      %s171 = sphi 0, %s157
      %s175 = sphi 0, %s175
      %s177 = sphi 0, %s175
      %s178 = sphi 0, %s177
      %s192 = sphi 0, %s178
      %s196 = sphi 0, %s196
      %s198 = sphi 0, %s196
      %s199 = sphi 0, %s198
      %s213 = sphi 0, %s199
      %s217 = sphi 0, %s217
      %s219 = sphi 0, %s217
      %s220 = sphi 0, %s219
      %s234 = sphi 0, %s220
      %s240 = sphi 0, %s242
      %s243 = sphi 0, %s240
      %s244 = sphi 0, %s243
      %s260 = sphi 0, %s244
    $region4: #{tpu_custom_call.1} parent=1 // loop_header_branch
      %29 = sbr.rel (%p27) target = $region8
    $region5: #{tpu_custom_call.1} parent=1 // loop_body
      %s31 = ssub.s32 %s26, 1
      %s32 = ssub.s32 %s26, 2
      %s33 = sadd.s32 %s26, 1
      %s34 = ssub.s32 %s26, %s33
      %p35 = scmp.eq.s32.totalorder %s34, 0
      %s37 = sadd.s32 %s36, 1
      %s38 = scalar_select %p35, %s36, %s37
      %p41 = pneg %p35
      %p42 = scmp.eq.s32.totalorder %s26, 1
      %p43 = por %p41, %p42
      %p44 = scmp.ne.s32.totalorder %s36, %s39
      %p45 = scmp.eq.s32.totalorder %s26, 0
      %p46 = por %p44, %p45
      %p47 = scmp.ne.s32.totalorder %s36, %s39
      %p48 = scmp.eq.s32.totalorder %s31, 1
      %p49 = por %p47, %p48
      %p50 = scmp.ne.s32.totalorder %s39, %s40
      %p51 = scmp.eq.s32.totalorder %s31, 0
      %p52 = por %p50, %p51
      %p53 = scmp.ne.s32.totalorder %s39, %s40
      %p54 = scmp.eq.s32.totalorder %s32, 1
      %p55 = por %p53, %p54
      %p57 = scmp.ne.s32.totalorder %s40, %s56
      %p58 = scmp.eq.s32.totalorder %s32, 0
      %p59 = por %p57, %p58
      %s60 = ssub.s32 %s26, %s33
      %p61 = scmp.eq.s32.totalorder %s60, 0
      %s63 = sadd.s32 %s62, 1
      %s64 = scalar_select %p61, %s62, %s63
      %p67 = pneg %p61
      %p68 = scmp.eq.s32.totalorder %s26, 1
      %p69 = por %p67, %p68
      %p70 = scmp.ne.s32.totalorder %s62, %s65
      %p71 = scmp.eq.s32.totalorder %s26, 0
      %p72 = por %p70, %p71
      %p73 = scmp.ne.s32.totalorder %s62, %s65
      %p74 = scmp.eq.s32.totalorder %s31, 1
      %p75 = por %p73, %p74
      %p76 = scmp.ne.s32.totalorder %s65, %s66
      %p77 = scmp.eq.s32.totalorder %s31, 0
      %p78 = por %p76, %p77
      %p79 = scmp.ne.s32.totalorder %s65, %s66
      %p80 = scmp.eq.s32.totalorder %s32, 1
      %p81 = por %p79, %p80
      %p83 = scmp.ne.s32.totalorder %s66, %s82
      %p84 = scmp.eq.s32.totalorder %s32, 0
      %p85 = por %p83, %p84
      %s86 = ssub.s32 %s26, %s33
      %p87 = scmp.eq.s32.totalorder %s86, 0
      %s89 = sadd.s32 %s88, 1
      %s90 = scalar_select %p87, %s88, %s89
      %p93 = pneg %p87
      %p94 = scmp.eq.s32.totalorder %s26, 1
      %p95 = por %p93, %p94
      %p96 = scmp.ne.s32.totalorder %s88, %s91
      %p97 = scmp.eq.s32.totalorder %s26, 0
      %p98 = por %p96, %p97
      %p99 = scmp.ne.s32.totalorder %s88, %s91
      %p100 = scmp.eq.s32.totalorder %s31, 1
      %p101 = por %p99, %p100
      %p102 = scmp.ne.s32.totalorder %s91, %s92
      %p103 = scmp.eq.s32.totalorder %s31, 0
      %p104 = por %p102, %p103
      %p105 = scmp.ne.s32.totalorder %s91, %s92
      %p106 = scmp.eq.s32.totalorder %s32, 1
      %p107 = por %p105, %p106
      %p109 = scmp.ne.s32.totalorder %s92, %s108
      %p110 = scmp.eq.s32.totalorder %s32, 0
      %p111 = por %p109, %p110
      %s113 = sadd.s32 %s112, 1
      %p116 = scmp.eq.s32.totalorder %s26, 1
      %p117 = scmp.ne.s32.totalorder %s112, %s114
      %p118 = scmp.eq.s32.totalorder %s26, 0
      %p119 = por %p117, %p118
      %p120 = scmp.ne.s32.totalorder %s112, %s114
      %p121 = scmp.eq.s32.totalorder %s31, 1
      %p122 = por %p120, %p121
      %p123 = scmp.ne.s32.totalorder %s114, %s115
      %p124 = scmp.eq.s32.totalorder %s31, 0
      %p125 = por %p123, %p124
      %p126 = scmp.ne.s32.totalorder %s114, %s115
      %p127 = scmp.eq.s32.totalorder %s32, 1
      %p128 = por %p126, %p127
      %p130 = scmp.ne.s32.totalorder %s115, %s129
      %p131 = scmp.eq.s32.totalorder %s32, 0
      %p132 = por %p130, %p131
      %s134 = sadd.s32 %s133, 1
      %p137 = scmp.eq.s32.totalorder %s26, 1
      %p138 = scmp.ne.s32.totalorder %s133, %s135
      %p139 = scmp.eq.s32.totalorder %s26, 0
      %p140 = por %p138, %p139
      %p141 = scmp.ne.s32.totalorder %s133, %s135
      %p142 = scmp.eq.s32.totalorder %s31, 1
      %p143 = por %p141, %p142
      %p144 = scmp.ne.s32.totalorder %s135, %s136
      %p145 = scmp.eq.s32.totalorder %s31, 0
      %p146 = por %p144, %p145
      %p147 = scmp.ne.s32.totalorder %s135, %s136
      %p148 = scmp.eq.s32.totalorder %s32, 1
      %p149 = por %p147, %p148
      %p151 = scmp.ne.s32.totalorder %s136, %s150
      %p152 = scmp.eq.s32.totalorder %s32, 0
      %p153 = por %p151, %p152
      %s155 = sadd.s32 %s154, 1
      %p158 = scmp.eq.s32.totalorder %s26, 1
      %p159 = scmp.ne.s32.totalorder %s154, %s156
      %p160 = scmp.eq.s32.totalorder %s26, 0
      %p161 = por %p159, %p160
      %p162 = scmp.ne.s32.totalorder %s154, %s156
      %p163 = scmp.eq.s32.totalorder %s31, 1
      %p164 = por %p162, %p163
      %p165 = scmp.ne.s32.totalorder %s156, %s157
      %p166 = scmp.eq.s32.totalorder %s31, 0
      %p167 = por %p165, %p166
      %p168 = scmp.ne.s32.totalorder %s156, %s157
      %p169 = scmp.eq.s32.totalorder %s32, 1
      %p170 = por %p168, %p169
      %p172 = scmp.ne.s32.totalorder %s157, %s171
      %p173 = scmp.eq.s32.totalorder %s32, 0
      %p174 = por %p172, %p173
      %s176 = sadd.s32 %s175, 1
      %p179 = scmp.eq.s32.totalorder %s26, 1
      %p180 = scmp.ne.s32.totalorder %s175, %s177
      %p181 = scmp.eq.s32.totalorder %s26, 0
      %p182 = por %p180, %p181
      %p183 = scmp.ne.s32.totalorder %s175, %s177
      %p184 = scmp.eq.s32.totalorder %s31, 1
      %p185 = por %p183, %p184
      %p186 = scmp.ne.s32.totalorder %s177, %s178
      %p187 = scmp.eq.s32.totalorder %s31, 0
      %p188 = por %p186, %p187
      %p189 = scmp.ne.s32.totalorder %s177, %s178
      %p190 = scmp.eq.s32.totalorder %s32, 1
      %p191 = por %p189, %p190
      %p193 = scmp.ne.s32.totalorder %s178, %s192
      %p194 = scmp.eq.s32.totalorder %s32, 0
      %p195 = por %p193, %p194
      %s197 = sadd.s32 %s196, 1
      %p200 = scmp.eq.s32.totalorder %s26, 1
      %p201 = scmp.ne.s32.totalorder %s196, %s198
      %p202 = scmp.eq.s32.totalorder %s26, 0
      %p203 = por %p201, %p202
      %p204 = scmp.ne.s32.totalorder %s196, %s198
      %p205 = scmp.eq.s32.totalorder %s31, 1
      %p206 = por %p204, %p205
      %p207 = scmp.ne.s32.totalorder %s198, %s199
      %p208 = scmp.eq.s32.totalorder %s31, 0
      %p209 = por %p207, %p208
      %p210 = scmp.ne.s32.totalorder %s198, %s199
      %p211 = scmp.eq.s32.totalorder %s32, 1
      %p212 = por %p210, %p211
      %p214 = scmp.ne.s32.totalorder %s199, %s213
      %p215 = scmp.eq.s32.totalorder %s32, 0
      %p216 = por %p214, %p215
      %s218 = sadd.s32 %s217, 1
      %p221 = scmp.eq.s32.totalorder %s26, 1
      %p222 = scmp.ne.s32.totalorder %s217, %s219
      %p223 = scmp.eq.s32.totalorder %s26, 0
      %p224 = por %p222, %p223
      %p225 = scmp.ne.s32.totalorder %s217, %s219
      %p226 = scmp.eq.s32.totalorder %s31, 1
      %p227 = por %p225, %p226
      %p228 = scmp.ne.s32.totalorder %s219, %s220
      %p229 = scmp.eq.s32.totalorder %s31, 0
      %p230 = por %p228, %p229
      %p231 = scmp.ne.s32.totalorder %s219, %s220
      %p232 = scmp.eq.s32.totalorder %s32, 1
      %p233 = por %p231, %p232
      %p235 = scmp.ne.s32.totalorder %s220, %s234
      %p236 = scmp.eq.s32.totalorder %s32, 0
      %p237 = por %p235, %p236
      %s238 = ssub.s32 %s26, %s33
      %p239 = scmp.eq.s32.totalorder %s238, 0
      %s241 = sadd.s32 %s240, 1
      %s242 = scalar_select %p239, %s240, %s241
      %p245 = pneg %p239
      %p246 = scmp.eq.s32.totalorder %s26, 1
      %p247 = por %p245, %p246
      %p248 = scmp.ne.s32.totalorder %s240, %s243
      %p249 = scmp.eq.s32.totalorder %s26, 0
      %p250 = por %p248, %p249
      %p251 = scmp.ne.s32.totalorder %s240, %s243
      %p252 = scmp.eq.s32.totalorder %s31, 1
      %p253 = por %p251, %p252
      %p254 = scmp.ne.s32.totalorder %s243, %s244
      %p255 = scmp.eq.s32.totalorder %s31, 0
      %p256 = por %p254, %p255
      %p257 = scmp.ne.s32.totalorder %s243, %s244
      %p258 = scmp.eq.s32.totalorder %s32, 1
      %p259 = por %p257, %p258
      %p261 = scmp.ne.s32.totalorder %s244, %s260
      %p262 = scmp.eq.s32.totalorder %s32, 0
      %p263 = por %p261, %p262
      %p264 = scmp.le.s32.totalorder 1, %s26
      %p265 = scmp.lt.s32.totalorder %s26, 3
      %p266 = pnand %p264, %p265
      %p267 = pneg %p266
      // Predicated region
      $region9: #{tpu_custom_call.1} parent=5 // pred_check
        _
      $region10: #{tpu_custom_call.1} parent=5 // pred_check_branch
        %269 = sbr.rel (%p266) target = $region12
      $region11: #{tpu_custom_call.1} parent=5 // pred_region
        %s270 = ssub.s32 %s26, 1
        // Predicated region
        $region13: #{tpu_custom_call.1} parent=11 // pred_check
          %p271 = pneg %p125
        $region14: #{tpu_custom_call.1} parent=11 // pred_check_branch
          %273 = sbr.rel (%p271) target = $region16
        $region15: #{tpu_custom_call.1} parent=11 // pred_region
          %275 = vsyncadd [#allocation9], 0
          %s276 = sshll.u32 %s3, 4
          %s277 = int_to_ptr.hbm [resolvable:$true] %s276
          %s278 = sshll.u32 [#allocation8], 4
          %s279 = int_to_ptr.vmem [resolvable:$true] %s278
          %284 = dma.hbm_to_vmem [thread:$0]  %s277, 1024, %s279, [#allocation9], 64, 64, 4
        $region16: #{tpu_custom_call.1} parent=11 // pred_fallthru
          _
        // Predicated region
        $region17: #{tpu_custom_call.1} parent=11 // pred_check
          %p285 = pneg %p146
        $region18: #{tpu_custom_call.1} parent=11 // pred_check_branch
          %287 = sbr.rel (%p285) target = $region20
        $region19: #{tpu_custom_call.1} parent=11 // pred_region
          %289 = vsyncadd [#allocation9], 0
          %s290 = sshll.u32 %s4, 4
          %s291 = int_to_ptr.hbm [resolvable:$true] %s290
          %s292 = sshll.u32 [#allocation10], 4
          %s293 = int_to_ptr.vmem [resolvable:$true] %s292
          %298 = dma.hbm_to_vmem [thread:$0]  %s291, 1024, %s293, [#allocation9], 64, 64, 4
        $region20: #{tpu_custom_call.1} parent=11 // pred_fallthru
          _
        // Predicated region
        $region21: #{tpu_custom_call.1} parent=11 // pred_check
          %p299 = pneg %p167
        $region22: #{tpu_custom_call.1} parent=11 // pred_check_branch
          %301 = sbr.rel (%p299) target = $region24
        $region23: #{tpu_custom_call.1} parent=11 // pred_region
          %303 = vsyncadd [#allocation12], 0
          %s304 = sshll.u32 %s5, 4
          %s305 = int_to_ptr.hbm [resolvable:$true] %s304
          %s306 = sshll.u32 [#allocation11], 4
          %s307 = int_to_ptr.vmem [resolvable:$true] %s306
          %312 = dma.hbm_to_vmem [thread:$0]  %s305, 1024, %s307, [#allocation12], 64, 64, 4
        $region24: #{tpu_custom_call.1} parent=11 // pred_fallthru
          _
        // Predicated region
        $region25: #{tpu_custom_call.1} parent=11 // pred_check
          %p313 = pneg %p188
        $region26: #{tpu_custom_call.1} parent=11 // pred_check_branch
          %315 = sbr.rel (%p313) target = $region28
        $region27: #{tpu_custom_call.1} parent=11 // pred_region
          %317 = vsyncadd [#allocation12], 0
          %s318 = sshll.u32 %s6, 4
          %s319 = int_to_ptr.hbm [resolvable:$true] %s318
          %s320 = sshll.u32 [#allocation13], 4
          %s321 = int_to_ptr.vmem [resolvable:$true] %s320
          %326 = dma.hbm_to_vmem [thread:$0]  %s319, 1024, %s321, [#allocation12], 64, 64, 4
        $region28: #{tpu_custom_call.1} parent=11 // pred_fallthru
          _
        // Predicated region
        $region29: #{tpu_custom_call.1} parent=11 // pred_check
          %p327 = pneg %p209
        $region30: #{tpu_custom_call.1} parent=11 // pred_check_branch
          %329 = sbr.rel (%p327) target = $region32
        $region31: #{tpu_custom_call.1} parent=11 // pred_region
          _
        $region32: #{tpu_custom_call.1} parent=11 // pred_fallthru
          _
        // Predicated region
        $region33: #{tpu_custom_call.1} parent=11 // pred_check
          %p330 = pneg %p230
        $region34: #{tpu_custom_call.1} parent=11 // pred_check_branch
          %332 = sbr.rel (%p330) target = $region36
        $region35: #{tpu_custom_call.1} parent=11 // pred_region
          _
        $region36: #{tpu_custom_call.1} parent=11 // pred_fallthru
          _
      $region12: #{tpu_custom_call.1} parent=5 // pred_fallthru
        _
      %p333 = scmp.lt.s32.totalorder %s26, 2
      // Predicated region
      $region37: #{tpu_custom_call.1} parent=5 // pred_check
        %p334 = pneg %p333
      $region38: #{tpu_custom_call.1} parent=5 // pred_check_branch
        %336 = sbr.rel (%p334) target = $region40
      $region39: #{tpu_custom_call.1} parent=5 // pred_region
        // Predicated region
        $region41: #{tpu_custom_call.1} parent=39 // pred_check
          %p337 = pneg %p46
        $region42: #{tpu_custom_call.1} parent=39 // pred_check_branch
          %339 = sbr.rel (%p337) target = $region44
        $region43: #{tpu_custom_call.1} parent=39 // pred_region
          %s340 = sand.u32 %s36, 1
          %s341 = scalar_lea.sflag [#allocation3], %s340
          %s342 = sand.u32 %s36, 1
          %s343 = smul.addr %s342, 256
          %s344 = scalar_lea.vmem [#allocation2], %s343
          %s345 = smul.u32 2, %s26
          %347 = vsyncadd %s341, 0
          %s348 = smul.addr %s345, 16
          %s349 = smul.addr %s348, 8
          %s350 = scalar_lea.hbm %s0, %s349
          %s351 = sshll.u32 %s350, 4
          %s352 = int_to_ptr.hbm [resolvable:$true] %s351
          %s353 = sshll.u32 %s344, 4
          %s354 = int_to_ptr.vmem [resolvable:$true] %s353
          %359 = dma.hbm_to_vmem [thread:$0]  %s352, 4096, %s354, %s341, 128, 128, 8
        $region44: #{tpu_custom_call.1} parent=39 // pred_fallthru
          _
        // Predicated region
        $region45: #{tpu_custom_call.1} parent=39 // pred_check
          %p360 = pneg %p72
        $region46: #{tpu_custom_call.1} parent=39 // pred_check_branch
          %362 = sbr.rel (%p360) target = $region48
        $region47: #{tpu_custom_call.1} parent=39 // pred_region
          %s363 = sand.u32 %s26, 1
          %s364 = scalar_lea.sflag [#allocation6], %s363
          %s365 = sand.u32 %s62, 1
          %s366 = smul.addr %s365, 128
          %s367 = scalar_lea.vmem [#allocation5], %s366
          %s368 = smul.u32 2, %s26
          %370 = vsyncadd %s364, 0
          %s371 = smul.addr %s368, 16
          %s372 = smul.addr %s371, 4
          %s373 = scalar_lea.hbm %s1, %s372
          %s374 = sshll.u32 %s373, 4
          %s375 = int_to_ptr.hbm [resolvable:$true] %s374
          %s376 = sshll.u32 %s367, 4
          %s377 = int_to_ptr.vmem [resolvable:$true] %s376
          %382 = dma.hbm_to_vmem [thread:$0]  %s375, 2048, %s377, %s364, 64, 64, 4
        $region48: #{tpu_custom_call.1} parent=39 // pred_fallthru
          _
        // Predicated region
        $region49: #{tpu_custom_call.1} parent=39 // pred_check
          %p383 = pneg %p98
        $region50: #{tpu_custom_call.1} parent=39 // pred_check_branch
          %385 = sbr.rel (%p383) target = $region52
        $region51: #{tpu_custom_call.1} parent=39 // pred_region
          %s386 = sand.u32 %s26, 1
          %s387 = scalar_lea.sflag [#allocation6], %s386
          %s388 = sand.u32 %s88, 1
          %s389 = smul.addr %s388, 128
          %s390 = scalar_lea.vmem [#allocation7], %s389
          %s391 = smul.u32 2, %s26
          %393 = vsyncadd %s387, 0
          %s394 = smul.addr %s391, 16
          %s395 = smul.addr %s394, 4
          %s396 = scalar_lea.hbm %s2, %s395
          %s397 = sshll.u32 %s396, 4
          %s398 = int_to_ptr.hbm [resolvable:$true] %s397
          %s399 = sshll.u32 %s390, 4
          %s400 = int_to_ptr.vmem [resolvable:$true] %s399
          %405 = dma.hbm_to_vmem [thread:$0]  %s398, 2048, %s400, %s387, 64, 64, 4
        $region52: #{tpu_custom_call.1} parent=39 // pred_fallthru
          _
      $region40: #{tpu_custom_call.1} parent=5 // pred_fallthru
        _
      %p406 = scmp.le.s32.totalorder 1, %s26
      %p407 = scmp.lt.s32.totalorder %s26, 3
      %p408 = pnand %p406, %p407
      %p409 = pneg %p408
      // Predicated region
      $region53: #{tpu_custom_call.1} parent=5 // pred_check
        _
      $region54: #{tpu_custom_call.1} parent=5 // pred_check_branch
        %411 = sbr.rel (%p408) target = $region56
      $region55: #{tpu_custom_call.1} parent=5 // pred_region
        %s412 = ssub.s32 %s26, 1
        %s413 = sand.u32 %s39, 1
        %s414 = scalar_lea.sflag [#allocation3], %s413
        %s415 = sand.u32 %s39, 1
        %s416 = smul.addr %s415, 256
        %s417 = scalar_lea.vmem [#allocation2], %s416
        // Predicated region
        $region57: #{tpu_custom_call.1} parent=55 // pred_check
          %p418 = pneg %p52
        $region58: #{tpu_custom_call.1} parent=55 // pred_check_branch
          %420 = sbr.rel (%p418) target = $region60
        $region59: #{tpu_custom_call.1} parent=55 // pred_region
          %422 = dma.done %s414, 4096
        $region60: #{tpu_custom_call.1} parent=55 // pred_fallthru
          _
        %s423 = sand.u32 %s31, 1
        %s424 = scalar_lea.sflag [#allocation6], %s423
        %s425 = sand.u32 %s65, 1
        %s426 = smul.addr %s425, 128
        %s427 = scalar_lea.vmem [#allocation5], %s426
        // Predicated region
        $region61: #{tpu_custom_call.1} parent=55 // pred_check
          %p428 = pneg %p78
        $region62: #{tpu_custom_call.1} parent=55 // pred_check_branch
          %430 = sbr.rel (%p428) target = $region64
        $region63: #{tpu_custom_call.1} parent=55 // pred_region
          %432 = dma.done %s424, 2048
        $region64: #{tpu_custom_call.1} parent=55 // pred_fallthru
          _
        %s433 = sand.u32 %s31, 1
        %s434 = scalar_lea.sflag [#allocation6], %s433
        %s435 = sand.u32 %s91, 1
        %s436 = smul.addr %s435, 128
        %s437 = scalar_lea.vmem [#allocation7], %s436
        // Predicated region
        $region65: #{tpu_custom_call.1} parent=55 // pred_check
          %p438 = pneg %p104
        $region66: #{tpu_custom_call.1} parent=55 // pred_check_branch
          %440 = sbr.rel (%p438) target = $region68
        $region67: #{tpu_custom_call.1} parent=55 // pred_region
          %442 = dma.done %s434, 2048
        $region68: #{tpu_custom_call.1} parent=55 // pred_fallthru
          _
        // Predicated region
        $region69: #{tpu_custom_call.1} parent=55 // pred_check
          %p443 = pneg %p125
        $region70: #{tpu_custom_call.1} parent=55 // pred_check_branch
          %445 = sbr.rel (%p443) target = $region72
        $region71: #{tpu_custom_call.1} parent=55 // pred_region
          %447 = dma.done [#allocation9], 1024
        $region72: #{tpu_custom_call.1} parent=55 // pred_fallthru
          _
        // Predicated region
        $region73: #{tpu_custom_call.1} parent=55 // pred_check
          %p448 = pneg %p146
        $region74: #{tpu_custom_call.1} parent=55 // pred_check_branch
          %450 = sbr.rel (%p448) target = $region76
        $region75: #{tpu_custom_call.1} parent=55 // pred_region
          %452 = dma.done [#allocation9], 1024
        $region76: #{tpu_custom_call.1} parent=55 // pred_fallthru
          _
        // Predicated region
        $region77: #{tpu_custom_call.1} parent=55 // pred_check
          %p453 = pneg %p167
        $region78: #{tpu_custom_call.1} parent=55 // pred_check_branch
          %455 = sbr.rel (%p453) target = $region80
        $region79: #{tpu_custom_call.1} parent=55 // pred_region
          %457 = dma.done [#allocation12], 1024
        $region80: #{tpu_custom_call.1} parent=55 // pred_fallthru
          _
        // Predicated region
        $region81: #{tpu_custom_call.1} parent=55 // pred_check
          %p458 = pneg %p188
        $region82: #{tpu_custom_call.1} parent=55 // pred_check_branch
          %460 = sbr.rel (%p458) target = $region84
        $region83: #{tpu_custom_call.1} parent=55 // pred_region
          %462 = dma.done [#allocation12], 1024
        $region84: #{tpu_custom_call.1} parent=55 // pred_fallthru
          _
        %s463 = sand.u32 %s39, 1
        %s464 = scalar_lea.sflag [#allocation3], %s463
        %s465 = sand.u32 %s39, 1
        %s466 = smul.addr %s465, 256
        %s467 = scalar_lea.vmem [#allocation2], %s466
        %p468 = pneg %p52
        %p469 = pneg %p49
        %s470 = sand.u32 %s31, 1
        %s471 = scalar_lea.sflag [#allocation6], %s470
        %s472 = sand.u32 %s65, 1
        %s473 = smul.addr %s472, 128
        %s474 = scalar_lea.vmem [#allocation5], %s473
        %p475 = pneg %p78
        %p476 = pneg %p75
        %s477 = sand.u32 %s31, 1
        %s478 = scalar_lea.sflag [#allocation6], %s477
        %s479 = sand.u32 %s91, 1
        %s480 = smul.addr %s479, 128
        %s481 = scalar_lea.vmem [#allocation7], %s480
        %p482 = pneg %p104
        %p483 = pneg %p101
        %p484 = pneg %p125
        %p485 = pneg %p122
        %p486 = pneg %p146
        %p487 = pneg %p143
        %p488 = pneg %p167
        %p489 = pneg %p164
        %p490 = pneg %p188
        %p491 = pneg %p185
        %p492 = pneg %p209
        %p493 = pneg %p206
        %p494 = pneg %p230
        %p495 = pneg %p227
        %p496 = pneg %p256
        %p497 = pneg %p253
        %s498 = sand.u32 %s243, 1
        %s499 = scalar_lea.sflag [#allocation4], %s498
        %s500 = sand.u32 %s243, 1
        %s501 = smul.addr %s500, 256
        %s502 = scalar_lea.vmem [#allocation14], %s501
        %s503 = smul.u32 2, %s31
        %s504 = smul.u32 2, %s31
        %s505 = smul.u32 2, %s31
        %s506 = smul.u32 2, %s31
        %v507 = vld [vmem:[%s417] sm:$0xff]
        %v508 = vld [vmem:[%s417 + $0x8] sm:$0xff]
        %v509 = vld [vmem:[%s417 + $0x10] sm:$0xff]
        %v510 = vld [vmem:[%s417 + $0x18] sm:$0xff]
        %v511 = vld [vmem:[%s417 + $0x20] sm:$0xff]
        %v512 = vld [vmem:[%s417 + $0x28] sm:$0xff]
        %v513 = vld [vmem:[%s417 + $0x30] sm:$0xff]
        %v514 = vld [vmem:[%s417 + $0x38] sm:$0xff]
        %v515 = vld [vmem:[%s417 + $0x40] sm:$0xff]
        %v516 = vld [vmem:[%s417 + $0x48] sm:$0xff]
        %v517 = vld [vmem:[%s417 + $0x50] sm:$0xff]
        %v518 = vld [vmem:[%s417 + $0x58] sm:$0xff]
        %v519 = vld [vmem:[%s417 + $0x60] sm:$0xff]
        %v520 = vld [vmem:[%s417 + $0x68] sm:$0xff]
        %v521 = vld [vmem:[%s417 + $0x70] sm:$0xff]
        %v522 = vld [vmem:[%s417 + $0x78] sm:$0xff]
        %v523 = vld [vmem:[%s417 + $0x80] sm:$0xff]
        %v524 = vld [vmem:[%s417 + $0x88] sm:$0xff]
        %v525 = vld [vmem:[%s417 + $0x90] sm:$0xff]
        %v526 = vld [vmem:[%s417 + $0x98] sm:$0xff]
        %v527 = vld [vmem:[%s417 + $0xa0] sm:$0xff]
        %v528 = vld [vmem:[%s417 + $0xa8] sm:$0xff]
        %v529 = vld [vmem:[%s417 + $0xb0] sm:$0xff]
        %v530 = vld [vmem:[%s417 + $0xb8] sm:$0xff]
        %v531 = vld [vmem:[%s417 + $0xc0] sm:$0xff]
        %v532 = vld [vmem:[%s417 + $0xc8] sm:$0xff]
        %v533 = vld [vmem:[%s417 + $0xd0] sm:$0xff]
        %v534 = vld [vmem:[%s417 + $0xd8] sm:$0xff]
        %v535 = vld [vmem:[%s417 + $0xe0] sm:$0xff]
        %v536 = vld [vmem:[%s417 + $0xe8] sm:$0xff]
        %v537 = vld [vmem:[%s417 + $0xf0] sm:$0xff]
        %v538 = vld [vmem:[%s417 + $0xf8] sm:$0xff]
        %v539 = vpack.c.bf16 %v508, %v507
        %v540 = vpack.c.bf16 %v510, %v509
        %v541 = vpack.c.bf16 %v512, %v511
        %v542 = vpack.c.bf16 %v514, %v513
        %v543 = vpack.c.bf16 %v516, %v515
        %v544 = vpack.c.bf16 %v518, %v517
        %v545 = vpack.c.bf16 %v520, %v519
        %v546 = vpack.c.bf16 %v522, %v521
        %v547 = vpack.c.bf16 %v524, %v523
        %v548 = vpack.c.bf16 %v526, %v525
        %v549 = vpack.c.bf16 %v528, %v527
        %v550 = vpack.c.bf16 %v530, %v529
        %v551 = vpack.c.bf16 %v532, %v531
        %v552 = vpack.c.bf16 %v534, %v533
        %v553 = vpack.c.bf16 %v536, %v535
        %v554 = vpack.c.bf16 %v538, %v537
        %v555 = vld [vmem:[%s427] sm:$0xf]
        %v556 = vld [vmem:[%s427 + $0x4] sm:$0xf]
        %v557 = vld [vmem:[%s427 + $0x8] sm:$0xf]
        %v558 = vld [vmem:[%s427 + $0xc] sm:$0xf]
        %v559 = vld [vmem:[%s427 + $0x10] sm:$0xf]
        %v560 = vld [vmem:[%s427 + $0x14] sm:$0xf]
        %v561 = vld [vmem:[%s427 + $0x18] sm:$0xf]
        %v562 = vld [vmem:[%s427 + $0x1c] sm:$0xf]
        %v563 = vld [vmem:[%s427 + $0x20] sm:$0xf]
        %v564 = vld [vmem:[%s427 + $0x24] sm:$0xf]
        %v565 = vld [vmem:[%s427 + $0x28] sm:$0xf]
        %v566 = vld [vmem:[%s427 + $0x2c] sm:$0xf]
        %v567 = vld [vmem:[%s427 + $0x30] sm:$0xf]
        %v568 = vld [vmem:[%s427 + $0x34] sm:$0xf]
        %v569 = vld [vmem:[%s427 + $0x38] sm:$0xf]
        %v570 = vld [vmem:[%s427 + $0x3c] sm:$0xf]
        %v571 = vld [vmem:[%s427 + $0x40] sm:$0xf]
        %v572 = vld [vmem:[%s427 + $0x44] sm:$0xf]
        %v573 = vld [vmem:[%s427 + $0x48] sm:$0xf]
        %v574 = vld [vmem:[%s427 + $0x4c] sm:$0xf]
        %v575 = vld [vmem:[%s427 + $0x50] sm:$0xf]
        %v576 = vld [vmem:[%s427 + $0x54] sm:$0xf]
        %v577 = vld [vmem:[%s427 + $0x58] sm:$0xf]
        %v578 = vld [vmem:[%s427 + $0x5c] sm:$0xf]
        %v579 = vld [vmem:[%s427 + $0x60] sm:$0xf]
        %v580 = vld [vmem:[%s427 + $0x64] sm:$0xf]
        %v581 = vld [vmem:[%s427 + $0x68] sm:$0xf]
        %v582 = vld [vmem:[%s427 + $0x6c] sm:$0xf]
        %v583 = vld [vmem:[%s427 + $0x70] sm:$0xf]
        %v584 = vld [vmem:[%s427 + $0x74] sm:$0xf]
        %v585 = vld [vmem:[%s427 + $0x78] sm:$0xf]
        %v586 = vld [vmem:[%s427 + $0x7c] sm:$0xf]
        %v587 = vld [vmem:[%s437] sm:$0xf]
        %v588 = vld [vmem:[%s437 + $0x4] sm:$0xf]
        %v589 = vld [vmem:[%s437 + $0x8] sm:$0xf]
        %v590 = vld [vmem:[%s437 + $0xc] sm:$0xf]
        %v591 = vld [vmem:[%s437 + $0x10] sm:$0xf]
        %v592 = vld [vmem:[%s437 + $0x14] sm:$0xf]
        %v593 = vld [vmem:[%s437 + $0x18] sm:$0xf]
        %v594 = vld [vmem:[%s437 + $0x1c] sm:$0xf]
        %v595 = vld [vmem:[%s437 + $0x20] sm:$0xf]
        %v596 = vld [vmem:[%s437 + $0x24] sm:$0xf]
        %v597 = vld [vmem:[%s437 + $0x28] sm:$0xf]
        %v598 = vld [vmem:[%s437 + $0x2c] sm:$0xf]
        %v599 = vld [vmem:[%s437 + $0x30] sm:$0xf]
        %v600 = vld [vmem:[%s437 + $0x34] sm:$0xf]
        %v601 = vld [vmem:[%s437 + $0x38] sm:$0xf]
        %v602 = vld [vmem:[%s437 + $0x3c] sm:$0xf]
        %v603 = vld [vmem:[%s437 + $0x40] sm:$0xf]
        %v604 = vld [vmem:[%s437 + $0x44] sm:$0xf]
        %v605 = vld [vmem:[%s437 + $0x48] sm:$0xf]
        %v606 = vld [vmem:[%s437 + $0x4c] sm:$0xf]
        %v607 = vld [vmem:[%s437 + $0x50] sm:$0xf]
        %v608 = vld [vmem:[%s437 + $0x54] sm:$0xf]
        %v609 = vld [vmem:[%s437 + $0x58] sm:$0xf]
        %v610 = vld [vmem:[%s437 + $0x5c] sm:$0xf]
        %v611 = vld [vmem:[%s437 + $0x60] sm:$0xf]
        %v612 = vld [vmem:[%s437 + $0x64] sm:$0xf]
        %v613 = vld [vmem:[%s437 + $0x68] sm:$0xf]
        %v614 = vld [vmem:[%s437 + $0x6c] sm:$0xf]
        %v615 = vld [vmem:[%s437 + $0x70] sm:$0xf]
        %v616 = vld [vmem:[%s437 + $0x74] sm:$0xf]
        %v617 = vld [vmem:[%s437 + $0x78] sm:$0xf]
        %v618 = vld [vmem:[%s437 + $0x7c] sm:$0xf]
        %v619 = vld [vmem:[#allocation8] sm:$0xf]
        %v620 = vld [vmem:[#allocation8 + $0x4] sm:$0xf]
        %v621 = vld [vmem:[#allocation8 + $0x8] sm:$0xf]
        %v622 = vld [vmem:[#allocation8 + $0xc] sm:$0xf]
        %v623 = vld [vmem:[#allocation8 + $0x10] sm:$0xf]
        %v624 = vld [vmem:[#allocation8 + $0x14] sm:$0xf]
        %v625 = vld [vmem:[#allocation8 + $0x18] sm:$0xf]
        %v626 = vld [vmem:[#allocation8 + $0x1c] sm:$0xf]
        %v627 = vld [vmem:[#allocation8 + $0x20] sm:$0xf]
        %v628 = vld [vmem:[#allocation8 + $0x24] sm:$0xf]
        %v629 = vld [vmem:[#allocation8 + $0x28] sm:$0xf]
        %v630 = vld [vmem:[#allocation8 + $0x2c] sm:$0xf]
        %v631 = vld [vmem:[#allocation8 + $0x30] sm:$0xf]
        %v632 = vld [vmem:[#allocation8 + $0x34] sm:$0xf]
        %v633 = vld [vmem:[#allocation8 + $0x38] sm:$0xf]
        %v634 = vld [vmem:[#allocation8 + $0x3c] sm:$0xf]
        %v651 = vunpack.c.l.b16 %v619
        %v652 = vunpack.c.l.b16 %v620
        %v653 = vunpack.c.l.b16 %v621
        %v654 = vunpack.c.l.b16 %v622
        %v655 = vunpack.c.l.b16 %v623
        %v656 = vunpack.c.l.b16 %v624
        %v657 = vunpack.c.l.b16 %v625
        %v658 = vunpack.c.l.b16 %v626
        %v659 = vunpack.c.l.b16 %v627
        %v660 = vunpack.c.l.b16 %v628
        %v661 = vunpack.c.l.b16 %v629
        %v662 = vunpack.c.l.b16 %v630
        %v663 = vunpack.c.l.b16 %v631
        %v664 = vunpack.c.l.b16 %v632
        %v665 = vunpack.c.l.b16 %v633
        %v666 = vunpack.c.l.b16 %v634
        %v667 = vpack.c.b16 %v652, %v651
        %v668 = vpack.c.b16 %v654, %v653
        %v669 = vpack.c.b16 %v656, %v655
        %v670 = vpack.c.b16 %v658, %v657
        %v671 = vpack.c.b16 %v660, %v659
        %v672 = vpack.c.b16 %v662, %v661
        %v673 = vpack.c.b16 %v664, %v663
        %v674 = vpack.c.b16 %v666, %v665
        %683 = vmatpush.bf16.msra.mxu0 %v674
        %684 = vmatpush.bf16.msra.mxu0 %v673
        %685 = vmatpush.bf16.msra.mxu0 %v672
        %686 = vmatpush.bf16.msra.mxu0 %v671
        %687 = vmatpush.bf16.msra.mxu0 %v670
        %688 = vmatpush.bf16.msra.mxu0 %v669
        %689 = vmatpush.bf16.msra.mxu0 %v668
        %690 = vmatpush.bf16.msra.mxu0 %v667
        %691 = vmatmul.bf16.gmra.mxu0 %v539
        %v692 = vpop.f32.mrf.mxu0
        %v693 = vadd.f32 0.0, %v692
        %v694 = vpop.f32.mrf.mxu0
        %v695 = vadd.f32 0.0, %v694
        %696 = vmatmul.bf16.gmra.mxu0 %v540
        %v697 = vpop.f32.mrf.mxu0
        %v698 = vadd.f32 0.0, %v697
        %v699 = vpop.f32.mrf.mxu0
        %v700 = vadd.f32 0.0, %v699
        %701 = vmatmul.bf16.gmra.mxu0 %v541
        %v702 = vpop.f32.mrf.mxu0
        %v703 = vadd.f32 0.0, %v702
        %v704 = vpop.f32.mrf.mxu0
        %v705 = vadd.f32 0.0, %v704
        %706 = vmatmul.bf16.gmra.mxu0 %v542
        %v707 = vpop.f32.mrf.mxu0
        %v708 = vadd.f32 0.0, %v707
        %v709 = vpop.f32.mrf.mxu0
        %v710 = vadd.f32 0.0, %v709
        %711 = vmatmul.bf16.gmra.mxu0 %v543
        %v712 = vpop.f32.mrf.mxu0
        %v713 = vadd.f32 0.0, %v712
        %v714 = vpop.f32.mrf.mxu0
        %v715 = vadd.f32 0.0, %v714
        %716 = vmatmul.bf16.gmra.mxu0 %v544
        %v717 = vpop.f32.mrf.mxu0
        %v718 = vadd.f32 0.0, %v717
        %v719 = vpop.f32.mrf.mxu0
        %v720 = vadd.f32 0.0, %v719
        %721 = vmatmul.bf16.gmra.mxu0 %v545
        %v722 = vpop.f32.mrf.mxu0
        %v723 = vadd.f32 0.0, %v722
        %v724 = vpop.f32.mrf.mxu0
        %v725 = vadd.f32 0.0, %v724
        %726 = vmatmul.bf16.gmra.mxu0 %v546
        %v727 = vpop.f32.mrf.mxu0
        %v728 = vadd.f32 0.0, %v727
        %v729 = vpop.f32.mrf.mxu0
        %v730 = vadd.f32 0.0, %v729
        %731 = vmatmul.bf16.gmra.mxu0 %v547
        %v732 = vpop.f32.mrf.mxu0
        %v733 = vadd.f32 0.0, %v732
        %v734 = vpop.f32.mrf.mxu0
        %v735 = vadd.f32 0.0, %v734
        %736 = vmatmul.bf16.gmra.mxu0 %v548
        %v737 = vpop.f32.mrf.mxu0
        %v738 = vadd.f32 0.0, %v737
        %v739 = vpop.f32.mrf.mxu0
        %v740 = vadd.f32 0.0, %v739
        %741 = vmatmul.bf16.gmra.mxu0 %v549
        %v742 = vpop.f32.mrf.mxu0
        %v743 = vadd.f32 0.0, %v742
        %v744 = vpop.f32.mrf.mxu0
        %v745 = vadd.f32 0.0, %v744
        %746 = vmatmul.bf16.gmra.mxu0 %v550
        %v747 = vpop.f32.mrf.mxu0
        %v748 = vadd.f32 0.0, %v747
        %v749 = vpop.f32.mrf.mxu0
        %v750 = vadd.f32 0.0, %v749
        %751 = vmatmul.bf16.gmra.mxu0 %v551
        %v752 = vpop.f32.mrf.mxu0
        %v753 = vadd.f32 0.0, %v752
        %v754 = vpop.f32.mrf.mxu0
        %v755 = vadd.f32 0.0, %v754
        %756 = vmatmul.bf16.gmra.mxu0 %v552
        %v757 = vpop.f32.mrf.mxu0
        %v758 = vadd.f32 0.0, %v757
        %v759 = vpop.f32.mrf.mxu0
        %v760 = vadd.f32 0.0, %v759
        %761 = vmatmul.bf16.gmra.mxu0 %v553
        %v762 = vpop.f32.mrf.mxu0
        %v763 = vadd.f32 0.0, %v762
        %v764 = vpop.f32.mrf.mxu0
        %v765 = vadd.f32 0.0, %v764
        %766 = vmatmul.bf16.gmra.mxu0 %v554
        %v767 = vpop.f32.mrf.mxu0
        %v768 = vadd.f32 0.0, %v767
        %v769 = vpop.f32.mrf.mxu0
        %v770 = vadd.f32 0.0, %v769
        %771 = vdwg.mxu0
        %v772 = vld [vmem:[#allocation10] sm:$0xf]
        %v773 = vld [vmem:[#allocation10 + $0x4] sm:$0xf]
        %v774 = vld [vmem:[#allocation10 + $0x8] sm:$0xf]
        %v775 = vld [vmem:[#allocation10 + $0xc] sm:$0xf]
        %v776 = vld [vmem:[#allocation10 + $0x10] sm:$0xf]
        %v777 = vld [vmem:[#allocation10 + $0x14] sm:$0xf]
        %v778 = vld [vmem:[#allocation10 + $0x18] sm:$0xf]
        %v779 = vld [vmem:[#allocation10 + $0x1c] sm:$0xf]
        %v780 = vld [vmem:[#allocation10 + $0x20] sm:$0xf]
        %v781 = vld [vmem:[#allocation10 + $0x24] sm:$0xf]
        %v782 = vld [vmem:[#allocation10 + $0x28] sm:$0xf]
        %v783 = vld [vmem:[#allocation10 + $0x2c] sm:$0xf]
        %v784 = vld [vmem:[#allocation10 + $0x30] sm:$0xf]
        %v785 = vld [vmem:[#allocation10 + $0x34] sm:$0xf]
        %v786 = vld [vmem:[#allocation10 + $0x38] sm:$0xf]
        %v787 = vld [vmem:[#allocation10 + $0x3c] sm:$0xf]
        %v820 = vunpack.c.l.b16 %v555
        %v821 = vunpack.c.l.b16 %v556
        %v822 = vunpack.c.l.b16 %v557
        %v823 = vunpack.c.l.b16 %v558
        %v824 = vunpack.c.l.b16 %v559
        %v825 = vunpack.c.l.b16 %v560
        %v826 = vunpack.c.l.b16 %v561
        %v827 = vunpack.c.l.b16 %v562
        %v828 = vunpack.c.l.b16 %v563
        %v829 = vunpack.c.l.b16 %v564
        %v830 = vunpack.c.l.b16 %v565
        %v831 = vunpack.c.l.b16 %v566
        %v832 = vunpack.c.l.b16 %v567
        %v833 = vunpack.c.l.b16 %v568
        %v834 = vunpack.c.l.b16 %v569
        %v835 = vunpack.c.l.b16 %v570
        %v836 = vunpack.c.l.b16 %v571
        %v837 = vunpack.c.l.b16 %v572
        %v838 = vunpack.c.l.b16 %v573
        %v839 = vunpack.c.l.b16 %v574
        %v840 = vunpack.c.l.b16 %v575
        %v841 = vunpack.c.l.b16 %v576
        %v842 = vunpack.c.l.b16 %v577
        %v843 = vunpack.c.l.b16 %v578
        %v844 = vunpack.c.l.b16 %v579
        %v845 = vunpack.c.l.b16 %v580
        %v846 = vunpack.c.l.b16 %v581
        %v847 = vunpack.c.l.b16 %v582
        %v848 = vunpack.c.l.b16 %v583
        %v849 = vunpack.c.l.b16 %v584
        %v850 = vunpack.c.l.b16 %v585
        %v851 = vunpack.c.l.b16 %v586
        %v852 = vpack.c.b16 %v821, %v820
        %v853 = vpack.c.b16 %v823, %v822
        %v854 = vpack.c.b16 %v825, %v824
        %v855 = vpack.c.b16 %v827, %v826
        %v856 = vpack.c.b16 %v829, %v828
        %v857 = vpack.c.b16 %v831, %v830
        %v858 = vpack.c.b16 %v833, %v832
        %v859 = vpack.c.b16 %v835, %v834
        %v860 = vpack.c.b16 %v837, %v836
        %v861 = vpack.c.b16 %v839, %v838
        %v862 = vpack.c.b16 %v841, %v840
        %v863 = vpack.c.b16 %v843, %v842
        %v864 = vpack.c.b16 %v845, %v844
        %v865 = vpack.c.b16 %v847, %v846
        %v866 = vpack.c.b16 %v849, %v848
        %v867 = vpack.c.b16 %v851, %v850
        %v900 = vunpack.c.l.b16 %v772
        %v901 = vunpack.c.l.b16 %v773
        %v902 = vunpack.c.l.b16 %v774
        %v903 = vunpack.c.l.b16 %v775
        %v904 = vunpack.c.l.b16 %v776
        %v905 = vunpack.c.l.b16 %v777
        %v906 = vunpack.c.l.b16 %v778
        %v907 = vunpack.c.l.b16 %v779
        %v908 = vunpack.c.l.b16 %v780
        %v909 = vunpack.c.l.b16 %v781
        %v910 = vunpack.c.l.b16 %v782
        %v911 = vunpack.c.l.b16 %v783
        %v912 = vunpack.c.l.b16 %v784
        %v913 = vunpack.c.l.b16 %v785
        %v914 = vunpack.c.l.b16 %v786
        %v915 = vunpack.c.l.b16 %v787
        %v916 = vpack.c.b16 %v901, %v900
        %v917 = vpack.c.b16 %v903, %v902
        %v918 = vpack.c.b16 %v905, %v904
        %v919 = vpack.c.b16 %v907, %v906
        %v920 = vpack.c.b16 %v909, %v908
        %v921 = vpack.c.b16 %v911, %v910
        %v922 = vpack.c.b16 %v913, %v912
        %v923 = vpack.c.b16 %v915, %v914
        %932 = vmatpush.bf16.msra.mxu0 %v923
        %933 = vmatpush.bf16.msra.mxu0 %v922
        %934 = vmatpush.bf16.msra.mxu0 %v921
        %935 = vmatpush.bf16.msra.mxu0 %v920
        %936 = vmatpush.bf16.msra.mxu0 %v919
        %937 = vmatpush.bf16.msra.mxu0 %v918
        %938 = vmatpush.bf16.msra.mxu0 %v917
        %939 = vmatpush.bf16.msra.mxu0 %v916
        %940 = vmatmul.bf16.gmra.mxu0 %v852
        %v941 = vpop.f32.mrf.mxu0
        %v942 = vadd.f32 0.0, %v941
        %v943 = vpop.f32.mrf.mxu0
        %v944 = vadd.f32 0.0, %v943
        %945 = vmatmul.bf16.gmra.mxu0 %v853
        %v946 = vpop.f32.mrf.mxu0
        %v947 = vadd.f32 0.0, %v946
        %v948 = vpop.f32.mrf.mxu0
        %v949 = vadd.f32 0.0, %v948
        %950 = vmatmul.bf16.gmra.mxu0 %v854
        %v951 = vpop.f32.mrf.mxu0
        %v952 = vadd.f32 0.0, %v951
        %v953 = vpop.f32.mrf.mxu0
        %v954 = vadd.f32 0.0, %v953
        %955 = vmatmul.bf16.gmra.mxu0 %v855
        %v956 = vpop.f32.mrf.mxu0
        %v957 = vadd.f32 0.0, %v956
        %v958 = vpop.f32.mrf.mxu0
        %v959 = vadd.f32 0.0, %v958
        %960 = vmatmul.bf16.gmra.mxu0 %v856
        %v961 = vpop.f32.mrf.mxu0
        %v962 = vadd.f32 0.0, %v961
        %v963 = vpop.f32.mrf.mxu0
        %v964 = vadd.f32 0.0, %v963
        %965 = vmatmul.bf16.gmra.mxu0 %v857
        %v966 = vpop.f32.mrf.mxu0
        %v967 = vadd.f32 0.0, %v966
        %v968 = vpop.f32.mrf.mxu0
        %v969 = vadd.f32 0.0, %v968
        %970 = vmatmul.bf16.gmra.mxu0 %v858
        %v971 = vpop.f32.mrf.mxu0
        %v972 = vadd.f32 0.0, %v971
        %v973 = vpop.f32.mrf.mxu0
        %v974 = vadd.f32 0.0, %v973
        %975 = vmatmul.bf16.gmra.mxu0 %v859
        %v976 = vpop.f32.mrf.mxu0
        %v977 = vadd.f32 0.0, %v976
        %v978 = vpop.f32.mrf.mxu0
        %v979 = vadd.f32 0.0, %v978
        %980 = vmatmul.bf16.gmra.mxu0 %v860
        %v981 = vpop.f32.mrf.mxu0
        %v982 = vadd.f32 0.0, %v981
        %v983 = vpop.f32.mrf.mxu0
        %v984 = vadd.f32 0.0, %v983
        %985 = vmatmul.bf16.gmra.mxu0 %v861
        %v986 = vpop.f32.mrf.mxu0
        %v987 = vadd.f32 0.0, %v986
        %v988 = vpop.f32.mrf.mxu0
        %v989 = vadd.f32 0.0, %v988
        %990 = vmatmul.bf16.gmra.mxu0 %v862
        %v991 = vpop.f32.mrf.mxu0
        %v992 = vadd.f32 0.0, %v991
        %v993 = vpop.f32.mrf.mxu0
        %v994 = vadd.f32 0.0, %v993
        %995 = vmatmul.bf16.gmra.mxu0 %v863
        %v996 = vpop.f32.mrf.mxu0
        %v997 = vadd.f32 0.0, %v996
        %v998 = vpop.f32.mrf.mxu0
        %v999 = vadd.f32 0.0, %v998
        %1000 = vmatmul.bf16.gmra.mxu0 %v864
        %v1001 = vpop.f32.mrf.mxu0
        %v1002 = vadd.f32 0.0, %v1001
        %v1003 = vpop.f32.mrf.mxu0
        %v1004 = vadd.f32 0.0, %v1003
        %1005 = vmatmul.bf16.gmra.mxu0 %v865
        %v1006 = vpop.f32.mrf.mxu0
        %v1007 = vadd.f32 0.0, %v1006
        %v1008 = vpop.f32.mrf.mxu0
        %v1009 = vadd.f32 0.0, %v1008
        %1010 = vmatmul.bf16.gmra.mxu0 %v866
        %v1011 = vpop.f32.mrf.mxu0
        %v1012 = vadd.f32 0.0, %v1011
        %v1013 = vpop.f32.mrf.mxu0
        %v1014 = vadd.f32 0.0, %v1013
        %1015 = vmatmul.bf16.gmra.mxu0 %v867
        %v1016 = vpop.f32.mrf.mxu0
        %v1017 = vadd.f32 0.0, %v1016
        %v1018 = vpop.f32.mrf.mxu0
        %v1019 = vadd.f32 0.0, %v1018
        %1020 = vdwg.mxu0
        %v1021 = vld [vmem:[#allocation11] sm:$0xf]
        %v1022 = vld [vmem:[#allocation11 + $0x4] sm:$0xf]
        %v1023 = vld [vmem:[#allocation11 + $0x8] sm:$0xf]
        %v1024 = vld [vmem:[#allocation11 + $0xc] sm:$0xf]
        %v1025 = vld [vmem:[#allocation11 + $0x10] sm:$0xf]
        %v1026 = vld [vmem:[#allocation11 + $0x14] sm:$0xf]
        %v1027 = vld [vmem:[#allocation11 + $0x18] sm:$0xf]
        %v1028 = vld [vmem:[#allocation11 + $0x1c] sm:$0xf]
        %v1029 = vld [vmem:[#allocation11 + $0x20] sm:$0xf]
        %v1030 = vld [vmem:[#allocation11 + $0x24] sm:$0xf]
        %v1031 = vld [vmem:[#allocation11 + $0x28] sm:$0xf]
        %v1032 = vld [vmem:[#allocation11 + $0x2c] sm:$0xf]
        %v1033 = vld [vmem:[#allocation11 + $0x30] sm:$0xf]
        %v1034 = vld [vmem:[#allocation11 + $0x34] sm:$0xf]
        %v1035 = vld [vmem:[#allocation11 + $0x38] sm:$0xf]
        %v1036 = vld [vmem:[#allocation11 + $0x3c] sm:$0xf]
        %v1069 = vunpack.c.l.b16 %v587
        %v1070 = vunpack.c.l.b16 %v588
        %v1071 = vunpack.c.l.b16 %v589
        %v1072 = vunpack.c.l.b16 %v590
        %v1073 = vunpack.c.l.b16 %v591
        %v1074 = vunpack.c.l.b16 %v592
        %v1075 = vunpack.c.l.b16 %v593
        %v1076 = vunpack.c.l.b16 %v594
        %v1077 = vunpack.c.l.b16 %v595
        %v1078 = vunpack.c.l.b16 %v596
        %v1079 = vunpack.c.l.b16 %v597
        %v1080 = vunpack.c.l.b16 %v598
        %v1081 = vunpack.c.l.b16 %v599
        %v1082 = vunpack.c.l.b16 %v600
        %v1083 = vunpack.c.l.b16 %v601
        %v1084 = vunpack.c.l.b16 %v602
        %v1085 = vunpack.c.l.b16 %v603
        %v1086 = vunpack.c.l.b16 %v604
        %v1087 = vunpack.c.l.b16 %v605
        %v1088 = vunpack.c.l.b16 %v606
        %v1089 = vunpack.c.l.b16 %v607
        %v1090 = vunpack.c.l.b16 %v608
        %v1091 = vunpack.c.l.b16 %v609
        %v1092 = vunpack.c.l.b16 %v610
        %v1093 = vunpack.c.l.b16 %v611
        %v1094 = vunpack.c.l.b16 %v612
        %v1095 = vunpack.c.l.b16 %v613
        %v1096 = vunpack.c.l.b16 %v614
        %v1097 = vunpack.c.l.b16 %v615
        %v1098 = vunpack.c.l.b16 %v616
        %v1099 = vunpack.c.l.b16 %v617
        %v1100 = vunpack.c.l.b16 %v618
        %v1101 = vpack.c.b16 %v1070, %v1069
        %v1102 = vpack.c.b16 %v1072, %v1071
        %v1103 = vpack.c.b16 %v1074, %v1073
        %v1104 = vpack.c.b16 %v1076, %v1075
        %v1105 = vpack.c.b16 %v1078, %v1077
        %v1106 = vpack.c.b16 %v1080, %v1079
        %v1107 = vpack.c.b16 %v1082, %v1081
        %v1108 = vpack.c.b16 %v1084, %v1083
        %v1109 = vpack.c.b16 %v1086, %v1085
        %v1110 = vpack.c.b16 %v1088, %v1087
        %v1111 = vpack.c.b16 %v1090, %v1089
        %v1112 = vpack.c.b16 %v1092, %v1091
        %v1113 = vpack.c.b16 %v1094, %v1093
        %v1114 = vpack.c.b16 %v1096, %v1095
        %v1115 = vpack.c.b16 %v1098, %v1097
        %v1116 = vpack.c.b16 %v1100, %v1099
        %v1149 = vunpack.c.l.b16 %v1021
        %v1150 = vunpack.c.l.b16 %v1022
        %v1151 = vunpack.c.l.b16 %v1023
        %v1152 = vunpack.c.l.b16 %v1024
        %v1153 = vunpack.c.l.b16 %v1025
        %v1154 = vunpack.c.l.b16 %v1026
        %v1155 = vunpack.c.l.b16 %v1027
        %v1156 = vunpack.c.l.b16 %v1028
        %v1157 = vunpack.c.l.b16 %v1029
        %v1158 = vunpack.c.l.b16 %v1030
        %v1159 = vunpack.c.l.b16 %v1031
        %v1160 = vunpack.c.l.b16 %v1032
        %v1161 = vunpack.c.l.b16 %v1033
        %v1162 = vunpack.c.l.b16 %v1034
        %v1163 = vunpack.c.l.b16 %v1035
        %v1164 = vunpack.c.l.b16 %v1036
        %v1165 = vpack.c.b16 %v1150, %v1149
        %v1166 = vpack.c.b16 %v1152, %v1151
        %v1167 = vpack.c.b16 %v1154, %v1153
        %v1168 = vpack.c.b16 %v1156, %v1155
        %v1169 = vpack.c.b16 %v1158, %v1157
        %v1170 = vpack.c.b16 %v1160, %v1159
        %v1171 = vpack.c.b16 %v1162, %v1161
        %v1172 = vpack.c.b16 %v1164, %v1163
        %1181 = vmatpush.bf16.msra.mxu0 %v1172
        %1182 = vmatpush.bf16.msra.mxu0 %v1171
        %1183 = vmatpush.bf16.msra.mxu0 %v1170
        %1184 = vmatpush.bf16.msra.mxu0 %v1169
        %1185 = vmatpush.bf16.msra.mxu0 %v1168
        %1186 = vmatpush.bf16.msra.mxu0 %v1167
        %1187 = vmatpush.bf16.msra.mxu0 %v1166
        %1188 = vmatpush.bf16.msra.mxu0 %v1165
        %1189 = vmatmul.bf16.gmra.mxu0 %v1101
        %v1190 = vpop.f32.mrf.mxu0
        %v1191 = vadd.f32 0.0, %v1190
        %v1192 = vpop.f32.mrf.mxu0
        %v1193 = vadd.f32 0.0, %v1192
        %1194 = vmatmul.bf16.gmra.mxu0 %v1102
        %v1195 = vpop.f32.mrf.mxu0
        %v1196 = vadd.f32 0.0, %v1195
        %v1197 = vpop.f32.mrf.mxu0
        %v1198 = vadd.f32 0.0, %v1197
        %1199 = vmatmul.bf16.gmra.mxu0 %v1103
        %v1200 = vpop.f32.mrf.mxu0
        %v1201 = vadd.f32 0.0, %v1200
        %v1202 = vpop.f32.mrf.mxu0
        %v1203 = vadd.f32 0.0, %v1202
        %1204 = vmatmul.bf16.gmra.mxu0 %v1104
        %v1205 = vpop.f32.mrf.mxu0
        %v1206 = vadd.f32 0.0, %v1205
        %v1207 = vpop.f32.mrf.mxu0
        %v1208 = vadd.f32 0.0, %v1207
        %1209 = vmatmul.bf16.gmra.mxu0 %v1105
        %v1210 = vpop.f32.mrf.mxu0
        %v1211 = vadd.f32 0.0, %v1210
        %v1212 = vpop.f32.mrf.mxu0
        %v1213 = vadd.f32 0.0, %v1212
        %1214 = vmatmul.bf16.gmra.mxu0 %v1106
        %v1215 = vpop.f32.mrf.mxu0
        %v1216 = vadd.f32 0.0, %v1215
        %v1217 = vpop.f32.mrf.mxu0
        %v1218 = vadd.f32 0.0, %v1217
        %1219 = vmatmul.bf16.gmra.mxu0 %v1107
        %v1220 = vpop.f32.mrf.mxu0
        %v1221 = vadd.f32 0.0, %v1220
        %v1222 = vpop.f32.mrf.mxu0
        %v1223 = vadd.f32 0.0, %v1222
        %1224 = vmatmul.bf16.gmra.mxu0 %v1108
        %v1225 = vpop.f32.mrf.mxu0
        %v1226 = vadd.f32 0.0, %v1225
        %v1227 = vpop.f32.mrf.mxu0
        %v1228 = vadd.f32 0.0, %v1227
        %1229 = vmatmul.bf16.gmra.mxu0 %v1109
        %v1230 = vpop.f32.mrf.mxu0
        %v1231 = vadd.f32 0.0, %v1230
        %v1232 = vpop.f32.mrf.mxu0
        %v1233 = vadd.f32 0.0, %v1232
        %1234 = vmatmul.bf16.gmra.mxu0 %v1110
        %v1235 = vpop.f32.mrf.mxu0
        %v1236 = vadd.f32 0.0, %v1235
        %v1237 = vpop.f32.mrf.mxu0
        %v1238 = vadd.f32 0.0, %v1237
        %1239 = vmatmul.bf16.gmra.mxu0 %v1111
        %v1240 = vpop.f32.mrf.mxu0
        %v1241 = vadd.f32 0.0, %v1240
        %v1242 = vpop.f32.mrf.mxu0
        %v1243 = vadd.f32 0.0, %v1242
        %1244 = vmatmul.bf16.gmra.mxu0 %v1112
        %v1245 = vpop.f32.mrf.mxu0
        %v1246 = vadd.f32 0.0, %v1245
        %v1247 = vpop.f32.mrf.mxu0
        %v1248 = vadd.f32 0.0, %v1247
        %1249 = vmatmul.bf16.gmra.mxu0 %v1113
        %v1250 = vpop.f32.mrf.mxu0
        %v1251 = vadd.f32 0.0, %v1250
        %v1252 = vpop.f32.mrf.mxu0
        %v1253 = vadd.f32 0.0, %v1252
        %1254 = vmatmul.bf16.gmra.mxu0 %v1114
        %v1255 = vpop.f32.mrf.mxu0
        %v1256 = vadd.f32 0.0, %v1255
        %v1257 = vpop.f32.mrf.mxu0
        %v1258 = vadd.f32 0.0, %v1257
        %1259 = vmatmul.bf16.gmra.mxu0 %v1115
        %v1260 = vpop.f32.mrf.mxu0
        %v1261 = vadd.f32 0.0, %v1260
        %v1262 = vpop.f32.mrf.mxu0
        %v1263 = vadd.f32 0.0, %v1262
        %1264 = vmatmul.bf16.gmra.mxu0 %v1116
        %v1265 = vpop.f32.mrf.mxu0
        %v1266 = vadd.f32 0.0, %v1265
        %v1267 = vpop.f32.mrf.mxu0
        %v1268 = vadd.f32 0.0, %v1267
        %1269 = vdwg.mxu0
        %v1270 = vpack.c.bf16 %v693, %v693
        %v1271 = vpack.c.bf16 %v695, %v695
        %v1272 = vpack.c.bf16 %v698, %v698
        %v1273 = vpack.c.bf16 %v700, %v700
        %v1274 = vpack.c.bf16 %v703, %v703
        %v1275 = vpack.c.bf16 %v705, %v705
        %v1276 = vpack.c.bf16 %v708, %v708
        %v1277 = vpack.c.bf16 %v710, %v710
        %v1278 = vpack.c.bf16 %v713, %v713
        %v1279 = vpack.c.bf16 %v715, %v715
        %v1280 = vpack.c.bf16 %v718, %v718
        %v1281 = vpack.c.bf16 %v720, %v720
        %v1282 = vpack.c.bf16 %v723, %v723
        %v1283 = vpack.c.bf16 %v725, %v725
        %v1284 = vpack.c.bf16 %v728, %v728
        %v1285 = vpack.c.bf16 %v730, %v730
        %v1286 = vpack.c.bf16 %v733, %v733
        %v1287 = vpack.c.bf16 %v735, %v735
        %v1288 = vpack.c.bf16 %v738, %v738
        %v1289 = vpack.c.bf16 %v740, %v740
        %v1290 = vpack.c.bf16 %v743, %v743
        %v1291 = vpack.c.bf16 %v745, %v745
        %v1292 = vpack.c.bf16 %v748, %v748
        %v1293 = vpack.c.bf16 %v750, %v750
        %v1294 = vpack.c.bf16 %v753, %v753
        %v1295 = vpack.c.bf16 %v755, %v755
        %v1296 = vpack.c.bf16 %v758, %v758
        %v1297 = vpack.c.bf16 %v760, %v760
        %v1298 = vpack.c.bf16 %v763, %v763
        %v1299 = vpack.c.bf16 %v765, %v765
        %v1300 = vpack.c.bf16 %v768, %v768
        %v1301 = vpack.c.bf16 %v770, %v770
        %v1302 = vpack.c.bf16 %v942, %v942
        %v1303 = vpack.c.bf16 %v944, %v944
        %v1304 = vpack.c.bf16 %v947, %v947
        %v1305 = vpack.c.bf16 %v949, %v949
        %v1306 = vpack.c.bf16 %v952, %v952
        %v1307 = vpack.c.bf16 %v954, %v954
        %v1308 = vpack.c.bf16 %v957, %v957
        %v1309 = vpack.c.bf16 %v959, %v959
        %v1310 = vpack.c.bf16 %v962, %v962
        %v1311 = vpack.c.bf16 %v964, %v964
        %v1312 = vpack.c.bf16 %v967, %v967
        %v1313 = vpack.c.bf16 %v969, %v969
        %v1314 = vpack.c.bf16 %v972, %v972
        %v1315 = vpack.c.bf16 %v974, %v974
        %v1316 = vpack.c.bf16 %v977, %v977
        %v1317 = vpack.c.bf16 %v979, %v979
        %v1318 = vpack.c.bf16 %v982, %v982
        %v1319 = vpack.c.bf16 %v984, %v984
        %v1320 = vpack.c.bf16 %v987, %v987
        %v1321 = vpack.c.bf16 %v989, %v989
        %v1322 = vpack.c.bf16 %v992, %v992
        %v1323 = vpack.c.bf16 %v994, %v994
        %v1324 = vpack.c.bf16 %v997, %v997
        %v1325 = vpack.c.bf16 %v999, %v999
        %v1326 = vpack.c.bf16 %v1002, %v1002
        %v1327 = vpack.c.bf16 %v1004, %v1004
        %v1328 = vpack.c.bf16 %v1007, %v1007
        %v1329 = vpack.c.bf16 %v1009, %v1009
        %v1330 = vpack.c.bf16 %v1012, %v1012
        %v1331 = vpack.c.bf16 %v1014, %v1014
        %v1332 = vpack.c.bf16 %v1017, %v1017
        %v1333 = vpack.c.bf16 %v1019, %v1019
        %v1334 = vpack.c.bf16 %v1191, %v1191
        %v1335 = vpack.c.bf16 %v1193, %v1193
        %v1336 = vpack.c.bf16 %v1196, %v1196
        %v1337 = vpack.c.bf16 %v1198, %v1198
        %v1338 = vpack.c.bf16 %v1201, %v1201
        %v1339 = vpack.c.bf16 %v1203, %v1203
        %v1340 = vpack.c.bf16 %v1206, %v1206
        %v1341 = vpack.c.bf16 %v1208, %v1208
        %v1342 = vpack.c.bf16 %v1211, %v1211
        %v1343 = vpack.c.bf16 %v1213, %v1213
        %v1344 = vpack.c.bf16 %v1216, %v1216
        %v1345 = vpack.c.bf16 %v1218, %v1218
        %v1346 = vpack.c.bf16 %v1221, %v1221
        %v1347 = vpack.c.bf16 %v1223, %v1223
        %v1348 = vpack.c.bf16 %v1226, %v1226
        %v1349 = vpack.c.bf16 %v1228, %v1228
        %v1350 = vpack.c.bf16 %v1231, %v1231
        %v1351 = vpack.c.bf16 %v1233, %v1233
        %v1352 = vpack.c.bf16 %v1236, %v1236
        %v1353 = vpack.c.bf16 %v1238, %v1238
        %v1354 = vpack.c.bf16 %v1241, %v1241
        %v1355 = vpack.c.bf16 %v1243, %v1243
        %v1356 = vpack.c.bf16 %v1246, %v1246
        %v1357 = vpack.c.bf16 %v1248, %v1248
        %v1358 = vpack.c.bf16 %v1251, %v1251
        %v1359 = vpack.c.bf16 %v1253, %v1253
        %v1360 = vpack.c.bf16 %v1256, %v1256
        %v1361 = vpack.c.bf16 %v1258, %v1258
        %v1362 = vpack.c.bf16 %v1261, %v1261
        %v1363 = vpack.c.bf16 %v1263, %v1263
        %v1364 = vpack.c.bf16 %v1266, %v1266
        %v1365 = vpack.c.bf16 %v1268, %v1268
        %v1382 = vunpack.c.l.b16 %v1270
        %v1383 = vunpack.c.l.b16 %v1271
        %v1384 = vunpack.c.l.b16 %v1272
        %v1385 = vunpack.c.l.b16 %v1273
        %v1386 = vunpack.c.l.b16 %v1274
        %v1387 = vunpack.c.l.b16 %v1275
        %v1388 = vunpack.c.l.b16 %v1276
        %v1389 = vunpack.c.l.b16 %v1277
        %v1390 = vunpack.c.l.b16 %v1278
        %v1391 = vunpack.c.l.b16 %v1279
        %v1392 = vunpack.c.l.b16 %v1280
        %v1393 = vunpack.c.l.b16 %v1281
        %v1394 = vunpack.c.l.b16 %v1282
        %v1395 = vunpack.c.l.b16 %v1283
        %v1396 = vunpack.c.l.b16 %v1284
        %v1397 = vunpack.c.l.b16 %v1285
        %v1398 = vpack.c.b16 %v1383, %v1382
        %v1399 = vpack.c.b16 %v1385, %v1384
        %v1400 = vpack.c.b16 %v1387, %v1386
        %v1401 = vpack.c.b16 %v1389, %v1388
        %v1402 = vpack.c.b16 %v1391, %v1390
        %v1403 = vpack.c.b16 %v1393, %v1392
        %v1404 = vpack.c.b16 %v1395, %v1394
        %v1405 = vpack.c.b16 %v1397, %v1396
        %v1422 = vunpack.c.l.b16 %v1302
        %v1423 = vunpack.c.l.b16 %v1303
        %v1424 = vunpack.c.l.b16 %v1304
        %v1425 = vunpack.c.l.b16 %v1305
        %v1426 = vunpack.c.l.b16 %v1306
        %v1427 = vunpack.c.l.b16 %v1307
        %v1428 = vunpack.c.l.b16 %v1308
        %v1429 = vunpack.c.l.b16 %v1309
        %v1430 = vunpack.c.l.b16 %v1310
        %v1431 = vunpack.c.l.b16 %v1311
        %v1432 = vunpack.c.l.b16 %v1312
        %v1433 = vunpack.c.l.b16 %v1313
        %v1434 = vunpack.c.l.b16 %v1314
        %v1435 = vunpack.c.l.b16 %v1315
        %v1436 = vunpack.c.l.b16 %v1316
        %v1437 = vunpack.c.l.b16 %v1317
        %v1438 = vpack.c.b16 %v1423, %v1422
        %v1439 = vpack.c.b16 %v1425, %v1424
        %v1440 = vpack.c.b16 %v1427, %v1426
        %v1441 = vpack.c.b16 %v1429, %v1428
        %v1442 = vpack.c.b16 %v1431, %v1430
        %v1443 = vpack.c.b16 %v1433, %v1432
        %v1444 = vpack.c.b16 %v1435, %v1434
        %v1445 = vpack.c.b16 %v1437, %v1436
        %vm1446 = vcmask 261120
        %v1448 = vsel %vm1446, %v1398, 0
        %v1451 = vsel %vm1446, %v1399, 0
        %v1454 = vsel %vm1446, %v1400, 0
        %v1457 = vsel %vm1446, %v1401, 0
        %v1460 = vsel %vm1446, %v1402, 0
        %v1463 = vsel %vm1446, %v1403, 0
        %v1466 = vsel %vm1446, %v1404, 0
        %v1469 = vsel %vm1446, %v1405, 0
        %v1472 = vsel %vm1446, %v1438, 0
        %v1475 = vsel %vm1446, %v1439, 0
        %v1478 = vsel %vm1446, %v1440, 0
        %v1481 = vsel %vm1446, %v1441, 0
        %v1484 = vsel %vm1446, %v1442, 0
        %v1487 = vsel %vm1446, %v1443, 0
        %v1490 = vsel %vm1446, %v1444, 0
        %v1493 = vsel %vm1446, %v1445, 0
        %1495 = vmatpush.bf16.xpose.msra.mxu0 %v1493
        %1496 = vmatpush.bf16.xpose.msra.mxu0 %v1490
        %1497 = vmatpush.bf16.xpose.msra.mxu0 %v1487
        %1498 = vmatpush.bf16.xpose.msra.mxu0 %v1484
        %1499 = vmatpush.bf16.xpose.msra.mxu0 %v1481
        %1500 = vmatpush.bf16.xpose.msra.mxu0 %v1478
        %1501 = vmatpush.bf16.xpose.msra.mxu0 %v1475
        %1502 = vmatpush.bf16.xpose.msra.mxu0 %v1472
        %1503 = vmatmul.bf16.gmra.mxu0 %v1448
        %v1504 = vpop.f32.mrf.mxu0
        %v1505 = vadd.f32 0.0, %v1504
        %v1506 = vpop.f32.mrf.mxu0
        %v1507 = vadd.f32 0.0, %v1506
        %1508 = vmatmul.bf16.gmra.mxu0 %v1451
        %v1509 = vpop.f32.mrf.mxu0
        %v1510 = vadd.f32 0.0, %v1509
        %v1511 = vpop.f32.mrf.mxu0
        %v1512 = vadd.f32 0.0, %v1511
        %1513 = vmatmul.bf16.gmra.mxu0 %v1454
        %v1514 = vpop.f32.mrf.mxu0
        %v1515 = vadd.f32 0.0, %v1514
        %v1516 = vpop.f32.mrf.mxu0
        %v1517 = vadd.f32 0.0, %v1516
        %1518 = vmatmul.bf16.gmra.mxu0 %v1457
        %v1519 = vpop.f32.mrf.mxu0
        %v1520 = vadd.f32 0.0, %v1519
        %v1521 = vpop.f32.mrf.mxu0
        %v1522 = vadd.f32 0.0, %v1521
        %1523 = vmatmul.bf16.gmra.mxu0 %v1460
        %v1524 = vpop.f32.mrf.mxu0
        %v1525 = vadd.f32 0.0, %v1524
        %v1526 = vpop.f32.mrf.mxu0
        %v1527 = vadd.f32 0.0, %v1526
        %1528 = vmatmul.bf16.gmra.mxu0 %v1463
        %v1529 = vpop.f32.mrf.mxu0
        %v1530 = vadd.f32 0.0, %v1529
        %v1531 = vpop.f32.mrf.mxu0
        %v1532 = vadd.f32 0.0, %v1531
        %1533 = vmatmul.bf16.gmra.mxu0 %v1466
        %v1534 = vpop.f32.mrf.mxu0
        %v1535 = vadd.f32 0.0, %v1534
        %v1536 = vpop.f32.mrf.mxu0
        %v1537 = vadd.f32 0.0, %v1536
        %1538 = vmatmul.bf16.gmra.mxu0 %v1469
        %v1539 = vpop.f32.mrf.mxu0
        %v1540 = vadd.f32 0.0, %v1539
        %v1541 = vpop.f32.mrf.mxu0
        %v1542 = vadd.f32 0.0, %v1541
        %1543 = vdwg.mxu0
        %v1560 = vunpack.c.l.b16 %v1286
        %v1561 = vunpack.c.l.b16 %v1287
        %v1562 = vunpack.c.l.b16 %v1288
        %v1563 = vunpack.c.l.b16 %v1289
        %v1564 = vunpack.c.l.b16 %v1290
        %v1565 = vunpack.c.l.b16 %v1291
        %v1566 = vunpack.c.l.b16 %v1292
        %v1567 = vunpack.c.l.b16 %v1293
        %v1568 = vunpack.c.l.b16 %v1294
        %v1569 = vunpack.c.l.b16 %v1295
        %v1570 = vunpack.c.l.b16 %v1296
        %v1571 = vunpack.c.l.b16 %v1297
        %v1572 = vunpack.c.l.b16 %v1298
        %v1573 = vunpack.c.l.b16 %v1299
        %v1574 = vunpack.c.l.b16 %v1300
        %v1575 = vunpack.c.l.b16 %v1301
        %v1576 = vpack.c.b16 %v1561, %v1560
        %v1577 = vpack.c.b16 %v1563, %v1562
        %v1578 = vpack.c.b16 %v1565, %v1564
        %v1579 = vpack.c.b16 %v1567, %v1566
        %v1580 = vpack.c.b16 %v1569, %v1568
        %v1581 = vpack.c.b16 %v1571, %v1570
        %v1582 = vpack.c.b16 %v1573, %v1572
        %v1583 = vpack.c.b16 %v1575, %v1574
        %v1600 = vunpack.c.l.b16 %v1318
        %v1601 = vunpack.c.l.b16 %v1319
        %v1602 = vunpack.c.l.b16 %v1320
        %v1603 = vunpack.c.l.b16 %v1321
        %v1604 = vunpack.c.l.b16 %v1322
        %v1605 = vunpack.c.l.b16 %v1323
        %v1606 = vunpack.c.l.b16 %v1324
        %v1607 = vunpack.c.l.b16 %v1325
        %v1608 = vunpack.c.l.b16 %v1326
        %v1609 = vunpack.c.l.b16 %v1327
        %v1610 = vunpack.c.l.b16 %v1328
        %v1611 = vunpack.c.l.b16 %v1329
        %v1612 = vunpack.c.l.b16 %v1330
        %v1613 = vunpack.c.l.b16 %v1331
        %v1614 = vunpack.c.l.b16 %v1332
        %v1615 = vunpack.c.l.b16 %v1333
        %v1616 = vpack.c.b16 %v1601, %v1600
        %v1617 = vpack.c.b16 %v1603, %v1602
        %v1618 = vpack.c.b16 %v1605, %v1604
        %v1619 = vpack.c.b16 %v1607, %v1606
        %v1620 = vpack.c.b16 %v1609, %v1608
        %v1621 = vpack.c.b16 %v1611, %v1610
        %v1622 = vpack.c.b16 %v1613, %v1612
        %v1623 = vpack.c.b16 %v1615, %v1614
        %v1625 = vsel %vm1446, %v1576, 0
        %v1628 = vsel %vm1446, %v1577, 0
        %v1631 = vsel %vm1446, %v1578, 0
        %v1634 = vsel %vm1446, %v1579, 0
        %v1637 = vsel %vm1446, %v1580, 0
        %v1640 = vsel %vm1446, %v1581, 0
        %v1643 = vsel %vm1446, %v1582, 0
        %v1646 = vsel %vm1446, %v1583, 0
        %v1649 = vsel %vm1446, %v1616, 0
        %v1652 = vsel %vm1446, %v1617, 0
        %v1655 = vsel %vm1446, %v1618, 0
        %v1658 = vsel %vm1446, %v1619, 0
        %v1661 = vsel %vm1446, %v1620, 0
        %v1664 = vsel %vm1446, %v1621, 0
        %v1667 = vsel %vm1446, %v1622, 0
        %v1670 = vsel %vm1446, %v1623, 0
        %1672 = vmatpush.bf16.xpose.msra.mxu0 %v1670
        %1673 = vmatpush.bf16.xpose.msra.mxu0 %v1667
        %1674 = vmatpush.bf16.xpose.msra.mxu0 %v1664
        %1675 = vmatpush.bf16.xpose.msra.mxu0 %v1661
        %1676 = vmatpush.bf16.xpose.msra.mxu0 %v1658
        %1677 = vmatpush.bf16.xpose.msra.mxu0 %v1655
        %1678 = vmatpush.bf16.xpose.msra.mxu0 %v1652
        %1679 = vmatpush.bf16.xpose.msra.mxu0 %v1649
        %1680 = vmatmul.bf16.gmra.mxu0 %v1625
        %v1681 = vpop.f32.mrf.mxu0
        %v1682 = vadd.f32 0.0, %v1681
        %v1683 = vpop.f32.mrf.mxu0
        %v1684 = vadd.f32 0.0, %v1683
        %1685 = vmatmul.bf16.gmra.mxu0 %v1628
        %v1686 = vpop.f32.mrf.mxu0
        %v1687 = vadd.f32 0.0, %v1686
        %v1688 = vpop.f32.mrf.mxu0
        %v1689 = vadd.f32 0.0, %v1688
        %1690 = vmatmul.bf16.gmra.mxu0 %v1631
        %v1691 = vpop.f32.mrf.mxu0
        %v1692 = vadd.f32 0.0, %v1691
        %v1693 = vpop.f32.mrf.mxu0
        %v1694 = vadd.f32 0.0, %v1693
        %1695 = vmatmul.bf16.gmra.mxu0 %v1634
        %v1696 = vpop.f32.mrf.mxu0
        %v1697 = vadd.f32 0.0, %v1696
        %v1698 = vpop.f32.mrf.mxu0
        %v1699 = vadd.f32 0.0, %v1698
        %1700 = vmatmul.bf16.gmra.mxu0 %v1637
        %v1701 = vpop.f32.mrf.mxu0
        %v1702 = vadd.f32 0.0, %v1701
        %v1703 = vpop.f32.mrf.mxu0
        %v1704 = vadd.f32 0.0, %v1703
        %1705 = vmatmul.bf16.gmra.mxu0 %v1640
        %v1706 = vpop.f32.mrf.mxu0
        %v1707 = vadd.f32 0.0, %v1706
        %v1708 = vpop.f32.mrf.mxu0
        %v1709 = vadd.f32 0.0, %v1708
        %1710 = vmatmul.bf16.gmra.mxu0 %v1643
        %v1711 = vpop.f32.mrf.mxu0
        %v1712 = vadd.f32 0.0, %v1711
        %v1713 = vpop.f32.mrf.mxu0
        %v1714 = vadd.f32 0.0, %v1713
        %1715 = vmatmul.bf16.gmra.mxu0 %v1646
        %v1716 = vpop.f32.mrf.mxu0
        %v1717 = vadd.f32 0.0, %v1716
        %v1718 = vpop.f32.mrf.mxu0
        %v1719 = vadd.f32 0.0, %v1718
        %1720 = vdwg.mxu0
        %1721 = vmax.xlane.f32.xlu0 %v1505
        %v1722 = vpop.xlane.xlu0 %1721
        %1723 = vmax.xlane.f32.xlu0 %v1507
        %v1724 = vpop.xlane.xlu0 %1723
        %1725 = vmax.xlane.f32.xlu0 %v1510
        %v1726 = vpop.xlane.xlu0 %1725
        %1727 = vmax.xlane.f32.xlu0 %v1512
        %v1728 = vpop.xlane.xlu0 %1727
        %1729 = vmax.xlane.f32.xlu0 %v1515
        %v1730 = vpop.xlane.xlu0 %1729
        %1731 = vmax.xlane.f32.xlu0 %v1517
        %v1732 = vpop.xlane.xlu0 %1731
        %1733 = vmax.xlane.f32.xlu0 %v1520
        %v1734 = vpop.xlane.xlu0 %1733
        %1735 = vmax.xlane.f32.xlu0 %v1522
        %v1736 = vpop.xlane.xlu0 %1735
        %1737 = vmax.xlane.f32.xlu0 %v1525
        %v1738 = vpop.xlane.xlu0 %1737
        %1739 = vmax.xlane.f32.xlu0 %v1527
        %v1740 = vpop.xlane.xlu0 %1739
        %1741 = vmax.xlane.f32.xlu0 %v1530
        %v1742 = vpop.xlane.xlu0 %1741
        %1743 = vmax.xlane.f32.xlu0 %v1532
        %v1744 = vpop.xlane.xlu0 %1743
        %1745 = vmax.xlane.f32.xlu0 %v1535
        %v1746 = vpop.xlane.xlu0 %1745
        %1747 = vmax.xlane.f32.xlu0 %v1537
        %v1748 = vpop.xlane.xlu0 %1747
        %1749 = vmax.xlane.f32.xlu0 %v1540
        %v1750 = vpop.xlane.xlu0 %1749
        %1751 = vmax.xlane.f32.xlu0 %v1542
        %v1752 = vpop.xlane.xlu0 %1751
        %1753 = vmax.xlane.f32.xlu0 %v1682
        %v1754 = vpop.xlane.xlu0 %1753
        %1755 = vmax.xlane.f32.xlu0 %v1684
        %v1756 = vpop.xlane.xlu0 %1755
        %1757 = vmax.xlane.f32.xlu0 %v1687
        %v1758 = vpop.xlane.xlu0 %1757
        %1759 = vmax.xlane.f32.xlu0 %v1689
        %v1760 = vpop.xlane.xlu0 %1759
        %1761 = vmax.xlane.f32.xlu0 %v1692
        %v1762 = vpop.xlane.xlu0 %1761
        %1763 = vmax.xlane.f32.xlu0 %v1694
        %v1764 = vpop.xlane.xlu0 %1763
        %1765 = vmax.xlane.f32.xlu0 %v1697
        %v1766 = vpop.xlane.xlu0 %1765
        %1767 = vmax.xlane.f32.xlu0 %v1699
        %v1768 = vpop.xlane.xlu0 %1767
        %1769 = vmax.xlane.f32.xlu0 %v1702
        %v1770 = vpop.xlane.xlu0 %1769
        %1771 = vmax.xlane.f32.xlu0 %v1704
        %v1772 = vpop.xlane.xlu0 %1771
        %1773 = vmax.xlane.f32.xlu0 %v1707
        %v1774 = vpop.xlane.xlu0 %1773
        %1775 = vmax.xlane.f32.xlu0 %v1709
        %v1776 = vpop.xlane.xlu0 %1775
        %1777 = vmax.xlane.f32.xlu0 %v1712
        %v1778 = vpop.xlane.xlu0 %1777
        %1779 = vmax.xlane.f32.xlu0 %v1714
        %v1780 = vpop.xlane.xlu0 %1779
        %1781 = vmax.xlane.f32.xlu0 %v1717
        %v1782 = vpop.xlane.xlu0 %1781
        %1783 = vmax.xlane.f32.xlu0 %v1719
        %v1784 = vpop.xlane.xlu0 %1783
        %v1785 = vsub.f32 %v1505, %v1722
        %v1786 = vsub.f32 %v1507, %v1724
        %v1787 = vsub.f32 %v1510, %v1726
        %v1788 = vsub.f32 %v1512, %v1728
        %v1789 = vsub.f32 %v1515, %v1730
        %v1790 = vsub.f32 %v1517, %v1732
        %v1791 = vsub.f32 %v1520, %v1734
        %v1792 = vsub.f32 %v1522, %v1736
        %v1793 = vsub.f32 %v1525, %v1738
        %v1794 = vsub.f32 %v1527, %v1740
        %v1795 = vsub.f32 %v1530, %v1742
        %v1796 = vsub.f32 %v1532, %v1744
        %v1797 = vsub.f32 %v1535, %v1746
        %v1798 = vsub.f32 %v1537, %v1748
        %v1799 = vsub.f32 %v1540, %v1750
        %v1800 = vsub.f32 %v1542, %v1752
        %v1801 = vsub.f32 %v1682, %v1754
        %v1802 = vsub.f32 %v1684, %v1756
        %v1803 = vsub.f32 %v1687, %v1758
        %v1804 = vsub.f32 %v1689, %v1760
        %v1805 = vsub.f32 %v1692, %v1762
        %v1806 = vsub.f32 %v1694, %v1764
        %v1807 = vsub.f32 %v1697, %v1766
        %v1808 = vsub.f32 %v1699, %v1768
        %v1809 = vsub.f32 %v1702, %v1770
        %v1810 = vsub.f32 %v1704, %v1772
        %v1811 = vsub.f32 %v1707, %v1774
        %v1812 = vsub.f32 %v1709, %v1776
        %v1813 = vsub.f32 %v1712, %v1778
        %v1814 = vsub.f32 %v1714, %v1780
        %v1815 = vsub.f32 %v1717, %v1782
        %v1816 = vsub.f32 %v1719, %v1784
        %v1817 = vpack.c.bf16 %v1785, %v1785
        %v1818 = vpack.c.bf16 %v1786, %v1786
        %v1819 = vpack.c.bf16 %v1787, %v1787
        %v1820 = vpack.c.bf16 %v1788, %v1788
        %v1821 = vpack.c.bf16 %v1789, %v1789
        %v1822 = vpack.c.bf16 %v1790, %v1790
        %v1823 = vpack.c.bf16 %v1791, %v1791
        %v1824 = vpack.c.bf16 %v1792, %v1792
        %v1825 = vpack.c.bf16 %v1793, %v1793
        %v1826 = vpack.c.bf16 %v1794, %v1794
        %v1827 = vpack.c.bf16 %v1795, %v1795
        %v1828 = vpack.c.bf16 %v1796, %v1796
        %v1829 = vpack.c.bf16 %v1797, %v1797
        %v1830 = vpack.c.bf16 %v1798, %v1798
        %v1831 = vpack.c.bf16 %v1799, %v1799
        %v1832 = vpack.c.bf16 %v1800, %v1800
        %v1833 = vpack.c.bf16 %v1801, %v1801
        %v1834 = vpack.c.bf16 %v1802, %v1802
        %v1835 = vpack.c.bf16 %v1803, %v1803
        %v1836 = vpack.c.bf16 %v1804, %v1804
        %v1837 = vpack.c.bf16 %v1805, %v1805
        %v1838 = vpack.c.bf16 %v1806, %v1806
        %v1839 = vpack.c.bf16 %v1807, %v1807
        %v1840 = vpack.c.bf16 %v1808, %v1808
        %v1841 = vpack.c.bf16 %v1809, %v1809
        %v1842 = vpack.c.bf16 %v1810, %v1810
        %v1843 = vpack.c.bf16 %v1811, %v1811
        %v1844 = vpack.c.bf16 %v1812, %v1812
        %v1845 = vpack.c.bf16 %v1813, %v1813
        %v1846 = vpack.c.bf16 %v1814, %v1814
        %v1847 = vpack.c.bf16 %v1815, %v1815
        %v1848 = vpack.c.bf16 %v1816, %v1816
        %v1849 = vunpack.c.l.bf16 %v1817
        %v1850 = vunpack.c.l.bf16 %v1818
        %v1851 = vunpack.c.l.bf16 %v1819
        %v1852 = vunpack.c.l.bf16 %v1820
        %v1853 = vunpack.c.l.bf16 %v1821
        %v1854 = vunpack.c.l.bf16 %v1822
        %v1855 = vunpack.c.l.bf16 %v1823
        %v1856 = vunpack.c.l.bf16 %v1824
        %v1857 = vunpack.c.l.bf16 %v1825
        %v1858 = vunpack.c.l.bf16 %v1826
        %v1859 = vunpack.c.l.bf16 %v1827
        %v1860 = vunpack.c.l.bf16 %v1828
        %v1861 = vunpack.c.l.bf16 %v1829
        %v1862 = vunpack.c.l.bf16 %v1830
        %v1863 = vunpack.c.l.bf16 %v1831
        %v1864 = vunpack.c.l.bf16 %v1832
        %v1865 = vunpack.c.l.bf16 %v1833
        %v1866 = vunpack.c.l.bf16 %v1834
        %v1867 = vunpack.c.l.bf16 %v1835
        %v1868 = vunpack.c.l.bf16 %v1836
        %v1869 = vunpack.c.l.bf16 %v1837
        %v1870 = vunpack.c.l.bf16 %v1838
        %v1871 = vunpack.c.l.bf16 %v1839
        %v1872 = vunpack.c.l.bf16 %v1840
        %v1873 = vunpack.c.l.bf16 %v1841
        %v1874 = vunpack.c.l.bf16 %v1842
        %v1875 = vunpack.c.l.bf16 %v1843
        %v1876 = vunpack.c.l.bf16 %v1844
        %v1877 = vunpack.c.l.bf16 %v1845
        %v1878 = vunpack.c.l.bf16 %v1846
        %v1879 = vunpack.c.l.bf16 %v1847
        %v1880 = vunpack.c.l.bf16 %v1848
        %v1881 = vmul.f32 %v1849, 1.442695
        %v1882 = vpow.pop %v1881
        %v1883 = vmul.f32 %v1850, 1.442695
        %v1884 = vpow.pop %v1883
        %v1885 = vmul.f32 %v1851, 1.442695
        %v1886 = vpow.pop %v1885
        %v1887 = vmul.f32 %v1852, 1.442695
        %v1888 = vpow.pop %v1887
        %v1889 = vmul.f32 %v1853, 1.442695
        %v1890 = vpow.pop %v1889
        %v1891 = vmul.f32 %v1854, 1.442695
        %v1892 = vpow.pop %v1891
        %v1893 = vmul.f32 %v1855, 1.442695
        %v1894 = vpow.pop %v1893
        %v1895 = vmul.f32 %v1856, 1.442695
        %v1896 = vpow.pop %v1895
        %v1897 = vmul.f32 %v1857, 1.442695
        %v1898 = vpow.pop %v1897
        %v1899 = vmul.f32 %v1858, 1.442695
        %v1900 = vpow.pop %v1899
        %v1901 = vmul.f32 %v1859, 1.442695
        %v1902 = vpow.pop %v1901
        %v1903 = vmul.f32 %v1860, 1.442695
        %v1904 = vpow.pop %v1903
        %v1905 = vmul.f32 %v1861, 1.442695
        %v1906 = vpow.pop %v1905
        %v1907 = vmul.f32 %v1862, 1.442695
        %v1908 = vpow.pop %v1907
        %v1909 = vmul.f32 %v1863, 1.442695
        %v1910 = vpow.pop %v1909
        %v1911 = vmul.f32 %v1864, 1.442695
        %v1912 = vpow.pop %v1911
        %v1913 = vmul.f32 %v1865, 1.442695
        %v1914 = vpow.pop %v1913
        %v1915 = vmul.f32 %v1866, 1.442695
        %v1916 = vpow.pop %v1915
        %v1917 = vmul.f32 %v1867, 1.442695
        %v1918 = vpow.pop %v1917
        %v1919 = vmul.f32 %v1868, 1.442695
        %v1920 = vpow.pop %v1919
        %v1921 = vmul.f32 %v1869, 1.442695
        %v1922 = vpow.pop %v1921
        %v1923 = vmul.f32 %v1870, 1.442695
        %v1924 = vpow.pop %v1923
        %v1925 = vmul.f32 %v1871, 1.442695
        %v1926 = vpow.pop %v1925
        %v1927 = vmul.f32 %v1872, 1.442695
        %v1928 = vpow.pop %v1927
        %v1929 = vmul.f32 %v1873, 1.442695
        %v1930 = vpow.pop %v1929
        %v1931 = vmul.f32 %v1874, 1.442695
        %v1932 = vpow.pop %v1931
        %v1933 = vmul.f32 %v1875, 1.442695
        %v1934 = vpow.pop %v1933
        %v1935 = vmul.f32 %v1876, 1.442695
        %v1936 = vpow.pop %v1935
        %v1937 = vmul.f32 %v1877, 1.442695
        %v1938 = vpow.pop %v1937
        %v1939 = vmul.f32 %v1878, 1.442695
        %v1940 = vpow.pop %v1939
        %v1941 = vmul.f32 %v1879, 1.442695
        %v1942 = vpow.pop %v1941
        %v1943 = vmul.f32 %v1880, 1.442695
        %v1944 = vpow.pop %v1943
        %v1945 = vpack.c.bf16 %v1882, %v1882
        %v1946 = vpack.c.bf16 %v1884, %v1884
        %v1947 = vpack.c.bf16 %v1886, %v1886
        %v1948 = vpack.c.bf16 %v1888, %v1888
        %v1949 = vpack.c.bf16 %v1890, %v1890
        %v1950 = vpack.c.bf16 %v1892, %v1892
        %v1951 = vpack.c.bf16 %v1894, %v1894
        %v1952 = vpack.c.bf16 %v1896, %v1896
        %v1953 = vpack.c.bf16 %v1898, %v1898
        %v1954 = vpack.c.bf16 %v1900, %v1900
        %v1955 = vpack.c.bf16 %v1902, %v1902
        %v1956 = vpack.c.bf16 %v1904, %v1904
        %v1957 = vpack.c.bf16 %v1906, %v1906
        %v1958 = vpack.c.bf16 %v1908, %v1908
        %v1959 = vpack.c.bf16 %v1910, %v1910
        %v1960 = vpack.c.bf16 %v1912, %v1912
        %v1961 = vpack.c.bf16 %v1914, %v1914
        %v1962 = vpack.c.bf16 %v1916, %v1916
        %v1963 = vpack.c.bf16 %v1918, %v1918
        %v1964 = vpack.c.bf16 %v1920, %v1920
        %v1965 = vpack.c.bf16 %v1922, %v1922
        %v1966 = vpack.c.bf16 %v1924, %v1924
        %v1967 = vpack.c.bf16 %v1926, %v1926
        %v1968 = vpack.c.bf16 %v1928, %v1928
        %v1969 = vpack.c.bf16 %v1930, %v1930
        %v1970 = vpack.c.bf16 %v1932, %v1932
        %v1971 = vpack.c.bf16 %v1934, %v1934
        %v1972 = vpack.c.bf16 %v1936, %v1936
        %v1973 = vpack.c.bf16 %v1938, %v1938
        %v1974 = vpack.c.bf16 %v1940, %v1940
        %v1975 = vpack.c.bf16 %v1942, %v1942
        %v1976 = vpack.c.bf16 %v1944, %v1944
        %v1977 = vunpack.c.l.bf16 %v1945
        %v1978 = vunpack.c.l.bf16 %v1946
        %v1979 = vunpack.c.l.bf16 %v1947
        %v1980 = vunpack.c.l.bf16 %v1948
        %v1981 = vunpack.c.l.bf16 %v1949
        %v1982 = vunpack.c.l.bf16 %v1950
        %v1983 = vunpack.c.l.bf16 %v1951
        %v1984 = vunpack.c.l.bf16 %v1952
        %v1985 = vunpack.c.l.bf16 %v1953
        %v1986 = vunpack.c.l.bf16 %v1954
        %v1987 = vunpack.c.l.bf16 %v1955
        %v1988 = vunpack.c.l.bf16 %v1956
        %v1989 = vunpack.c.l.bf16 %v1957
        %v1990 = vunpack.c.l.bf16 %v1958
        %v1991 = vunpack.c.l.bf16 %v1959
        %v1992 = vunpack.c.l.bf16 %v1960
        %v1993 = vunpack.c.l.bf16 %v1961
        %v1994 = vunpack.c.l.bf16 %v1962
        %v1995 = vunpack.c.l.bf16 %v1963
        %v1996 = vunpack.c.l.bf16 %v1964
        %v1997 = vunpack.c.l.bf16 %v1965
        %v1998 = vunpack.c.l.bf16 %v1966
        %v1999 = vunpack.c.l.bf16 %v1967
        %v2000 = vunpack.c.l.bf16 %v1968
        %v2001 = vunpack.c.l.bf16 %v1969
        %v2002 = vunpack.c.l.bf16 %v1970
        %v2003 = vunpack.c.l.bf16 %v1971
        %v2004 = vunpack.c.l.bf16 %v1972
        %v2005 = vunpack.c.l.bf16 %v1973
        %v2006 = vunpack.c.l.bf16 %v1974
        %v2007 = vunpack.c.l.bf16 %v1975
        %v2008 = vunpack.c.l.bf16 %v1976
        %2009 = vadd.xlane.f32.xlu0 %v1977
        %v2010 = vpop.xlane.xlu0 %2009
        %2011 = vadd.xlane.f32.xlu0 %v1978
        %v2012 = vpop.xlane.xlu0 %2011
        %2013 = vadd.xlane.f32.xlu0 %v1979
        %v2014 = vpop.xlane.xlu0 %2013
        %2015 = vadd.xlane.f32.xlu0 %v1980
        %v2016 = vpop.xlane.xlu0 %2015
        %2017 = vadd.xlane.f32.xlu0 %v1981
        %v2018 = vpop.xlane.xlu0 %2017
        %2019 = vadd.xlane.f32.xlu0 %v1982
        %v2020 = vpop.xlane.xlu0 %2019
        %2021 = vadd.xlane.f32.xlu0 %v1983
        %v2022 = vpop.xlane.xlu0 %2021
        %2023 = vadd.xlane.f32.xlu0 %v1984
        %v2024 = vpop.xlane.xlu0 %2023
        %2025 = vadd.xlane.f32.xlu0 %v1985
        %v2026 = vpop.xlane.xlu0 %2025
        %2027 = vadd.xlane.f32.xlu0 %v1986
        %v2028 = vpop.xlane.xlu0 %2027
        %2029 = vadd.xlane.f32.xlu0 %v1987
        %v2030 = vpop.xlane.xlu0 %2029
        %2031 = vadd.xlane.f32.xlu0 %v1988
        %v2032 = vpop.xlane.xlu0 %2031
        %2033 = vadd.xlane.f32.xlu0 %v1989
        %v2034 = vpop.xlane.xlu0 %2033
        %2035 = vadd.xlane.f32.xlu0 %v1990
        %v2036 = vpop.xlane.xlu0 %2035
        %2037 = vadd.xlane.f32.xlu0 %v1991
        %v2038 = vpop.xlane.xlu0 %2037
        %2039 = vadd.xlane.f32.xlu0 %v1992
        %v2040 = vpop.xlane.xlu0 %2039
        %2041 = vadd.xlane.f32.xlu0 %v1993
        %v2042 = vpop.xlane.xlu0 %2041
        %2043 = vadd.xlane.f32.xlu0 %v1994
        %v2044 = vpop.xlane.xlu0 %2043
        %2045 = vadd.xlane.f32.xlu0 %v1995
        %v2046 = vpop.xlane.xlu0 %2045
        %2047 = vadd.xlane.f32.xlu0 %v1996
        %v2048 = vpop.xlane.xlu0 %2047
        %2049 = vadd.xlane.f32.xlu0 %v1997
        %v2050 = vpop.xlane.xlu0 %2049
        %2051 = vadd.xlane.f32.xlu0 %v1998
        %v2052 = vpop.xlane.xlu0 %2051
        %2053 = vadd.xlane.f32.xlu0 %v1999
        %v2054 = vpop.xlane.xlu0 %2053
        %2055 = vadd.xlane.f32.xlu0 %v2000
        %v2056 = vpop.xlane.xlu0 %2055
        %2057 = vadd.xlane.f32.xlu0 %v2001
        %v2058 = vpop.xlane.xlu0 %2057
        %2059 = vadd.xlane.f32.xlu0 %v2002
        %v2060 = vpop.xlane.xlu0 %2059
        %2061 = vadd.xlane.f32.xlu0 %v2003
        %v2062 = vpop.xlane.xlu0 %2061
        %2063 = vadd.xlane.f32.xlu0 %v2004
        %v2064 = vpop.xlane.xlu0 %2063
        %2065 = vadd.xlane.f32.xlu0 %v2005
        %v2066 = vpop.xlane.xlu0 %2065
        %2067 = vadd.xlane.f32.xlu0 %v2006
        %v2068 = vpop.xlane.xlu0 %2067
        %2069 = vadd.xlane.f32.xlu0 %v2007
        %v2070 = vpop.xlane.xlu0 %2069
        %2071 = vadd.xlane.f32.xlu0 %v2008
        %v2072 = vpop.xlane.xlu0 %2071
        %v2073 = vrcp.pop %v2010
        %v2074 = vrcp.pop %v2012
        %v2075 = vrcp.pop %v2014
        %v2076 = vrcp.pop %v2016
        %v2077 = vrcp.pop %v2018
        %v2078 = vrcp.pop %v2020
        %v2079 = vrcp.pop %v2022
        %v2080 = vrcp.pop %v2024
        %v2081 = vrcp.pop %v2026
        %v2082 = vrcp.pop %v2028
        %v2083 = vrcp.pop %v2030
        %v2084 = vrcp.pop %v2032
        %v2085 = vrcp.pop %v2034
        %v2086 = vrcp.pop %v2036
        %v2087 = vrcp.pop %v2038
        %v2088 = vrcp.pop %v2040
        %v2089 = vrcp.pop %v2042
        %v2090 = vrcp.pop %v2044
        %v2091 = vrcp.pop %v2046
        %v2092 = vrcp.pop %v2048
        %v2093 = vrcp.pop %v2050
        %v2094 = vrcp.pop %v2052
        %v2095 = vrcp.pop %v2054
        %v2096 = vrcp.pop %v2056
        %v2097 = vrcp.pop %v2058
        %v2098 = vrcp.pop %v2060
        %v2099 = vrcp.pop %v2062
        %v2100 = vrcp.pop %v2064
        %v2101 = vrcp.pop %v2066
        %v2102 = vrcp.pop %v2068
        %v2103 = vrcp.pop %v2070
        %v2104 = vrcp.pop %v2072
        %v2105 = vmul.f32 %v1977, %v2073
        %v2106 = vmul.f32 %v1978, %v2074
        %v2107 = vmul.f32 %v1979, %v2075
        %v2108 = vmul.f32 %v1980, %v2076
        %v2109 = vmul.f32 %v1981, %v2077
        %v2110 = vmul.f32 %v1982, %v2078
        %v2111 = vmul.f32 %v1983, %v2079
        %v2112 = vmul.f32 %v1984, %v2080
        %v2113 = vmul.f32 %v1985, %v2081
        %v2114 = vmul.f32 %v1986, %v2082
        %v2115 = vmul.f32 %v1987, %v2083
        %v2116 = vmul.f32 %v1988, %v2084
        %v2117 = vmul.f32 %v1989, %v2085
        %v2118 = vmul.f32 %v1990, %v2086
        %v2119 = vmul.f32 %v1991, %v2087
        %v2120 = vmul.f32 %v1992, %v2088
        %v2121 = vmul.f32 %v1993, %v2089
        %v2122 = vmul.f32 %v1994, %v2090
        %v2123 = vmul.f32 %v1995, %v2091
        %v2124 = vmul.f32 %v1996, %v2092
        %v2125 = vmul.f32 %v1997, %v2093
        %v2126 = vmul.f32 %v1998, %v2094
        %v2127 = vmul.f32 %v1999, %v2095
        %v2128 = vmul.f32 %v2000, %v2096
        %v2129 = vmul.f32 %v2001, %v2097
        %v2130 = vmul.f32 %v2002, %v2098
        %v2131 = vmul.f32 %v2003, %v2099
        %v2132 = vmul.f32 %v2004, %v2100
        %v2133 = vmul.f32 %v2005, %v2101
        %v2134 = vmul.f32 %v2006, %v2102
        %v2135 = vmul.f32 %v2007, %v2103
        %v2136 = vmul.f32 %v2008, %v2104
        %v2137 = vpack.c.bf16 %v2105, %v2105
        %v2138 = vpack.c.bf16 %v2106, %v2106
        %v2139 = vpack.c.bf16 %v2107, %v2107
        %v2140 = vpack.c.bf16 %v2108, %v2108
        %v2141 = vpack.c.bf16 %v2109, %v2109
        %v2142 = vpack.c.bf16 %v2110, %v2110
        %v2143 = vpack.c.bf16 %v2111, %v2111
        %v2144 = vpack.c.bf16 %v2112, %v2112
        %v2145 = vpack.c.bf16 %v2113, %v2113
        %v2146 = vpack.c.bf16 %v2114, %v2114
        %v2147 = vpack.c.bf16 %v2115, %v2115
        %v2148 = vpack.c.bf16 %v2116, %v2116
        %v2149 = vpack.c.bf16 %v2117, %v2117
        %v2150 = vpack.c.bf16 %v2118, %v2118
        %v2151 = vpack.c.bf16 %v2119, %v2119
        %v2152 = vpack.c.bf16 %v2120, %v2120
        %v2153 = vpack.c.bf16 %v2121, %v2121
        %v2154 = vpack.c.bf16 %v2122, %v2122
        %v2155 = vpack.c.bf16 %v2123, %v2123
        %v2156 = vpack.c.bf16 %v2124, %v2124
        %v2157 = vpack.c.bf16 %v2125, %v2125
        %v2158 = vpack.c.bf16 %v2126, %v2126
        %v2159 = vpack.c.bf16 %v2127, %v2127
        %v2160 = vpack.c.bf16 %v2128, %v2128
        %v2161 = vpack.c.bf16 %v2129, %v2129
        %v2162 = vpack.c.bf16 %v2130, %v2130
        %v2163 = vpack.c.bf16 %v2131, %v2131
        %v2164 = vpack.c.bf16 %v2132, %v2132
        %v2165 = vpack.c.bf16 %v2133, %v2133
        %v2166 = vpack.c.bf16 %v2134, %v2134
        %v2167 = vpack.c.bf16 %v2135, %v2135
        %v2168 = vpack.c.bf16 %v2136, %v2136
        %v2185 = vunpack.c.l.b16 %v2137
        %v2186 = vunpack.c.l.b16 %v2138
        %v2187 = vunpack.c.l.b16 %v2139
        %v2188 = vunpack.c.l.b16 %v2140
        %v2189 = vunpack.c.l.b16 %v2141
        %v2190 = vunpack.c.l.b16 %v2142
        %v2191 = vunpack.c.l.b16 %v2143
        %v2192 = vunpack.c.l.b16 %v2144
        %v2193 = vunpack.c.l.b16 %v2145
        %v2194 = vunpack.c.l.b16 %v2146
        %v2195 = vunpack.c.l.b16 %v2147
        %v2196 = vunpack.c.l.b16 %v2148
        %v2197 = vunpack.c.l.b16 %v2149
        %v2198 = vunpack.c.l.b16 %v2150
        %v2199 = vunpack.c.l.b16 %v2151
        %v2200 = vunpack.c.l.b16 %v2152
        %v2201 = vpack.c.b16 %v2186, %v2185
        %v2202 = vpack.c.b16 %v2188, %v2187
        %v2203 = vpack.c.b16 %v2190, %v2189
        %v2204 = vpack.c.b16 %v2192, %v2191
        %v2205 = vpack.c.b16 %v2194, %v2193
        %v2206 = vpack.c.b16 %v2196, %v2195
        %v2207 = vpack.c.b16 %v2198, %v2197
        %v2208 = vpack.c.b16 %v2200, %v2199
        %v2233 = vunpack.c.l.b16 %v1334
        %v2234 = vunpack.c.l.b16 %v1335
        %v2235 = vunpack.c.l.b16 %v1336
        %v2236 = vunpack.c.l.b16 %v1337
        %v2237 = vunpack.c.l.b16 %v1338
        %v2238 = vunpack.c.l.b16 %v1339
        %v2239 = vunpack.c.l.b16 %v1340
        %v2240 = vunpack.c.l.b16 %v1341
        %v2241 = vunpack.c.l.b16 %v1342
        %v2242 = vunpack.c.l.b16 %v1343
        %v2243 = vunpack.c.l.b16 %v1344
        %v2244 = vunpack.c.l.b16 %v1345
        %v2245 = vunpack.c.l.b16 %v1346
        %v2246 = vunpack.c.l.b16 %v1347
        %v2247 = vunpack.c.l.b16 %v1348
        %v2248 = vunpack.c.l.b16 %v1349
        %v2249 = vpack.c.b16 %v2234, %v2233
        %v2250 = vpack.c.b16 %v2236, %v2235
        %v2251 = vpack.c.b16 %v2238, %v2237
        %v2252 = vpack.c.b16 %v2240, %v2239
        %v2253 = vpack.c.b16 %v2242, %v2241
        %v2254 = vpack.c.b16 %v2244, %v2243
        %v2255 = vpack.c.b16 %v2246, %v2245
        %v2256 = vpack.c.b16 %v2248, %v2247
        %2265 = vmatpush.bf16.msra.mxu0 %v2256
        %2266 = vmatpush.bf16.msra.mxu0 %v2255
        %2267 = vmatpush.bf16.msra.mxu0 %v2254
        %2268 = vmatpush.bf16.msra.mxu0 %v2253
        %2269 = vmatpush.bf16.msra.mxu0 %v2252
        %2270 = vmatpush.bf16.msra.mxu0 %v2251
        %2271 = vmatpush.bf16.msra.mxu0 %v2250
        %2272 = vmatpush.bf16.msra.mxu0 %v2249
        %2273 = vmatmul.bf16.gmra.mxu0 %v2201
        %v2274 = vpop.f32.mrf.mxu0
        %v2275 = vadd.f32 0.0, %v2274
        %v2276 = vpop.f32.mrf.mxu0
        %v2277 = vadd.f32 0.0, %v2276
        %2278 = vmatmul.bf16.gmra.mxu0 %v2202
        %v2279 = vpop.f32.mrf.mxu0
        %v2280 = vadd.f32 0.0, %v2279
        %v2281 = vpop.f32.mrf.mxu0
        %v2282 = vadd.f32 0.0, %v2281
        %2283 = vmatmul.bf16.gmra.mxu0 %v2203
        %v2284 = vpop.f32.mrf.mxu0
        %v2285 = vadd.f32 0.0, %v2284
        %v2286 = vpop.f32.mrf.mxu0
        %v2287 = vadd.f32 0.0, %v2286
        %2288 = vmatmul.bf16.gmra.mxu0 %v2204
        %v2289 = vpop.f32.mrf.mxu0
        %v2290 = vadd.f32 0.0, %v2289
        %v2291 = vpop.f32.mrf.mxu0
        %v2292 = vadd.f32 0.0, %v2291
        %2293 = vmatmul.bf16.gmra.mxu0 %v2205
        %v2294 = vpop.f32.mrf.mxu0
        %v2295 = vadd.f32 0.0, %v2294
        %v2296 = vpop.f32.mrf.mxu0
        %v2297 = vadd.f32 0.0, %v2296
        %2298 = vmatmul.bf16.gmra.mxu0 %v2206
        %v2299 = vpop.f32.mrf.mxu0
        %v2300 = vadd.f32 0.0, %v2299
        %v2301 = vpop.f32.mrf.mxu0
        %v2302 = vadd.f32 0.0, %v2301
        %2303 = vmatmul.bf16.gmra.mxu0 %v2207
        %v2304 = vpop.f32.mrf.mxu0
        %v2305 = vadd.f32 0.0, %v2304
        %v2306 = vpop.f32.mrf.mxu0
        %v2307 = vadd.f32 0.0, %v2306
        %2308 = vmatmul.bf16.gmra.mxu0 %v2208
        %v2309 = vpop.f32.mrf.mxu0
        %v2310 = vadd.f32 0.0, %v2309
        %v2311 = vpop.f32.mrf.mxu0
        %v2312 = vadd.f32 0.0, %v2311
        %2313 = vdwg.mxu0
        %v2330 = vunpack.c.l.b16 %v2153
        %v2331 = vunpack.c.l.b16 %v2154
        %v2332 = vunpack.c.l.b16 %v2155
        %v2333 = vunpack.c.l.b16 %v2156
        %v2334 = vunpack.c.l.b16 %v2157
        %v2335 = vunpack.c.l.b16 %v2158
        %v2336 = vunpack.c.l.b16 %v2159
        %v2337 = vunpack.c.l.b16 %v2160
        %v2338 = vunpack.c.l.b16 %v2161
        %v2339 = vunpack.c.l.b16 %v2162
        %v2340 = vunpack.c.l.b16 %v2163
        %v2341 = vunpack.c.l.b16 %v2164
        %v2342 = vunpack.c.l.b16 %v2165
        %v2343 = vunpack.c.l.b16 %v2166
        %v2344 = vunpack.c.l.b16 %v2167
        %v2345 = vunpack.c.l.b16 %v2168
        %v2346 = vpack.c.b16 %v2331, %v2330
        %v2347 = vpack.c.b16 %v2333, %v2332
        %v2348 = vpack.c.b16 %v2335, %v2334
        %v2349 = vpack.c.b16 %v2337, %v2336
        %v2350 = vpack.c.b16 %v2339, %v2338
        %v2351 = vpack.c.b16 %v2341, %v2340
        %v2352 = vpack.c.b16 %v2343, %v2342
        %v2353 = vpack.c.b16 %v2345, %v2344
        %v2378 = vunpack.c.l.b16 %v1350
        %v2379 = vunpack.c.l.b16 %v1351
        %v2380 = vunpack.c.l.b16 %v1352
        %v2381 = vunpack.c.l.b16 %v1353
        %v2382 = vunpack.c.l.b16 %v1354
        %v2383 = vunpack.c.l.b16 %v1355
        %v2384 = vunpack.c.l.b16 %v1356
        %v2385 = vunpack.c.l.b16 %v1357
        %v2386 = vunpack.c.l.b16 %v1358
        %v2387 = vunpack.c.l.b16 %v1359
        %v2388 = vunpack.c.l.b16 %v1360
        %v2389 = vunpack.c.l.b16 %v1361
        %v2390 = vunpack.c.l.b16 %v1362
        %v2391 = vunpack.c.l.b16 %v1363
        %v2392 = vunpack.c.l.b16 %v1364
        %v2393 = vunpack.c.l.b16 %v1365
        %v2394 = vpack.c.b16 %v2379, %v2378
        %v2395 = vpack.c.b16 %v2381, %v2380
        %v2396 = vpack.c.b16 %v2383, %v2382
        %v2397 = vpack.c.b16 %v2385, %v2384
        %v2398 = vpack.c.b16 %v2387, %v2386
        %v2399 = vpack.c.b16 %v2389, %v2388
        %v2400 = vpack.c.b16 %v2391, %v2390
        %v2401 = vpack.c.b16 %v2393, %v2392
        %2410 = vmatpush.bf16.msra.mxu0 %v2401
        %2411 = vmatpush.bf16.msra.mxu0 %v2400
        %2412 = vmatpush.bf16.msra.mxu0 %v2399
        %2413 = vmatpush.bf16.msra.mxu0 %v2398
        %2414 = vmatpush.bf16.msra.mxu0 %v2397
        %2415 = vmatpush.bf16.msra.mxu0 %v2396
        %2416 = vmatpush.bf16.msra.mxu0 %v2395
        %2417 = vmatpush.bf16.msra.mxu0 %v2394
        %2418 = vmatmul.bf16.gmra.mxu0 %v2346
        %v2419 = vpop.f32.mrf.mxu0
        %v2420 = vadd.f32 0.0, %v2419
        %v2421 = vpop.f32.mrf.mxu0
        %v2422 = vadd.f32 0.0, %v2421
        %2423 = vmatmul.bf16.gmra.mxu0 %v2347
        %v2424 = vpop.f32.mrf.mxu0
        %v2425 = vadd.f32 0.0, %v2424
        %v2426 = vpop.f32.mrf.mxu0
        %v2427 = vadd.f32 0.0, %v2426
        %2428 = vmatmul.bf16.gmra.mxu0 %v2348
        %v2429 = vpop.f32.mrf.mxu0
        %v2430 = vadd.f32 0.0, %v2429
        %v2431 = vpop.f32.mrf.mxu0
        %v2432 = vadd.f32 0.0, %v2431
        %2433 = vmatmul.bf16.gmra.mxu0 %v2349
        %v2434 = vpop.f32.mrf.mxu0
        %v2435 = vadd.f32 0.0, %v2434
        %v2436 = vpop.f32.mrf.mxu0
        %v2437 = vadd.f32 0.0, %v2436
        %2438 = vmatmul.bf16.gmra.mxu0 %v2350
        %v2439 = vpop.f32.mrf.mxu0
        %v2440 = vadd.f32 0.0, %v2439
        %v2441 = vpop.f32.mrf.mxu0
        %v2442 = vadd.f32 0.0, %v2441
        %2443 = vmatmul.bf16.gmra.mxu0 %v2351
        %v2444 = vpop.f32.mrf.mxu0
        %v2445 = vadd.f32 0.0, %v2444
        %v2446 = vpop.f32.mrf.mxu0
        %v2447 = vadd.f32 0.0, %v2446
        %2448 = vmatmul.bf16.gmra.mxu0 %v2352
        %v2449 = vpop.f32.mrf.mxu0
        %v2450 = vadd.f32 0.0, %v2449
        %v2451 = vpop.f32.mrf.mxu0
        %v2452 = vadd.f32 0.0, %v2451
        %2453 = vmatmul.bf16.gmra.mxu0 %v2353
        %v2454 = vpop.f32.mrf.mxu0
        %v2455 = vadd.f32 0.0, %v2454
        %v2456 = vpop.f32.mrf.mxu0
        %v2457 = vadd.f32 0.0, %v2456
        %2458 = vdwg.mxu0
        %v2459 = vpack.c.bf16 %v2275, %v2275
        %v2460 = vpack.c.bf16 %v2277, %v2277
        %v2461 = vpack.c.bf16 %v2280, %v2280
        %v2462 = vpack.c.bf16 %v2282, %v2282
        %v2463 = vpack.c.bf16 %v2285, %v2285
        %v2464 = vpack.c.bf16 %v2287, %v2287
        %v2465 = vpack.c.bf16 %v2290, %v2290
        %v2466 = vpack.c.bf16 %v2292, %v2292
        %v2467 = vpack.c.bf16 %v2295, %v2295
        %v2468 = vpack.c.bf16 %v2297, %v2297
        %v2469 = vpack.c.bf16 %v2300, %v2300
        %v2470 = vpack.c.bf16 %v2302, %v2302
        %v2471 = vpack.c.bf16 %v2305, %v2305
        %v2472 = vpack.c.bf16 %v2307, %v2307
        %v2473 = vpack.c.bf16 %v2310, %v2310
        %v2474 = vpack.c.bf16 %v2312, %v2312
        %v2475 = vpack.c.bf16 %v2420, %v2420
        %v2476 = vpack.c.bf16 %v2422, %v2422
        %v2477 = vpack.c.bf16 %v2425, %v2425
        %v2478 = vpack.c.bf16 %v2427, %v2427
        %v2479 = vpack.c.bf16 %v2430, %v2430
        %v2480 = vpack.c.bf16 %v2432, %v2432
        %v2481 = vpack.c.bf16 %v2435, %v2435
        %v2482 = vpack.c.bf16 %v2437, %v2437
        %v2483 = vpack.c.bf16 %v2440, %v2440
        %v2484 = vpack.c.bf16 %v2442, %v2442
        %v2485 = vpack.c.bf16 %v2445, %v2445
        %v2486 = vpack.c.bf16 %v2447, %v2447
        %v2487 = vpack.c.bf16 %v2450, %v2450
        %v2488 = vpack.c.bf16 %v2452, %v2452
        %v2489 = vpack.c.bf16 %v2455, %v2455
        %v2490 = vpack.c.bf16 %v2457, %v2457
        %2491 = vrot.lane.b32.xlu0 %v1398, 96
        %v2492 = vpop.permute.xlu0 %2491
        %2493 = vrot.lane.b32.xlu0 %v1399, 96
        %v2494 = vpop.permute.xlu0 %2493
        %2495 = vrot.lane.b32.xlu0 %v1400, 96
        %v2496 = vpop.permute.xlu0 %2495
        %2497 = vrot.lane.b32.xlu0 %v1401, 96
        %v2498 = vpop.permute.xlu0 %2497
        %2499 = vrot.lane.b32.xlu0 %v1402, 96
        %v2500 = vpop.permute.xlu0 %2499
        %2501 = vrot.lane.b32.xlu0 %v1403, 96
        %v2502 = vpop.permute.xlu0 %2501
        %2503 = vrot.lane.b32.xlu0 %v1404, 96
        %v2504 = vpop.permute.xlu0 %2503
        %2505 = vrot.lane.b32.xlu0 %v1405, 96
        %v2506 = vpop.permute.xlu0 %2505
        %2507 = vrot.lane.b32.xlu0 %v1438, 96
        %v2508 = vpop.permute.xlu0 %2507
        %2509 = vrot.lane.b32.xlu0 %v1439, 96
        %v2510 = vpop.permute.xlu0 %2509
        %2511 = vrot.lane.b32.xlu0 %v1440, 96
        %v2512 = vpop.permute.xlu0 %2511
        %2513 = vrot.lane.b32.xlu0 %v1441, 96
        %v2514 = vpop.permute.xlu0 %2513
        %2515 = vrot.lane.b32.xlu0 %v1442, 96
        %v2516 = vpop.permute.xlu0 %2515
        %2517 = vrot.lane.b32.xlu0 %v1443, 96
        %v2518 = vpop.permute.xlu0 %2517
        %2519 = vrot.lane.b32.xlu0 %v1444, 96
        %v2520 = vpop.permute.xlu0 %2519
        %2521 = vrot.lane.b32.xlu0 %v1445, 96
        %v2522 = vpop.permute.xlu0 %2521
        %v2524 = vsel %vm1446, %v2492, 0
        %v2527 = vsel %vm1446, %v2494, 0
        %v2530 = vsel %vm1446, %v2496, 0
        %v2533 = vsel %vm1446, %v2498, 0
        %v2536 = vsel %vm1446, %v2500, 0
        %v2539 = vsel %vm1446, %v2502, 0
        %v2542 = vsel %vm1446, %v2504, 0
        %v2545 = vsel %vm1446, %v2506, 0
        %v2548 = vsel %vm1446, %v2508, 0
        %v2551 = vsel %vm1446, %v2510, 0
        %v2554 = vsel %vm1446, %v2512, 0
        %v2557 = vsel %vm1446, %v2514, 0
        %v2560 = vsel %vm1446, %v2516, 0
        %v2563 = vsel %vm1446, %v2518, 0
        %v2566 = vsel %vm1446, %v2520, 0
        %v2569 = vsel %vm1446, %v2522, 0
        %2571 = vmatpush.bf16.xpose.msra.mxu0 %v2569
        %2572 = vmatpush.bf16.xpose.msra.mxu0 %v2566
        %2573 = vmatpush.bf16.xpose.msra.mxu0 %v2563
        %2574 = vmatpush.bf16.xpose.msra.mxu0 %v2560
        %2575 = vmatpush.bf16.xpose.msra.mxu0 %v2557
        %2576 = vmatpush.bf16.xpose.msra.mxu0 %v2554
        %2577 = vmatpush.bf16.xpose.msra.mxu0 %v2551
        %2578 = vmatpush.bf16.xpose.msra.mxu0 %v2548
        %2579 = vmatmul.bf16.gmra.mxu0 %v2524
        %v2580 = vpop.f32.mrf.mxu0
        %v2581 = vadd.f32 0.0, %v2580
        %v2582 = vpop.f32.mrf.mxu0
        %v2583 = vadd.f32 0.0, %v2582
        %2584 = vmatmul.bf16.gmra.mxu0 %v2527
        %v2585 = vpop.f32.mrf.mxu0
        %v2586 = vadd.f32 0.0, %v2585
        %v2587 = vpop.f32.mrf.mxu0
        %v2588 = vadd.f32 0.0, %v2587
        %2589 = vmatmul.bf16.gmra.mxu0 %v2530
        %v2590 = vpop.f32.mrf.mxu0
        %v2591 = vadd.f32 0.0, %v2590
        %v2592 = vpop.f32.mrf.mxu0
        %v2593 = vadd.f32 0.0, %v2592
        %2594 = vmatmul.bf16.gmra.mxu0 %v2533
        %v2595 = vpop.f32.mrf.mxu0
        %v2596 = vadd.f32 0.0, %v2595
        %v2597 = vpop.f32.mrf.mxu0
        %v2598 = vadd.f32 0.0, %v2597
        %2599 = vmatmul.bf16.gmra.mxu0 %v2536
        %v2600 = vpop.f32.mrf.mxu0
        %v2601 = vadd.f32 0.0, %v2600
        %v2602 = vpop.f32.mrf.mxu0
        %v2603 = vadd.f32 0.0, %v2602
        %2604 = vmatmul.bf16.gmra.mxu0 %v2539
        %v2605 = vpop.f32.mrf.mxu0
        %v2606 = vadd.f32 0.0, %v2605
        %v2607 = vpop.f32.mrf.mxu0
        %v2608 = vadd.f32 0.0, %v2607
        %2609 = vmatmul.bf16.gmra.mxu0 %v2542
        %v2610 = vpop.f32.mrf.mxu0
        %v2611 = vadd.f32 0.0, %v2610
        %v2612 = vpop.f32.mrf.mxu0
        %v2613 = vadd.f32 0.0, %v2612
        %2614 = vmatmul.bf16.gmra.mxu0 %v2545
        %v2615 = vpop.f32.mrf.mxu0
        %v2616 = vadd.f32 0.0, %v2615
        %v2617 = vpop.f32.mrf.mxu0
        %v2618 = vadd.f32 0.0, %v2617
        %2619 = vdwg.mxu0
        %2620 = vrot.lane.b32.xlu0 %v1576, 96
        %v2621 = vpop.permute.xlu0 %2620
        %2622 = vrot.lane.b32.xlu0 %v1577, 96
        %v2623 = vpop.permute.xlu0 %2622
        %2624 = vrot.lane.b32.xlu0 %v1578, 96
        %v2625 = vpop.permute.xlu0 %2624
        %2626 = vrot.lane.b32.xlu0 %v1579, 96
        %v2627 = vpop.permute.xlu0 %2626
        %2628 = vrot.lane.b32.xlu0 %v1580, 96
        %v2629 = vpop.permute.xlu0 %2628
        %2630 = vrot.lane.b32.xlu0 %v1581, 96
        %v2631 = vpop.permute.xlu0 %2630
        %2632 = vrot.lane.b32.xlu0 %v1582, 96
        %v2633 = vpop.permute.xlu0 %2632
        %2634 = vrot.lane.b32.xlu0 %v1583, 96
        %v2635 = vpop.permute.xlu0 %2634
        %2636 = vrot.lane.b32.xlu0 %v1616, 96
        %v2637 = vpop.permute.xlu0 %2636
        %2638 = vrot.lane.b32.xlu0 %v1617, 96
        %v2639 = vpop.permute.xlu0 %2638
        %2640 = vrot.lane.b32.xlu0 %v1618, 96
        %v2641 = vpop.permute.xlu0 %2640
        %2642 = vrot.lane.b32.xlu0 %v1619, 96
        %v2643 = vpop.permute.xlu0 %2642
        %2644 = vrot.lane.b32.xlu0 %v1620, 96
        %v2645 = vpop.permute.xlu0 %2644
        %2646 = vrot.lane.b32.xlu0 %v1621, 96
        %v2647 = vpop.permute.xlu0 %2646
        %2648 = vrot.lane.b32.xlu0 %v1622, 96
        %v2649 = vpop.permute.xlu0 %2648
        %2650 = vrot.lane.b32.xlu0 %v1623, 96
        %v2651 = vpop.permute.xlu0 %2650
        %v2653 = vsel %vm1446, %v2621, 0
        %v2656 = vsel %vm1446, %v2623, 0
        %v2659 = vsel %vm1446, %v2625, 0
        %v2662 = vsel %vm1446, %v2627, 0
        %v2665 = vsel %vm1446, %v2629, 0
        %v2668 = vsel %vm1446, %v2631, 0
        %v2671 = vsel %vm1446, %v2633, 0
        %v2674 = vsel %vm1446, %v2635, 0
        %v2677 = vsel %vm1446, %v2637, 0
        %v2680 = vsel %vm1446, %v2639, 0
        %v2683 = vsel %vm1446, %v2641, 0
        %v2686 = vsel %vm1446, %v2643, 0
        %v2689 = vsel %vm1446, %v2645, 0
        %v2692 = vsel %vm1446, %v2647, 0
        %v2695 = vsel %vm1446, %v2649, 0
        %v2698 = vsel %vm1446, %v2651, 0
        %2700 = vmatpush.bf16.xpose.msra.mxu0 %v2698
        %2701 = vmatpush.bf16.xpose.msra.mxu0 %v2695
        %2702 = vmatpush.bf16.xpose.msra.mxu0 %v2692
        %2703 = vmatpush.bf16.xpose.msra.mxu0 %v2689
        %2704 = vmatpush.bf16.xpose.msra.mxu0 %v2686
        %2705 = vmatpush.bf16.xpose.msra.mxu0 %v2683
        %2706 = vmatpush.bf16.xpose.msra.mxu0 %v2680
        %2707 = vmatpush.bf16.xpose.msra.mxu0 %v2677
        %2708 = vmatmul.bf16.gmra.mxu0 %v2653
        %v2709 = vpop.f32.mrf.mxu0
        %v2710 = vadd.f32 0.0, %v2709
        %v2711 = vpop.f32.mrf.mxu0
        %v2712 = vadd.f32 0.0, %v2711
        %2713 = vmatmul.bf16.gmra.mxu0 %v2656
        %v2714 = vpop.f32.mrf.mxu0
        %v2715 = vadd.f32 0.0, %v2714
        %v2716 = vpop.f32.mrf.mxu0
        %v2717 = vadd.f32 0.0, %v2716
        %2718 = vmatmul.bf16.gmra.mxu0 %v2659
        %v2719 = vpop.f32.mrf.mxu0
        %v2720 = vadd.f32 0.0, %v2719
        %v2721 = vpop.f32.mrf.mxu0
        %v2722 = vadd.f32 0.0, %v2721
        %2723 = vmatmul.bf16.gmra.mxu0 %v2662
        %v2724 = vpop.f32.mrf.mxu0
        %v2725 = vadd.f32 0.0, %v2724
        %v2726 = vpop.f32.mrf.mxu0
        %v2727 = vadd.f32 0.0, %v2726
        %2728 = vmatmul.bf16.gmra.mxu0 %v2665
        %v2729 = vpop.f32.mrf.mxu0
        %v2730 = vadd.f32 0.0, %v2729
        %v2731 = vpop.f32.mrf.mxu0
        %v2732 = vadd.f32 0.0, %v2731
        %2733 = vmatmul.bf16.gmra.mxu0 %v2668
        %v2734 = vpop.f32.mrf.mxu0
        %v2735 = vadd.f32 0.0, %v2734
        %v2736 = vpop.f32.mrf.mxu0
        %v2737 = vadd.f32 0.0, %v2736
        %2738 = vmatmul.bf16.gmra.mxu0 %v2671
        %v2739 = vpop.f32.mrf.mxu0
        %v2740 = vadd.f32 0.0, %v2739
        %v2741 = vpop.f32.mrf.mxu0
        %v2742 = vadd.f32 0.0, %v2741
        %2743 = vmatmul.bf16.gmra.mxu0 %v2674
        %v2744 = vpop.f32.mrf.mxu0
        %v2745 = vadd.f32 0.0, %v2744
        %v2746 = vpop.f32.mrf.mxu0
        %v2747 = vadd.f32 0.0, %v2746
        %2748 = vdwg.mxu0
        %2749 = vmax.xlane.f32.xlu0 %v2581
        %v2750 = vpop.xlane.xlu0 %2749
        %2751 = vmax.xlane.f32.xlu0 %v2583
        %v2752 = vpop.xlane.xlu0 %2751
        %2753 = vmax.xlane.f32.xlu0 %v2586
        %v2754 = vpop.xlane.xlu0 %2753
        %2755 = vmax.xlane.f32.xlu0 %v2588
        %v2756 = vpop.xlane.xlu0 %2755
        %2757 = vmax.xlane.f32.xlu0 %v2591
        %v2758 = vpop.xlane.xlu0 %2757
        %2759 = vmax.xlane.f32.xlu0 %v2593
        %v2760 = vpop.xlane.xlu0 %2759
        %2761 = vmax.xlane.f32.xlu0 %v2596
        %v2762 = vpop.xlane.xlu0 %2761
        %2763 = vmax.xlane.f32.xlu0 %v2598
        %v2764 = vpop.xlane.xlu0 %2763
        %2765 = vmax.xlane.f32.xlu0 %v2601
        %v2766 = vpop.xlane.xlu0 %2765
        %2767 = vmax.xlane.f32.xlu0 %v2603
        %v2768 = vpop.xlane.xlu0 %2767
        %2769 = vmax.xlane.f32.xlu0 %v2606
        %v2770 = vpop.xlane.xlu0 %2769
        %2771 = vmax.xlane.f32.xlu0 %v2608
        %v2772 = vpop.xlane.xlu0 %2771
        %2773 = vmax.xlane.f32.xlu0 %v2611
        %v2774 = vpop.xlane.xlu0 %2773
        %2775 = vmax.xlane.f32.xlu0 %v2613
        %v2776 = vpop.xlane.xlu0 %2775
        %2777 = vmax.xlane.f32.xlu0 %v2616
        %v2778 = vpop.xlane.xlu0 %2777
        %2779 = vmax.xlane.f32.xlu0 %v2618
        %v2780 = vpop.xlane.xlu0 %2779
        %2781 = vmax.xlane.f32.xlu0 %v2710
        %v2782 = vpop.xlane.xlu0 %2781
        %2783 = vmax.xlane.f32.xlu0 %v2712
        %v2784 = vpop.xlane.xlu0 %2783
        %2785 = vmax.xlane.f32.xlu0 %v2715
        %v2786 = vpop.xlane.xlu0 %2785
        %2787 = vmax.xlane.f32.xlu0 %v2717
        %v2788 = vpop.xlane.xlu0 %2787
        %2789 = vmax.xlane.f32.xlu0 %v2720
        %v2790 = vpop.xlane.xlu0 %2789
        %2791 = vmax.xlane.f32.xlu0 %v2722
        %v2792 = vpop.xlane.xlu0 %2791
        %2793 = vmax.xlane.f32.xlu0 %v2725
        %v2794 = vpop.xlane.xlu0 %2793
        %2795 = vmax.xlane.f32.xlu0 %v2727
        %v2796 = vpop.xlane.xlu0 %2795
        %2797 = vmax.xlane.f32.xlu0 %v2730
        %v2798 = vpop.xlane.xlu0 %2797
        %2799 = vmax.xlane.f32.xlu0 %v2732
        %v2800 = vpop.xlane.xlu0 %2799
        %2801 = vmax.xlane.f32.xlu0 %v2735
        %v2802 = vpop.xlane.xlu0 %2801
        %2803 = vmax.xlane.f32.xlu0 %v2737
        %v2804 = vpop.xlane.xlu0 %2803
        %2805 = vmax.xlane.f32.xlu0 %v2740
        %v2806 = vpop.xlane.xlu0 %2805
        %2807 = vmax.xlane.f32.xlu0 %v2742
        %v2808 = vpop.xlane.xlu0 %2807
        %2809 = vmax.xlane.f32.xlu0 %v2745
        %v2810 = vpop.xlane.xlu0 %2809
        %2811 = vmax.xlane.f32.xlu0 %v2747
        %v2812 = vpop.xlane.xlu0 %2811
        %v2813 = vsub.f32 %v2581, %v2750
        %v2814 = vsub.f32 %v2583, %v2752
        %v2815 = vsub.f32 %v2586, %v2754
        %v2816 = vsub.f32 %v2588, %v2756
        %v2817 = vsub.f32 %v2591, %v2758
        %v2818 = vsub.f32 %v2593, %v2760
        %v2819 = vsub.f32 %v2596, %v2762
        %v2820 = vsub.f32 %v2598, %v2764
        %v2821 = vsub.f32 %v2601, %v2766
        %v2822 = vsub.f32 %v2603, %v2768
        %v2823 = vsub.f32 %v2606, %v2770
        %v2824 = vsub.f32 %v2608, %v2772
        %v2825 = vsub.f32 %v2611, %v2774
        %v2826 = vsub.f32 %v2613, %v2776
        %v2827 = vsub.f32 %v2616, %v2778
        %v2828 = vsub.f32 %v2618, %v2780
        %v2829 = vsub.f32 %v2710, %v2782
        %v2830 = vsub.f32 %v2712, %v2784
        %v2831 = vsub.f32 %v2715, %v2786
        %v2832 = vsub.f32 %v2717, %v2788
        %v2833 = vsub.f32 %v2720, %v2790
        %v2834 = vsub.f32 %v2722, %v2792
        %v2835 = vsub.f32 %v2725, %v2794
        %v2836 = vsub.f32 %v2727, %v2796
        %v2837 = vsub.f32 %v2730, %v2798
        %v2838 = vsub.f32 %v2732, %v2800
        %v2839 = vsub.f32 %v2735, %v2802
        %v2840 = vsub.f32 %v2737, %v2804
        %v2841 = vsub.f32 %v2740, %v2806
        %v2842 = vsub.f32 %v2742, %v2808
        %v2843 = vsub.f32 %v2745, %v2810
        %v2844 = vsub.f32 %v2747, %v2812
        %v2845 = vpack.c.bf16 %v2813, %v2813
        %v2846 = vpack.c.bf16 %v2814, %v2814
        %v2847 = vpack.c.bf16 %v2815, %v2815
        %v2848 = vpack.c.bf16 %v2816, %v2816
        %v2849 = vpack.c.bf16 %v2817, %v2817
        %v2850 = vpack.c.bf16 %v2818, %v2818
        %v2851 = vpack.c.bf16 %v2819, %v2819
        %v2852 = vpack.c.bf16 %v2820, %v2820
        %v2853 = vpack.c.bf16 %v2821, %v2821
        %v2854 = vpack.c.bf16 %v2822, %v2822
        %v2855 = vpack.c.bf16 %v2823, %v2823
        %v2856 = vpack.c.bf16 %v2824, %v2824
        %v2857 = vpack.c.bf16 %v2825, %v2825
        %v2858 = vpack.c.bf16 %v2826, %v2826
        %v2859 = vpack.c.bf16 %v2827, %v2827
        %v2860 = vpack.c.bf16 %v2828, %v2828
        %v2861 = vpack.c.bf16 %v2829, %v2829
        %v2862 = vpack.c.bf16 %v2830, %v2830
        %v2863 = vpack.c.bf16 %v2831, %v2831
        %v2864 = vpack.c.bf16 %v2832, %v2832
        %v2865 = vpack.c.bf16 %v2833, %v2833
        %v2866 = vpack.c.bf16 %v2834, %v2834
        %v2867 = vpack.c.bf16 %v2835, %v2835
        %v2868 = vpack.c.bf16 %v2836, %v2836
        %v2869 = vpack.c.bf16 %v2837, %v2837
        %v2870 = vpack.c.bf16 %v2838, %v2838
        %v2871 = vpack.c.bf16 %v2839, %v2839
        %v2872 = vpack.c.bf16 %v2840, %v2840
        %v2873 = vpack.c.bf16 %v2841, %v2841
        %v2874 = vpack.c.bf16 %v2842, %v2842
        %v2875 = vpack.c.bf16 %v2843, %v2843
        %v2876 = vpack.c.bf16 %v2844, %v2844
        %v2877 = vunpack.c.l.bf16 %v2845
        %v2878 = vunpack.c.l.bf16 %v2846
        %v2879 = vunpack.c.l.bf16 %v2847
        %v2880 = vunpack.c.l.bf16 %v2848
        %v2881 = vunpack.c.l.bf16 %v2849
        %v2882 = vunpack.c.l.bf16 %v2850
        %v2883 = vunpack.c.l.bf16 %v2851
        %v2884 = vunpack.c.l.bf16 %v2852
        %v2885 = vunpack.c.l.bf16 %v2853
        %v2886 = vunpack.c.l.bf16 %v2854
        %v2887 = vunpack.c.l.bf16 %v2855
        %v2888 = vunpack.c.l.bf16 %v2856
        %v2889 = vunpack.c.l.bf16 %v2857
        %v2890 = vunpack.c.l.bf16 %v2858
        %v2891 = vunpack.c.l.bf16 %v2859
        %v2892 = vunpack.c.l.bf16 %v2860
        %v2893 = vunpack.c.l.bf16 %v2861
        %v2894 = vunpack.c.l.bf16 %v2862
        %v2895 = vunpack.c.l.bf16 %v2863
        %v2896 = vunpack.c.l.bf16 %v2864
        %v2897 = vunpack.c.l.bf16 %v2865
        %v2898 = vunpack.c.l.bf16 %v2866
        %v2899 = vunpack.c.l.bf16 %v2867
        %v2900 = vunpack.c.l.bf16 %v2868
        %v2901 = vunpack.c.l.bf16 %v2869
        %v2902 = vunpack.c.l.bf16 %v2870
        %v2903 = vunpack.c.l.bf16 %v2871
        %v2904 = vunpack.c.l.bf16 %v2872
        %v2905 = vunpack.c.l.bf16 %v2873
        %v2906 = vunpack.c.l.bf16 %v2874
        %v2907 = vunpack.c.l.bf16 %v2875
        %v2908 = vunpack.c.l.bf16 %v2876
        %v2909 = vmul.f32 %v2877, 1.442695
        %v2910 = vpow.pop %v2909
        %v2911 = vmul.f32 %v2878, 1.442695
        %v2912 = vpow.pop %v2911
        %v2913 = vmul.f32 %v2879, 1.442695
        %v2914 = vpow.pop %v2913
        %v2915 = vmul.f32 %v2880, 1.442695
        %v2916 = vpow.pop %v2915
        %v2917 = vmul.f32 %v2881, 1.442695
        %v2918 = vpow.pop %v2917
        %v2919 = vmul.f32 %v2882, 1.442695
        %v2920 = vpow.pop %v2919
        %v2921 = vmul.f32 %v2883, 1.442695
        %v2922 = vpow.pop %v2921
        %v2923 = vmul.f32 %v2884, 1.442695
        %v2924 = vpow.pop %v2923
        %v2925 = vmul.f32 %v2885, 1.442695
        %v2926 = vpow.pop %v2925
        %v2927 = vmul.f32 %v2886, 1.442695
        %v2928 = vpow.pop %v2927
        %v2929 = vmul.f32 %v2887, 1.442695
        %v2930 = vpow.pop %v2929
        %v2931 = vmul.f32 %v2888, 1.442695
        %v2932 = vpow.pop %v2931
        %v2933 = vmul.f32 %v2889, 1.442695
        %v2934 = vpow.pop %v2933
        %v2935 = vmul.f32 %v2890, 1.442695
        %v2936 = vpow.pop %v2935
        %v2937 = vmul.f32 %v2891, 1.442695
        %v2938 = vpow.pop %v2937
        %v2939 = vmul.f32 %v2892, 1.442695
        %v2940 = vpow.pop %v2939
        %v2941 = vmul.f32 %v2893, 1.442695
        %v2942 = vpow.pop %v2941
        %v2943 = vmul.f32 %v2894, 1.442695
        %v2944 = vpow.pop %v2943
        %v2945 = vmul.f32 %v2895, 1.442695
        %v2946 = vpow.pop %v2945
        %v2947 = vmul.f32 %v2896, 1.442695
        %v2948 = vpow.pop %v2947
        %v2949 = vmul.f32 %v2897, 1.442695
        %v2950 = vpow.pop %v2949
        %v2951 = vmul.f32 %v2898, 1.442695
        %v2952 = vpow.pop %v2951
        %v2953 = vmul.f32 %v2899, 1.442695
        %v2954 = vpow.pop %v2953
        %v2955 = vmul.f32 %v2900, 1.442695
        %v2956 = vpow.pop %v2955
        %v2957 = vmul.f32 %v2901, 1.442695
        %v2958 = vpow.pop %v2957
        %v2959 = vmul.f32 %v2902, 1.442695
        %v2960 = vpow.pop %v2959
        %v2961 = vmul.f32 %v2903, 1.442695
        %v2962 = vpow.pop %v2961
        %v2963 = vmul.f32 %v2904, 1.442695
        %v2964 = vpow.pop %v2963
        %v2965 = vmul.f32 %v2905, 1.442695
        %v2966 = vpow.pop %v2965
        %v2967 = vmul.f32 %v2906, 1.442695
        %v2968 = vpow.pop %v2967
        %v2969 = vmul.f32 %v2907, 1.442695
        %v2970 = vpow.pop %v2969
        %v2971 = vmul.f32 %v2908, 1.442695
        %v2972 = vpow.pop %v2971
        %v2973 = vpack.c.bf16 %v2910, %v2910
        %v2974 = vpack.c.bf16 %v2912, %v2912
        %v2975 = vpack.c.bf16 %v2914, %v2914
        %v2976 = vpack.c.bf16 %v2916, %v2916
        %v2977 = vpack.c.bf16 %v2918, %v2918
        %v2978 = vpack.c.bf16 %v2920, %v2920
        %v2979 = vpack.c.bf16 %v2922, %v2922
        %v2980 = vpack.c.bf16 %v2924, %v2924
        %v2981 = vpack.c.bf16 %v2926, %v2926
        %v2982 = vpack.c.bf16 %v2928, %v2928
        %v2983 = vpack.c.bf16 %v2930, %v2930
        %v2984 = vpack.c.bf16 %v2932, %v2932
        %v2985 = vpack.c.bf16 %v2934, %v2934
        %v2986 = vpack.c.bf16 %v2936, %v2936
        %v2987 = vpack.c.bf16 %v2938, %v2938
        %v2988 = vpack.c.bf16 %v2940, %v2940
        %v2989 = vpack.c.bf16 %v2942, %v2942
        %v2990 = vpack.c.bf16 %v2944, %v2944
        %v2991 = vpack.c.bf16 %v2946, %v2946
        %v2992 = vpack.c.bf16 %v2948, %v2948
        %v2993 = vpack.c.bf16 %v2950, %v2950
        %v2994 = vpack.c.bf16 %v2952, %v2952
        %v2995 = vpack.c.bf16 %v2954, %v2954
        %v2996 = vpack.c.bf16 %v2956, %v2956
        %v2997 = vpack.c.bf16 %v2958, %v2958
        %v2998 = vpack.c.bf16 %v2960, %v2960
        %v2999 = vpack.c.bf16 %v2962, %v2962
        %v3000 = vpack.c.bf16 %v2964, %v2964
        %v3001 = vpack.c.bf16 %v2966, %v2966
        %v3002 = vpack.c.bf16 %v2968, %v2968
        %v3003 = vpack.c.bf16 %v2970, %v2970
        %v3004 = vpack.c.bf16 %v2972, %v2972
        %v3005 = vunpack.c.l.bf16 %v2973
        %v3006 = vunpack.c.l.bf16 %v2974
        %v3007 = vunpack.c.l.bf16 %v2975
        %v3008 = vunpack.c.l.bf16 %v2976
        %v3009 = vunpack.c.l.bf16 %v2977
        %v3010 = vunpack.c.l.bf16 %v2978
        %v3011 = vunpack.c.l.bf16 %v2979
        %v3012 = vunpack.c.l.bf16 %v2980
        %v3013 = vunpack.c.l.bf16 %v2981
        %v3014 = vunpack.c.l.bf16 %v2982
        %v3015 = vunpack.c.l.bf16 %v2983
        %v3016 = vunpack.c.l.bf16 %v2984
        %v3017 = vunpack.c.l.bf16 %v2985
        %v3018 = vunpack.c.l.bf16 %v2986
        %v3019 = vunpack.c.l.bf16 %v2987
        %v3020 = vunpack.c.l.bf16 %v2988
        %v3021 = vunpack.c.l.bf16 %v2989
        %v3022 = vunpack.c.l.bf16 %v2990
        %v3023 = vunpack.c.l.bf16 %v2991
        %v3024 = vunpack.c.l.bf16 %v2992
        %v3025 = vunpack.c.l.bf16 %v2993
        %v3026 = vunpack.c.l.bf16 %v2994
        %v3027 = vunpack.c.l.bf16 %v2995
        %v3028 = vunpack.c.l.bf16 %v2996
        %v3029 = vunpack.c.l.bf16 %v2997
        %v3030 = vunpack.c.l.bf16 %v2998
        %v3031 = vunpack.c.l.bf16 %v2999
        %v3032 = vunpack.c.l.bf16 %v3000
        %v3033 = vunpack.c.l.bf16 %v3001
        %v3034 = vunpack.c.l.bf16 %v3002
        %v3035 = vunpack.c.l.bf16 %v3003
        %v3036 = vunpack.c.l.bf16 %v3004
        %3037 = vadd.xlane.f32.xlu0 %v3005
        %v3038 = vpop.xlane.xlu0 %3037
        %3039 = vadd.xlane.f32.xlu0 %v3006
        %v3040 = vpop.xlane.xlu0 %3039
        %3041 = vadd.xlane.f32.xlu0 %v3007
        %v3042 = vpop.xlane.xlu0 %3041
        %3043 = vadd.xlane.f32.xlu0 %v3008
        %v3044 = vpop.xlane.xlu0 %3043
        %3045 = vadd.xlane.f32.xlu0 %v3009
        %v3046 = vpop.xlane.xlu0 %3045
        %3047 = vadd.xlane.f32.xlu0 %v3010
        %v3048 = vpop.xlane.xlu0 %3047
        %3049 = vadd.xlane.f32.xlu0 %v3011
        %v3050 = vpop.xlane.xlu0 %3049
        %3051 = vadd.xlane.f32.xlu0 %v3012
        %v3052 = vpop.xlane.xlu0 %3051
        %3053 = vadd.xlane.f32.xlu0 %v3013
        %v3054 = vpop.xlane.xlu0 %3053
        %3055 = vadd.xlane.f32.xlu0 %v3014
        %v3056 = vpop.xlane.xlu0 %3055
        %3057 = vadd.xlane.f32.xlu0 %v3015
        %v3058 = vpop.xlane.xlu0 %3057
        %3059 = vadd.xlane.f32.xlu0 %v3016
        %v3060 = vpop.xlane.xlu0 %3059
        %3061 = vadd.xlane.f32.xlu0 %v3017
        %v3062 = vpop.xlane.xlu0 %3061
        %3063 = vadd.xlane.f32.xlu0 %v3018
        %v3064 = vpop.xlane.xlu0 %3063
        %3065 = vadd.xlane.f32.xlu0 %v3019
        %v3066 = vpop.xlane.xlu0 %3065
        %3067 = vadd.xlane.f32.xlu0 %v3020
        %v3068 = vpop.xlane.xlu0 %3067
        %3069 = vadd.xlane.f32.xlu0 %v3021
        %v3070 = vpop.xlane.xlu0 %3069
        %3071 = vadd.xlane.f32.xlu0 %v3022
        %v3072 = vpop.xlane.xlu0 %3071
        %3073 = vadd.xlane.f32.xlu0 %v3023
        %v3074 = vpop.xlane.xlu0 %3073
        %3075 = vadd.xlane.f32.xlu0 %v3024
        %v3076 = vpop.xlane.xlu0 %3075
        %3077 = vadd.xlane.f32.xlu0 %v3025
        %v3078 = vpop.xlane.xlu0 %3077
        %3079 = vadd.xlane.f32.xlu0 %v3026
        %v3080 = vpop.xlane.xlu0 %3079
        %3081 = vadd.xlane.f32.xlu0 %v3027
        %v3082 = vpop.xlane.xlu0 %3081
        %3083 = vadd.xlane.f32.xlu0 %v3028
        %v3084 = vpop.xlane.xlu0 %3083
        %3085 = vadd.xlane.f32.xlu0 %v3029
        %v3086 = vpop.xlane.xlu0 %3085
        %3087 = vadd.xlane.f32.xlu0 %v3030
        %v3088 = vpop.xlane.xlu0 %3087
        %3089 = vadd.xlane.f32.xlu0 %v3031
        %v3090 = vpop.xlane.xlu0 %3089
        %3091 = vadd.xlane.f32.xlu0 %v3032
        %v3092 = vpop.xlane.xlu0 %3091
        %3093 = vadd.xlane.f32.xlu0 %v3033
        %v3094 = vpop.xlane.xlu0 %3093
        %3095 = vadd.xlane.f32.xlu0 %v3034
        %v3096 = vpop.xlane.xlu0 %3095
        %3097 = vadd.xlane.f32.xlu0 %v3035
        %v3098 = vpop.xlane.xlu0 %3097
        %3099 = vadd.xlane.f32.xlu0 %v3036
        %v3100 = vpop.xlane.xlu0 %3099
        %v3101 = vrcp.pop %v3038
        %v3102 = vrcp.pop %v3040
        %v3103 = vrcp.pop %v3042
        %v3104 = vrcp.pop %v3044
        %v3105 = vrcp.pop %v3046
        %v3106 = vrcp.pop %v3048
        %v3107 = vrcp.pop %v3050
        %v3108 = vrcp.pop %v3052
        %v3109 = vrcp.pop %v3054
        %v3110 = vrcp.pop %v3056
        %v3111 = vrcp.pop %v3058
        %v3112 = vrcp.pop %v3060
        %v3113 = vrcp.pop %v3062
        %v3114 = vrcp.pop %v3064
        %v3115 = vrcp.pop %v3066
        %v3116 = vrcp.pop %v3068
        %v3117 = vrcp.pop %v3070
        %v3118 = vrcp.pop %v3072
        %v3119 = vrcp.pop %v3074
        %v3120 = vrcp.pop %v3076
        %v3121 = vrcp.pop %v3078
        %v3122 = vrcp.pop %v3080
        %v3123 = vrcp.pop %v3082
        %v3124 = vrcp.pop %v3084
        %v3125 = vrcp.pop %v3086
        %v3126 = vrcp.pop %v3088
        %v3127 = vrcp.pop %v3090
        %v3128 = vrcp.pop %v3092
        %v3129 = vrcp.pop %v3094
        %v3130 = vrcp.pop %v3096
        %v3131 = vrcp.pop %v3098
        %v3132 = vrcp.pop %v3100
        %v3133 = vmul.f32 %v3005, %v3101
        %v3134 = vmul.f32 %v3006, %v3102
        %v3135 = vmul.f32 %v3007, %v3103
        %v3136 = vmul.f32 %v3008, %v3104
        %v3137 = vmul.f32 %v3009, %v3105
        %v3138 = vmul.f32 %v3010, %v3106
        %v3139 = vmul.f32 %v3011, %v3107
        %v3140 = vmul.f32 %v3012, %v3108
        %v3141 = vmul.f32 %v3013, %v3109
        %v3142 = vmul.f32 %v3014, %v3110
        %v3143 = vmul.f32 %v3015, %v3111
        %v3144 = vmul.f32 %v3016, %v3112
        %v3145 = vmul.f32 %v3017, %v3113
        %v3146 = vmul.f32 %v3018, %v3114
        %v3147 = vmul.f32 %v3019, %v3115
        %v3148 = vmul.f32 %v3020, %v3116
        %v3149 = vmul.f32 %v3021, %v3117
        %v3150 = vmul.f32 %v3022, %v3118
        %v3151 = vmul.f32 %v3023, %v3119
        %v3152 = vmul.f32 %v3024, %v3120
        %v3153 = vmul.f32 %v3025, %v3121
        %v3154 = vmul.f32 %v3026, %v3122
        %v3155 = vmul.f32 %v3027, %v3123
        %v3156 = vmul.f32 %v3028, %v3124
        %v3157 = vmul.f32 %v3029, %v3125
        %v3158 = vmul.f32 %v3030, %v3126
        %v3159 = vmul.f32 %v3031, %v3127
        %v3160 = vmul.f32 %v3032, %v3128
        %v3161 = vmul.f32 %v3033, %v3129
        %v3162 = vmul.f32 %v3034, %v3130
        %v3163 = vmul.f32 %v3035, %v3131
        %v3164 = vmul.f32 %v3036, %v3132
        %v3165 = vpack.c.bf16 %v3133, %v3133
        %v3166 = vpack.c.bf16 %v3134, %v3134
        %v3167 = vpack.c.bf16 %v3135, %v3135
        %v3168 = vpack.c.bf16 %v3136, %v3136
        %v3169 = vpack.c.bf16 %v3137, %v3137
        %v3170 = vpack.c.bf16 %v3138, %v3138
        %v3171 = vpack.c.bf16 %v3139, %v3139
        %v3172 = vpack.c.bf16 %v3140, %v3140
        %v3173 = vpack.c.bf16 %v3141, %v3141
        %v3174 = vpack.c.bf16 %v3142, %v3142
        %v3175 = vpack.c.bf16 %v3143, %v3143
        %v3176 = vpack.c.bf16 %v3144, %v3144
        %v3177 = vpack.c.bf16 %v3145, %v3145
        %v3178 = vpack.c.bf16 %v3146, %v3146
        %v3179 = vpack.c.bf16 %v3147, %v3147
        %v3180 = vpack.c.bf16 %v3148, %v3148
        %v3181 = vpack.c.bf16 %v3149, %v3149
        %v3182 = vpack.c.bf16 %v3150, %v3150
        %v3183 = vpack.c.bf16 %v3151, %v3151
        %v3184 = vpack.c.bf16 %v3152, %v3152
        %v3185 = vpack.c.bf16 %v3153, %v3153
        %v3186 = vpack.c.bf16 %v3154, %v3154
        %v3187 = vpack.c.bf16 %v3155, %v3155
        %v3188 = vpack.c.bf16 %v3156, %v3156
        %v3189 = vpack.c.bf16 %v3157, %v3157
        %v3190 = vpack.c.bf16 %v3158, %v3158
        %v3191 = vpack.c.bf16 %v3159, %v3159
        %v3192 = vpack.c.bf16 %v3160, %v3160
        %v3193 = vpack.c.bf16 %v3161, %v3161
        %v3194 = vpack.c.bf16 %v3162, %v3162
        %v3195 = vpack.c.bf16 %v3163, %v3163
        %v3196 = vpack.c.bf16 %v3164, %v3164
        %v3213 = vunpack.c.l.b16 %v3165
        %v3214 = vunpack.c.l.b16 %v3166
        %v3215 = vunpack.c.l.b16 %v3167
        %v3216 = vunpack.c.l.b16 %v3168
        %v3217 = vunpack.c.l.b16 %v3169
        %v3218 = vunpack.c.l.b16 %v3170
        %v3219 = vunpack.c.l.b16 %v3171
        %v3220 = vunpack.c.l.b16 %v3172
        %v3221 = vunpack.c.l.b16 %v3173
        %v3222 = vunpack.c.l.b16 %v3174
        %v3223 = vunpack.c.l.b16 %v3175
        %v3224 = vunpack.c.l.b16 %v3176
        %v3225 = vunpack.c.l.b16 %v3177
        %v3226 = vunpack.c.l.b16 %v3178
        %v3227 = vunpack.c.l.b16 %v3179
        %v3228 = vunpack.c.l.b16 %v3180
        %v3229 = vpack.c.b16 %v3214, %v3213
        %v3230 = vpack.c.b16 %v3216, %v3215
        %v3231 = vpack.c.b16 %v3218, %v3217
        %v3232 = vpack.c.b16 %v3220, %v3219
        %v3233 = vpack.c.b16 %v3222, %v3221
        %v3234 = vpack.c.b16 %v3224, %v3223
        %v3235 = vpack.c.b16 %v3226, %v3225
        %v3236 = vpack.c.b16 %v3228, %v3227
        %3245 = vrot.lane.b32.xlu0 %v2249, 96
        %v3246 = vpop.permute.xlu0 %3245
        %3247 = vrot.lane.b32.xlu0 %v2250, 96
        %v3248 = vpop.permute.xlu0 %3247
        %3249 = vrot.lane.b32.xlu0 %v2251, 96
        %v3250 = vpop.permute.xlu0 %3249
        %3251 = vrot.lane.b32.xlu0 %v2252, 96
        %v3252 = vpop.permute.xlu0 %3251
        %3253 = vrot.lane.b32.xlu0 %v2253, 96
        %v3254 = vpop.permute.xlu0 %3253
        %3255 = vrot.lane.b32.xlu0 %v2254, 96
        %v3256 = vpop.permute.xlu0 %3255
        %3257 = vrot.lane.b32.xlu0 %v2255, 96
        %v3258 = vpop.permute.xlu0 %3257
        %3259 = vrot.lane.b32.xlu0 %v2256, 96
        %v3260 = vpop.permute.xlu0 %3259
        %3269 = vmatpush.bf16.msra.mxu0 %v3260
        %3270 = vmatpush.bf16.msra.mxu0 %v3258
        %3271 = vmatpush.bf16.msra.mxu0 %v3256
        %3272 = vmatpush.bf16.msra.mxu0 %v3254
        %3273 = vmatpush.bf16.msra.mxu0 %v3252
        %3274 = vmatpush.bf16.msra.mxu0 %v3250
        %3275 = vmatpush.bf16.msra.mxu0 %v3248
        %3276 = vmatpush.bf16.msra.mxu0 %v3246
        %3277 = vmatmul.bf16.gmra.mxu0 %v3229
        %v3278 = vpop.f32.mrf.mxu0
        %v3279 = vadd.f32 0.0, %v3278
        %v3280 = vpop.f32.mrf.mxu0
        %v3281 = vadd.f32 0.0, %v3280
        %3282 = vmatmul.bf16.gmra.mxu0 %v3230
        %v3283 = vpop.f32.mrf.mxu0
        %v3284 = vadd.f32 0.0, %v3283
        %v3285 = vpop.f32.mrf.mxu0
        %v3286 = vadd.f32 0.0, %v3285
        %3287 = vmatmul.bf16.gmra.mxu0 %v3231
        %v3288 = vpop.f32.mrf.mxu0
        %v3289 = vadd.f32 0.0, %v3288
        %v3290 = vpop.f32.mrf.mxu0
        %v3291 = vadd.f32 0.0, %v3290
        %3292 = vmatmul.bf16.gmra.mxu0 %v3232
        %v3293 = vpop.f32.mrf.mxu0
        %v3294 = vadd.f32 0.0, %v3293
        %v3295 = vpop.f32.mrf.mxu0
        %v3296 = vadd.f32 0.0, %v3295
        %3297 = vmatmul.bf16.gmra.mxu0 %v3233
        %v3298 = vpop.f32.mrf.mxu0
        %v3299 = vadd.f32 0.0, %v3298
        %v3300 = vpop.f32.mrf.mxu0
        %v3301 = vadd.f32 0.0, %v3300
        %3302 = vmatmul.bf16.gmra.mxu0 %v3234
        %v3303 = vpop.f32.mrf.mxu0
        %v3304 = vadd.f32 0.0, %v3303
        %v3305 = vpop.f32.mrf.mxu0
        %v3306 = vadd.f32 0.0, %v3305
        %3307 = vmatmul.bf16.gmra.mxu0 %v3235
        %v3308 = vpop.f32.mrf.mxu0
        %v3309 = vadd.f32 0.0, %v3308
        %v3310 = vpop.f32.mrf.mxu0
        %v3311 = vadd.f32 0.0, %v3310
        %3312 = vmatmul.bf16.gmra.mxu0 %v3236
        %v3313 = vpop.f32.mrf.mxu0
        %v3314 = vadd.f32 0.0, %v3313
        %v3315 = vpop.f32.mrf.mxu0
        %v3316 = vadd.f32 0.0, %v3315
        %3317 = vdwg.mxu0
        %v3334 = vunpack.c.l.b16 %v3181
        %v3335 = vunpack.c.l.b16 %v3182
        %v3336 = vunpack.c.l.b16 %v3183
        %v3337 = vunpack.c.l.b16 %v3184
        %v3338 = vunpack.c.l.b16 %v3185
        %v3339 = vunpack.c.l.b16 %v3186
        %v3340 = vunpack.c.l.b16 %v3187
        %v3341 = vunpack.c.l.b16 %v3188
        %v3342 = vunpack.c.l.b16 %v3189
        %v3343 = vunpack.c.l.b16 %v3190
        %v3344 = vunpack.c.l.b16 %v3191
        %v3345 = vunpack.c.l.b16 %v3192
        %v3346 = vunpack.c.l.b16 %v3193
        %v3347 = vunpack.c.l.b16 %v3194
        %v3348 = vunpack.c.l.b16 %v3195
        %v3349 = vunpack.c.l.b16 %v3196
        %v3350 = vpack.c.b16 %v3335, %v3334
        %v3351 = vpack.c.b16 %v3337, %v3336
        %v3352 = vpack.c.b16 %v3339, %v3338
        %v3353 = vpack.c.b16 %v3341, %v3340
        %v3354 = vpack.c.b16 %v3343, %v3342
        %v3355 = vpack.c.b16 %v3345, %v3344
        %v3356 = vpack.c.b16 %v3347, %v3346
        %v3357 = vpack.c.b16 %v3349, %v3348
        %3366 = vrot.lane.b32.xlu0 %v2394, 96
        %v3367 = vpop.permute.xlu0 %3366
        %3368 = vrot.lane.b32.xlu0 %v2395, 96
        %v3369 = vpop.permute.xlu0 %3368
        %3370 = vrot.lane.b32.xlu0 %v2396, 96
        %v3371 = vpop.permute.xlu0 %3370
        %3372 = vrot.lane.b32.xlu0 %v2397, 96
        %v3373 = vpop.permute.xlu0 %3372
        %3374 = vrot.lane.b32.xlu0 %v2398, 96
        %v3375 = vpop.permute.xlu0 %3374
        %3376 = vrot.lane.b32.xlu0 %v2399, 96
        %v3377 = vpop.permute.xlu0 %3376
        %3378 = vrot.lane.b32.xlu0 %v2400, 96
        %v3379 = vpop.permute.xlu0 %3378
        %3380 = vrot.lane.b32.xlu0 %v2401, 96
        %v3381 = vpop.permute.xlu0 %3380
        %3390 = vmatpush.bf16.msra.mxu0 %v3381
        %3391 = vmatpush.bf16.msra.mxu0 %v3379
        %3392 = vmatpush.bf16.msra.mxu0 %v3377
        %3393 = vmatpush.bf16.msra.mxu0 %v3375
        %3394 = vmatpush.bf16.msra.mxu0 %v3373
        %3395 = vmatpush.bf16.msra.mxu0 %v3371
        %3396 = vmatpush.bf16.msra.mxu0 %v3369
        %3397 = vmatpush.bf16.msra.mxu0 %v3367
        %3398 = vmatmul.bf16.gmra.mxu0 %v3350
        %v3399 = vpop.f32.mrf.mxu0
        %v3400 = vadd.f32 0.0, %v3399
        %v3401 = vpop.f32.mrf.mxu0
        %v3402 = vadd.f32 0.0, %v3401
        %3403 = vmatmul.bf16.gmra.mxu0 %v3351
        %v3404 = vpop.f32.mrf.mxu0
        %v3405 = vadd.f32 0.0, %v3404
        %v3406 = vpop.f32.mrf.mxu0
        %v3407 = vadd.f32 0.0, %v3406
        %3408 = vmatmul.bf16.gmra.mxu0 %v3352
        %v3409 = vpop.f32.mrf.mxu0
        %v3410 = vadd.f32 0.0, %v3409
        %v3411 = vpop.f32.mrf.mxu0
        %v3412 = vadd.f32 0.0, %v3411
        %3413 = vmatmul.bf16.gmra.mxu0 %v3353
        %v3414 = vpop.f32.mrf.mxu0
        %v3415 = vadd.f32 0.0, %v3414
        %v3416 = vpop.f32.mrf.mxu0
        %v3417 = vadd.f32 0.0, %v3416
        %3418 = vmatmul.bf16.gmra.mxu0 %v3354
        %v3419 = vpop.f32.mrf.mxu0
        %v3420 = vadd.f32 0.0, %v3419
        %v3421 = vpop.f32.mrf.mxu0
        %v3422 = vadd.f32 0.0, %v3421
        %3423 = vmatmul.bf16.gmra.mxu0 %v3355
        %v3424 = vpop.f32.mrf.mxu0
        %v3425 = vadd.f32 0.0, %v3424
        %v3426 = vpop.f32.mrf.mxu0
        %v3427 = vadd.f32 0.0, %v3426
        %3428 = vmatmul.bf16.gmra.mxu0 %v3356
        %v3429 = vpop.f32.mrf.mxu0
        %v3430 = vadd.f32 0.0, %v3429
        %v3431 = vpop.f32.mrf.mxu0
        %v3432 = vadd.f32 0.0, %v3431
        %3433 = vmatmul.bf16.gmra.mxu0 %v3357
        %v3434 = vpop.f32.mrf.mxu0
        %v3435 = vadd.f32 0.0, %v3434
        %v3436 = vpop.f32.mrf.mxu0
        %v3437 = vadd.f32 0.0, %v3436
        %3438 = vdwg.mxu0
        %v3439 = vpack.c.bf16 %v3279, %v3279
        %v3440 = vpack.c.bf16 %v3281, %v3281
        %v3441 = vpack.c.bf16 %v3284, %v3284
        %v3442 = vpack.c.bf16 %v3286, %v3286
        %v3443 = vpack.c.bf16 %v3289, %v3289
        %v3444 = vpack.c.bf16 %v3291, %v3291
        %v3445 = vpack.c.bf16 %v3294, %v3294
        %v3446 = vpack.c.bf16 %v3296, %v3296
        %v3447 = vpack.c.bf16 %v3299, %v3299
        %v3448 = vpack.c.bf16 %v3301, %v3301
        %v3449 = vpack.c.bf16 %v3304, %v3304
        %v3450 = vpack.c.bf16 %v3306, %v3306
        %v3451 = vpack.c.bf16 %v3309, %v3309
        %v3452 = vpack.c.bf16 %v3311, %v3311
        %v3453 = vpack.c.bf16 %v3314, %v3314
        %v3454 = vpack.c.bf16 %v3316, %v3316
        %v3455 = vpack.c.bf16 %v3400, %v3400
        %v3456 = vpack.c.bf16 %v3402, %v3402
        %v3457 = vpack.c.bf16 %v3405, %v3405
        %v3458 = vpack.c.bf16 %v3407, %v3407
        %v3459 = vpack.c.bf16 %v3410, %v3410
        %v3460 = vpack.c.bf16 %v3412, %v3412
        %v3461 = vpack.c.bf16 %v3415, %v3415
        %v3462 = vpack.c.bf16 %v3417, %v3417
        %v3463 = vpack.c.bf16 %v3420, %v3420
        %v3464 = vpack.c.bf16 %v3422, %v3422
        %v3465 = vpack.c.bf16 %v3425, %v3425
        %v3466 = vpack.c.bf16 %v3427, %v3427
        %v3467 = vpack.c.bf16 %v3430, %v3430
        %v3468 = vpack.c.bf16 %v3432, %v3432
        %v3469 = vpack.c.bf16 %v3435, %v3435
        %v3470 = vpack.c.bf16 %v3437, %v3437
        %3471 = vrot.lane.b32.xlu0 %v1398, 64
        %v3472 = vpop.permute.xlu0 %3471
        %3473 = vrot.lane.b32.xlu0 %v1399, 64
        %v3474 = vpop.permute.xlu0 %3473
        %3475 = vrot.lane.b32.xlu0 %v1400, 64
        %v3476 = vpop.permute.xlu0 %3475
        %3477 = vrot.lane.b32.xlu0 %v1401, 64
        %v3478 = vpop.permute.xlu0 %3477
        %3479 = vrot.lane.b32.xlu0 %v1402, 64
        %v3480 = vpop.permute.xlu0 %3479
        %3481 = vrot.lane.b32.xlu0 %v1403, 64
        %v3482 = vpop.permute.xlu0 %3481
        %3483 = vrot.lane.b32.xlu0 %v1404, 64
        %v3484 = vpop.permute.xlu0 %3483
        %3485 = vrot.lane.b32.xlu0 %v1405, 64
        %v3486 = vpop.permute.xlu0 %3485
        %3487 = vrot.lane.b32.xlu0 %v1438, 64
        %v3488 = vpop.permute.xlu0 %3487
        %3489 = vrot.lane.b32.xlu0 %v1439, 64
        %v3490 = vpop.permute.xlu0 %3489
        %3491 = vrot.lane.b32.xlu0 %v1440, 64
        %v3492 = vpop.permute.xlu0 %3491
        %3493 = vrot.lane.b32.xlu0 %v1441, 64
        %v3494 = vpop.permute.xlu0 %3493
        %3495 = vrot.lane.b32.xlu0 %v1442, 64
        %v3496 = vpop.permute.xlu0 %3495
        %3497 = vrot.lane.b32.xlu0 %v1443, 64
        %v3498 = vpop.permute.xlu0 %3497
        %3499 = vrot.lane.b32.xlu0 %v1444, 64
        %v3500 = vpop.permute.xlu0 %3499
        %3501 = vrot.lane.b32.xlu0 %v1445, 64
        %v3502 = vpop.permute.xlu0 %3501
        %v3504 = vsel %vm1446, %v3472, 0
        %v3507 = vsel %vm1446, %v3474, 0
        %v3510 = vsel %vm1446, %v3476, 0
        %v3513 = vsel %vm1446, %v3478, 0
        %v3516 = vsel %vm1446, %v3480, 0
        %v3519 = vsel %vm1446, %v3482, 0
        %v3522 = vsel %vm1446, %v3484, 0
        %v3525 = vsel %vm1446, %v3486, 0
        %v3528 = vsel %vm1446, %v3488, 0
        %v3531 = vsel %vm1446, %v3490, 0
        %v3534 = vsel %vm1446, %v3492, 0
        %v3537 = vsel %vm1446, %v3494, 0
        %v3540 = vsel %vm1446, %v3496, 0
        %v3543 = vsel %vm1446, %v3498, 0
        %v3546 = vsel %vm1446, %v3500, 0
        %v3549 = vsel %vm1446, %v3502, 0
        %3551 = vmatpush.bf16.xpose.msra.mxu0 %v3549
        %3552 = vmatpush.bf16.xpose.msra.mxu0 %v3546
        %3553 = vmatpush.bf16.xpose.msra.mxu0 %v3543
        %3554 = vmatpush.bf16.xpose.msra.mxu0 %v3540
        %3555 = vmatpush.bf16.xpose.msra.mxu0 %v3537
        %3556 = vmatpush.bf16.xpose.msra.mxu0 %v3534
        %3557 = vmatpush.bf16.xpose.msra.mxu0 %v3531
        %3558 = vmatpush.bf16.xpose.msra.mxu0 %v3528
        %3559 = vmatmul.bf16.gmra.mxu0 %v3504
        %v3560 = vpop.f32.mrf.mxu0
        %v3561 = vadd.f32 0.0, %v3560
        %v3562 = vpop.f32.mrf.mxu0
        %v3563 = vadd.f32 0.0, %v3562
        %3564 = vmatmul.bf16.gmra.mxu0 %v3507
        %v3565 = vpop.f32.mrf.mxu0
        %v3566 = vadd.f32 0.0, %v3565
        %v3567 = vpop.f32.mrf.mxu0
        %v3568 = vadd.f32 0.0, %v3567
        %3569 = vmatmul.bf16.gmra.mxu0 %v3510
        %v3570 = vpop.f32.mrf.mxu0
        %v3571 = vadd.f32 0.0, %v3570
        %v3572 = vpop.f32.mrf.mxu0
        %v3573 = vadd.f32 0.0, %v3572
        %3574 = vmatmul.bf16.gmra.mxu0 %v3513
        %v3575 = vpop.f32.mrf.mxu0
        %v3576 = vadd.f32 0.0, %v3575
        %v3577 = vpop.f32.mrf.mxu0
        %v3578 = vadd.f32 0.0, %v3577
        %3579 = vmatmul.bf16.gmra.mxu0 %v3516
        %v3580 = vpop.f32.mrf.mxu0
        %v3581 = vadd.f32 0.0, %v3580
        %v3582 = vpop.f32.mrf.mxu0
        %v3583 = vadd.f32 0.0, %v3582
        %3584 = vmatmul.bf16.gmra.mxu0 %v3519
        %v3585 = vpop.f32.mrf.mxu0
        %v3586 = vadd.f32 0.0, %v3585
        %v3587 = vpop.f32.mrf.mxu0
        %v3588 = vadd.f32 0.0, %v3587
        %3589 = vmatmul.bf16.gmra.mxu0 %v3522
        %v3590 = vpop.f32.mrf.mxu0
        %v3591 = vadd.f32 0.0, %v3590
        %v3592 = vpop.f32.mrf.mxu0
        %v3593 = vadd.f32 0.0, %v3592
        %3594 = vmatmul.bf16.gmra.mxu0 %v3525
        %v3595 = vpop.f32.mrf.mxu0
        %v3596 = vadd.f32 0.0, %v3595
        %v3597 = vpop.f32.mrf.mxu0
        %v3598 = vadd.f32 0.0, %v3597
        %3599 = vdwg.mxu0
        %3600 = vrot.lane.b32.xlu0 %v1576, 64
        %v3601 = vpop.permute.xlu0 %3600
        %3602 = vrot.lane.b32.xlu0 %v1577, 64
        %v3603 = vpop.permute.xlu0 %3602
        %3604 = vrot.lane.b32.xlu0 %v1578, 64
        %v3605 = vpop.permute.xlu0 %3604
        %3606 = vrot.lane.b32.xlu0 %v1579, 64
        %v3607 = vpop.permute.xlu0 %3606
        %3608 = vrot.lane.b32.xlu0 %v1580, 64
        %v3609 = vpop.permute.xlu0 %3608
        %3610 = vrot.lane.b32.xlu0 %v1581, 64
        %v3611 = vpop.permute.xlu0 %3610
        %3612 = vrot.lane.b32.xlu0 %v1582, 64
        %v3613 = vpop.permute.xlu0 %3612
        %3614 = vrot.lane.b32.xlu0 %v1583, 64
        %v3615 = vpop.permute.xlu0 %3614
        %3616 = vrot.lane.b32.xlu0 %v1616, 64
        %v3617 = vpop.permute.xlu0 %3616
        %3618 = vrot.lane.b32.xlu0 %v1617, 64
        %v3619 = vpop.permute.xlu0 %3618
        %3620 = vrot.lane.b32.xlu0 %v1618, 64
        %v3621 = vpop.permute.xlu0 %3620
        %3622 = vrot.lane.b32.xlu0 %v1619, 64
        %v3623 = vpop.permute.xlu0 %3622
        %3624 = vrot.lane.b32.xlu0 %v1620, 64
        %v3625 = vpop.permute.xlu0 %3624
        %3626 = vrot.lane.b32.xlu0 %v1621, 64
        %v3627 = vpop.permute.xlu0 %3626
        %3628 = vrot.lane.b32.xlu0 %v1622, 64
        %v3629 = vpop.permute.xlu0 %3628
        %3630 = vrot.lane.b32.xlu0 %v1623, 64
        %v3631 = vpop.permute.xlu0 %3630
        %v3633 = vsel %vm1446, %v3601, 0
        %v3636 = vsel %vm1446, %v3603, 0
        %v3639 = vsel %vm1446, %v3605, 0
        %v3642 = vsel %vm1446, %v3607, 0
        %v3645 = vsel %vm1446, %v3609, 0
        %v3648 = vsel %vm1446, %v3611, 0
        %v3651 = vsel %vm1446, %v3613, 0
        %v3654 = vsel %vm1446, %v3615, 0
        %v3657 = vsel %vm1446, %v3617, 0
        %v3660 = vsel %vm1446, %v3619, 0
        %v3663 = vsel %vm1446, %v3621, 0
        %v3666 = vsel %vm1446, %v3623, 0
        %v3669 = vsel %vm1446, %v3625, 0
        %v3672 = vsel %vm1446, %v3627, 0
        %v3675 = vsel %vm1446, %v3629, 0
        %v3678 = vsel %vm1446, %v3631, 0
        %3680 = vmatpush.bf16.xpose.msra.mxu0 %v3678
        %3681 = vmatpush.bf16.xpose.msra.mxu0 %v3675
        %3682 = vmatpush.bf16.xpose.msra.mxu0 %v3672
        %3683 = vmatpush.bf16.xpose.msra.mxu0 %v3669
        %3684 = vmatpush.bf16.xpose.msra.mxu0 %v3666
        %3685 = vmatpush.bf16.xpose.msra.mxu0 %v3663
        %3686 = vmatpush.bf16.xpose.msra.mxu0 %v3660
        %3687 = vmatpush.bf16.xpose.msra.mxu0 %v3657
        %3688 = vmatmul.bf16.gmra.mxu0 %v3633
        %v3689 = vpop.f32.mrf.mxu0
        %v3690 = vadd.f32 0.0, %v3689
        %v3691 = vpop.f32.mrf.mxu0
        %v3692 = vadd.f32 0.0, %v3691
        %3693 = vmatmul.bf16.gmra.mxu0 %v3636
        %v3694 = vpop.f32.mrf.mxu0
        %v3695 = vadd.f32 0.0, %v3694
        %v3696 = vpop.f32.mrf.mxu0
        %v3697 = vadd.f32 0.0, %v3696
        %3698 = vmatmul.bf16.gmra.mxu0 %v3639
        %v3699 = vpop.f32.mrf.mxu0
        %v3700 = vadd.f32 0.0, %v3699
        %v3701 = vpop.f32.mrf.mxu0
        %v3702 = vadd.f32 0.0, %v3701
        %3703 = vmatmul.bf16.gmra.mxu0 %v3642
        %v3704 = vpop.f32.mrf.mxu0
        %v3705 = vadd.f32 0.0, %v3704
        %v3706 = vpop.f32.mrf.mxu0
        %v3707 = vadd.f32 0.0, %v3706
        %3708 = vmatmul.bf16.gmra.mxu0 %v3645
        %v3709 = vpop.f32.mrf.mxu0
        %v3710 = vadd.f32 0.0, %v3709
        %v3711 = vpop.f32.mrf.mxu0
        %v3712 = vadd.f32 0.0, %v3711
        %3713 = vmatmul.bf16.gmra.mxu0 %v3648
        %v3714 = vpop.f32.mrf.mxu0
        %v3715 = vadd.f32 0.0, %v3714
        %v3716 = vpop.f32.mrf.mxu0
        %v3717 = vadd.f32 0.0, %v3716
        %3718 = vmatmul.bf16.gmra.mxu0 %v3651
        %v3719 = vpop.f32.mrf.mxu0
        %v3720 = vadd.f32 0.0, %v3719
        %v3721 = vpop.f32.mrf.mxu0
        %v3722 = vadd.f32 0.0, %v3721
        %3723 = vmatmul.bf16.gmra.mxu0 %v3654
        %v3724 = vpop.f32.mrf.mxu0
        %v3725 = vadd.f32 0.0, %v3724
        %v3726 = vpop.f32.mrf.mxu0
        %v3727 = vadd.f32 0.0, %v3726
        %3728 = vdwg.mxu0
        %3729 = vmax.xlane.f32.xlu0 %v3561
        %v3730 = vpop.xlane.xlu0 %3729
        %3731 = vmax.xlane.f32.xlu0 %v3563
        %v3732 = vpop.xlane.xlu0 %3731
        %3733 = vmax.xlane.f32.xlu0 %v3566
        %v3734 = vpop.xlane.xlu0 %3733
        %3735 = vmax.xlane.f32.xlu0 %v3568
        %v3736 = vpop.xlane.xlu0 %3735
        %3737 = vmax.xlane.f32.xlu0 %v3571
        %v3738 = vpop.xlane.xlu0 %3737
        %3739 = vmax.xlane.f32.xlu0 %v3573
        %v3740 = vpop.xlane.xlu0 %3739
        %3741 = vmax.xlane.f32.xlu0 %v3576
        %v3742 = vpop.xlane.xlu0 %3741
        %3743 = vmax.xlane.f32.xlu0 %v3578
        %v3744 = vpop.xlane.xlu0 %3743
        %3745 = vmax.xlane.f32.xlu0 %v3581
        %v3746 = vpop.xlane.xlu0 %3745
        %3747 = vmax.xlane.f32.xlu0 %v3583
        %v3748 = vpop.xlane.xlu0 %3747
        %3749 = vmax.xlane.f32.xlu0 %v3586
        %v3750 = vpop.xlane.xlu0 %3749
        %3751 = vmax.xlane.f32.xlu0 %v3588
        %v3752 = vpop.xlane.xlu0 %3751
        %3753 = vmax.xlane.f32.xlu0 %v3591
        %v3754 = vpop.xlane.xlu0 %3753
        %3755 = vmax.xlane.f32.xlu0 %v3593
        %v3756 = vpop.xlane.xlu0 %3755
        %3757 = vmax.xlane.f32.xlu0 %v3596
        %v3758 = vpop.xlane.xlu0 %3757
        %3759 = vmax.xlane.f32.xlu0 %v3598
        %v3760 = vpop.xlane.xlu0 %3759
        %3761 = vmax.xlane.f32.xlu0 %v3690
        %v3762 = vpop.xlane.xlu0 %3761
        %3763 = vmax.xlane.f32.xlu0 %v3692
        %v3764 = vpop.xlane.xlu0 %3763
        %3765 = vmax.xlane.f32.xlu0 %v3695
        %v3766 = vpop.xlane.xlu0 %3765
        %3767 = vmax.xlane.f32.xlu0 %v3697
        %v3768 = vpop.xlane.xlu0 %3767
        %3769 = vmax.xlane.f32.xlu0 %v3700
        %v3770 = vpop.xlane.xlu0 %3769
        %3771 = vmax.xlane.f32.xlu0 %v3702
        %v3772 = vpop.xlane.xlu0 %3771
        %3773 = vmax.xlane.f32.xlu0 %v3705
        %v3774 = vpop.xlane.xlu0 %3773
        %3775 = vmax.xlane.f32.xlu0 %v3707
        %v3776 = vpop.xlane.xlu0 %3775
        %3777 = vmax.xlane.f32.xlu0 %v3710
        %v3778 = vpop.xlane.xlu0 %3777
        %3779 = vmax.xlane.f32.xlu0 %v3712
        %v3780 = vpop.xlane.xlu0 %3779
        %3781 = vmax.xlane.f32.xlu0 %v3715
        %v3782 = vpop.xlane.xlu0 %3781
        %3783 = vmax.xlane.f32.xlu0 %v3717
        %v3784 = vpop.xlane.xlu0 %3783
        %3785 = vmax.xlane.f32.xlu0 %v3720
        %v3786 = vpop.xlane.xlu0 %3785
        %3787 = vmax.xlane.f32.xlu0 %v3722
        %v3788 = vpop.xlane.xlu0 %3787
        %3789 = vmax.xlane.f32.xlu0 %v3725
        %v3790 = vpop.xlane.xlu0 %3789
        %3791 = vmax.xlane.f32.xlu0 %v3727
        %v3792 = vpop.xlane.xlu0 %3791
        %v3793 = vsub.f32 %v3561, %v3730
        %v3794 = vsub.f32 %v3563, %v3732
        %v3795 = vsub.f32 %v3566, %v3734
        %v3796 = vsub.f32 %v3568, %v3736
        %v3797 = vsub.f32 %v3571, %v3738
        %v3798 = vsub.f32 %v3573, %v3740
        %v3799 = vsub.f32 %v3576, %v3742
        %v3800 = vsub.f32 %v3578, %v3744
        %v3801 = vsub.f32 %v3581, %v3746
        %v3802 = vsub.f32 %v3583, %v3748
        %v3803 = vsub.f32 %v3586, %v3750
        %v3804 = vsub.f32 %v3588, %v3752
        %v3805 = vsub.f32 %v3591, %v3754
        %v3806 = vsub.f32 %v3593, %v3756
        %v3807 = vsub.f32 %v3596, %v3758
        %v3808 = vsub.f32 %v3598, %v3760
        %v3809 = vsub.f32 %v3690, %v3762
        %v3810 = vsub.f32 %v3692, %v3764
        %v3811 = vsub.f32 %v3695, %v3766
        %v3812 = vsub.f32 %v3697, %v3768
        %v3813 = vsub.f32 %v3700, %v3770
        %v3814 = vsub.f32 %v3702, %v3772
        %v3815 = vsub.f32 %v3705, %v3774
        %v3816 = vsub.f32 %v3707, %v3776
        %v3817 = vsub.f32 %v3710, %v3778
        %v3818 = vsub.f32 %v3712, %v3780
        %v3819 = vsub.f32 %v3715, %v3782
        %v3820 = vsub.f32 %v3717, %v3784
        %v3821 = vsub.f32 %v3720, %v3786
        %v3822 = vsub.f32 %v3722, %v3788
        %v3823 = vsub.f32 %v3725, %v3790
        %v3824 = vsub.f32 %v3727, %v3792
        %v3825 = vpack.c.bf16 %v3793, %v3793
        %v3826 = vpack.c.bf16 %v3794, %v3794
        %v3827 = vpack.c.bf16 %v3795, %v3795
        %v3828 = vpack.c.bf16 %v3796, %v3796
        %v3829 = vpack.c.bf16 %v3797, %v3797
        %v3830 = vpack.c.bf16 %v3798, %v3798
        %v3831 = vpack.c.bf16 %v3799, %v3799
        %v3832 = vpack.c.bf16 %v3800, %v3800
        %v3833 = vpack.c.bf16 %v3801, %v3801
        %v3834 = vpack.c.bf16 %v3802, %v3802
        %v3835 = vpack.c.bf16 %v3803, %v3803
        %v3836 = vpack.c.bf16 %v3804, %v3804
        %v3837 = vpack.c.bf16 %v3805, %v3805
        %v3838 = vpack.c.bf16 %v3806, %v3806
        %v3839 = vpack.c.bf16 %v3807, %v3807
        %v3840 = vpack.c.bf16 %v3808, %v3808
        %v3841 = vpack.c.bf16 %v3809, %v3809
        %v3842 = vpack.c.bf16 %v3810, %v3810
        %v3843 = vpack.c.bf16 %v3811, %v3811
        %v3844 = vpack.c.bf16 %v3812, %v3812
        %v3845 = vpack.c.bf16 %v3813, %v3813
        %v3846 = vpack.c.bf16 %v3814, %v3814
        %v3847 = vpack.c.bf16 %v3815, %v3815
        %v3848 = vpack.c.bf16 %v3816, %v3816
        %v3849 = vpack.c.bf16 %v3817, %v3817
        %v3850 = vpack.c.bf16 %v3818, %v3818
        %v3851 = vpack.c.bf16 %v3819, %v3819
        %v3852 = vpack.c.bf16 %v3820, %v3820
        %v3853 = vpack.c.bf16 %v3821, %v3821
        %v3854 = vpack.c.bf16 %v3822, %v3822
        %v3855 = vpack.c.bf16 %v3823, %v3823
        %v3856 = vpack.c.bf16 %v3824, %v3824
        %v3857 = vunpack.c.l.bf16 %v3825
        %v3858 = vunpack.c.l.bf16 %v3826
        %v3859 = vunpack.c.l.bf16 %v3827
        %v3860 = vunpack.c.l.bf16 %v3828
        %v3861 = vunpack.c.l.bf16 %v3829
        %v3862 = vunpack.c.l.bf16 %v3830
        %v3863 = vunpack.c.l.bf16 %v3831
        %v3864 = vunpack.c.l.bf16 %v3832
        %v3865 = vunpack.c.l.bf16 %v3833
        %v3866 = vunpack.c.l.bf16 %v3834
        %v3867 = vunpack.c.l.bf16 %v3835
        %v3868 = vunpack.c.l.bf16 %v3836
        %v3869 = vunpack.c.l.bf16 %v3837
        %v3870 = vunpack.c.l.bf16 %v3838
        %v3871 = vunpack.c.l.bf16 %v3839
        %v3872 = vunpack.c.l.bf16 %v3840
        %v3873 = vunpack.c.l.bf16 %v3841
        %v3874 = vunpack.c.l.bf16 %v3842
        %v3875 = vunpack.c.l.bf16 %v3843
        %v3876 = vunpack.c.l.bf16 %v3844
        %v3877 = vunpack.c.l.bf16 %v3845
        %v3878 = vunpack.c.l.bf16 %v3846
        %v3879 = vunpack.c.l.bf16 %v3847
        %v3880 = vunpack.c.l.bf16 %v3848
        %v3881 = vunpack.c.l.bf16 %v3849
        %v3882 = vunpack.c.l.bf16 %v3850
        %v3883 = vunpack.c.l.bf16 %v3851
        %v3884 = vunpack.c.l.bf16 %v3852
        %v3885 = vunpack.c.l.bf16 %v3853
        %v3886 = vunpack.c.l.bf16 %v3854
        %v3887 = vunpack.c.l.bf16 %v3855
        %v3888 = vunpack.c.l.bf16 %v3856
        %v3889 = vmul.f32 %v3857, 1.442695
        %v3890 = vpow.pop %v3889
        %v3891 = vmul.f32 %v3858, 1.442695
        %v3892 = vpow.pop %v3891
        %v3893 = vmul.f32 %v3859, 1.442695
        %v3894 = vpow.pop %v3893
        %v3895 = vmul.f32 %v3860, 1.442695
        %v3896 = vpow.pop %v3895
        %v3897 = vmul.f32 %v3861, 1.442695
        %v3898 = vpow.pop %v3897
        %v3899 = vmul.f32 %v3862, 1.442695
        %v3900 = vpow.pop %v3899
        %v3901 = vmul.f32 %v3863, 1.442695
        %v3902 = vpow.pop %v3901
        %v3903 = vmul.f32 %v3864, 1.442695
        %v3904 = vpow.pop %v3903
        %v3905 = vmul.f32 %v3865, 1.442695
        %v3906 = vpow.pop %v3905
        %v3907 = vmul.f32 %v3866, 1.442695
        %v3908 = vpow.pop %v3907
        %v3909 = vmul.f32 %v3867, 1.442695
        %v3910 = vpow.pop %v3909
        %v3911 = vmul.f32 %v3868, 1.442695
        %v3912 = vpow.pop %v3911
        %v3913 = vmul.f32 %v3869, 1.442695
        %v3914 = vpow.pop %v3913
        %v3915 = vmul.f32 %v3870, 1.442695
        %v3916 = vpow.pop %v3915
        %v3917 = vmul.f32 %v3871, 1.442695
        %v3918 = vpow.pop %v3917
        %v3919 = vmul.f32 %v3872, 1.442695
        %v3920 = vpow.pop %v3919
        %v3921 = vmul.f32 %v3873, 1.442695
        %v3922 = vpow.pop %v3921
        %v3923 = vmul.f32 %v3874, 1.442695
        %v3924 = vpow.pop %v3923
        %v3925 = vmul.f32 %v3875, 1.442695
        %v3926 = vpow.pop %v3925
        %v3927 = vmul.f32 %v3876, 1.442695
        %v3928 = vpow.pop %v3927
        %v3929 = vmul.f32 %v3877, 1.442695
        %v3930 = vpow.pop %v3929
        %v3931 = vmul.f32 %v3878, 1.442695
        %v3932 = vpow.pop %v3931
        %v3933 = vmul.f32 %v3879, 1.442695
        %v3934 = vpow.pop %v3933
        %v3935 = vmul.f32 %v3880, 1.442695
        %v3936 = vpow.pop %v3935
        %v3937 = vmul.f32 %v3881, 1.442695
        %v3938 = vpow.pop %v3937
        %v3939 = vmul.f32 %v3882, 1.442695
        %v3940 = vpow.pop %v3939
        %v3941 = vmul.f32 %v3883, 1.442695
        %v3942 = vpow.pop %v3941
        %v3943 = vmul.f32 %v3884, 1.442695
        %v3944 = vpow.pop %v3943
        %v3945 = vmul.f32 %v3885, 1.442695
        %v3946 = vpow.pop %v3945
        %v3947 = vmul.f32 %v3886, 1.442695
        %v3948 = vpow.pop %v3947
        %v3949 = vmul.f32 %v3887, 1.442695
        %v3950 = vpow.pop %v3949
        %v3951 = vmul.f32 %v3888, 1.442695
        %v3952 = vpow.pop %v3951
        %v3953 = vpack.c.bf16 %v3890, %v3890
        %v3954 = vpack.c.bf16 %v3892, %v3892
        %v3955 = vpack.c.bf16 %v3894, %v3894
        %v3956 = vpack.c.bf16 %v3896, %v3896
        %v3957 = vpack.c.bf16 %v3898, %v3898
        %v3958 = vpack.c.bf16 %v3900, %v3900
        %v3959 = vpack.c.bf16 %v3902, %v3902
        %v3960 = vpack.c.bf16 %v3904, %v3904
        %v3961 = vpack.c.bf16 %v3906, %v3906
        %v3962 = vpack.c.bf16 %v3908, %v3908
        %v3963 = vpack.c.bf16 %v3910, %v3910
        %v3964 = vpack.c.bf16 %v3912, %v3912
        %v3965 = vpack.c.bf16 %v3914, %v3914
        %v3966 = vpack.c.bf16 %v3916, %v3916
        %v3967 = vpack.c.bf16 %v3918, %v3918
        %v3968 = vpack.c.bf16 %v3920, %v3920
        %v3969 = vpack.c.bf16 %v3922, %v3922
        %v3970 = vpack.c.bf16 %v3924, %v3924
        %v3971 = vpack.c.bf16 %v3926, %v3926
        %v3972 = vpack.c.bf16 %v3928, %v3928
        %v3973 = vpack.c.bf16 %v3930, %v3930
        %v3974 = vpack.c.bf16 %v3932, %v3932
        %v3975 = vpack.c.bf16 %v3934, %v3934
        %v3976 = vpack.c.bf16 %v3936, %v3936
        %v3977 = vpack.c.bf16 %v3938, %v3938
        %v3978 = vpack.c.bf16 %v3940, %v3940
        %v3979 = vpack.c.bf16 %v3942, %v3942
        %v3980 = vpack.c.bf16 %v3944, %v3944
        %v3981 = vpack.c.bf16 %v3946, %v3946
        %v3982 = vpack.c.bf16 %v3948, %v3948
        %v3983 = vpack.c.bf16 %v3950, %v3950
        %v3984 = vpack.c.bf16 %v3952, %v3952
        %v3985 = vunpack.c.l.bf16 %v3953
        %v3986 = vunpack.c.l.bf16 %v3954
        %v3987 = vunpack.c.l.bf16 %v3955
        %v3988 = vunpack.c.l.bf16 %v3956
        %v3989 = vunpack.c.l.bf16 %v3957
        %v3990 = vunpack.c.l.bf16 %v3958
        %v3991 = vunpack.c.l.bf16 %v3959
        %v3992 = vunpack.c.l.bf16 %v3960
        %v3993 = vunpack.c.l.bf16 %v3961
        %v3994 = vunpack.c.l.bf16 %v3962
        %v3995 = vunpack.c.l.bf16 %v3963
        %v3996 = vunpack.c.l.bf16 %v3964
        %v3997 = vunpack.c.l.bf16 %v3965
        %v3998 = vunpack.c.l.bf16 %v3966
        %v3999 = vunpack.c.l.bf16 %v3967
        %v4000 = vunpack.c.l.bf16 %v3968
        %v4001 = vunpack.c.l.bf16 %v3969
        %v4002 = vunpack.c.l.bf16 %v3970
        %v4003 = vunpack.c.l.bf16 %v3971
        %v4004 = vunpack.c.l.bf16 %v3972
        %v4005 = vunpack.c.l.bf16 %v3973
        %v4006 = vunpack.c.l.bf16 %v3974
        %v4007 = vunpack.c.l.bf16 %v3975
        %v4008 = vunpack.c.l.bf16 %v3976
        %v4009 = vunpack.c.l.bf16 %v3977
        %v4010 = vunpack.c.l.bf16 %v3978
        %v4011 = vunpack.c.l.bf16 %v3979
        %v4012 = vunpack.c.l.bf16 %v3980
        %v4013 = vunpack.c.l.bf16 %v3981
        %v4014 = vunpack.c.l.bf16 %v3982
        %v4015 = vunpack.c.l.bf16 %v3983
        %v4016 = vunpack.c.l.bf16 %v3984
        %4017 = vadd.xlane.f32.xlu0 %v3985
        %v4018 = vpop.xlane.xlu0 %4017
        %4019 = vadd.xlane.f32.xlu0 %v3986
        %v4020 = vpop.xlane.xlu0 %4019
        %4021 = vadd.xlane.f32.xlu0 %v3987
        %v4022 = vpop.xlane.xlu0 %4021
        %4023 = vadd.xlane.f32.xlu0 %v3988
        %v4024 = vpop.xlane.xlu0 %4023
        %4025 = vadd.xlane.f32.xlu0 %v3989
        %v4026 = vpop.xlane.xlu0 %4025
        %4027 = vadd.xlane.f32.xlu0 %v3990
        %v4028 = vpop.xlane.xlu0 %4027
        %4029 = vadd.xlane.f32.xlu0 %v3991
        %v4030 = vpop.xlane.xlu0 %4029
        %4031 = vadd.xlane.f32.xlu0 %v3992
        %v4032 = vpop.xlane.xlu0 %4031
        %4033 = vadd.xlane.f32.xlu0 %v3993
        %v4034 = vpop.xlane.xlu0 %4033
        %4035 = vadd.xlane.f32.xlu0 %v3994
        %v4036 = vpop.xlane.xlu0 %4035
        %4037 = vadd.xlane.f32.xlu0 %v3995
        %v4038 = vpop.xlane.xlu0 %4037
        %4039 = vadd.xlane.f32.xlu0 %v3996
        %v4040 = vpop.xlane.xlu0 %4039
        %4041 = vadd.xlane.f32.xlu0 %v3997
        %v4042 = vpop.xlane.xlu0 %4041
        %4043 = vadd.xlane.f32.xlu0 %v3998
        %v4044 = vpop.xlane.xlu0 %4043
        %4045 = vadd.xlane.f32.xlu0 %v3999
        %v4046 = vpop.xlane.xlu0 %4045
        %4047 = vadd.xlane.f32.xlu0 %v4000
        %v4048 = vpop.xlane.xlu0 %4047
        %4049 = vadd.xlane.f32.xlu0 %v4001
        %v4050 = vpop.xlane.xlu0 %4049
        %4051 = vadd.xlane.f32.xlu0 %v4002
        %v4052 = vpop.xlane.xlu0 %4051
        %4053 = vadd.xlane.f32.xlu0 %v4003
        %v4054 = vpop.xlane.xlu0 %4053
        %4055 = vadd.xlane.f32.xlu0 %v4004
        %v4056 = vpop.xlane.xlu0 %4055
        %4057 = vadd.xlane.f32.xlu0 %v4005
        %v4058 = vpop.xlane.xlu0 %4057
        %4059 = vadd.xlane.f32.xlu0 %v4006
        %v4060 = vpop.xlane.xlu0 %4059
        %4061 = vadd.xlane.f32.xlu0 %v4007
        %v4062 = vpop.xlane.xlu0 %4061
        %4063 = vadd.xlane.f32.xlu0 %v4008
        %v4064 = vpop.xlane.xlu0 %4063
        %4065 = vadd.xlane.f32.xlu0 %v4009
        %v4066 = vpop.xlane.xlu0 %4065
        %4067 = vadd.xlane.f32.xlu0 %v4010
        %v4068 = vpop.xlane.xlu0 %4067
        %4069 = vadd.xlane.f32.xlu0 %v4011
        %v4070 = vpop.xlane.xlu0 %4069
        %4071 = vadd.xlane.f32.xlu0 %v4012
        %v4072 = vpop.xlane.xlu0 %4071
        %4073 = vadd.xlane.f32.xlu0 %v4013
        %v4074 = vpop.xlane.xlu0 %4073
        %4075 = vadd.xlane.f32.xlu0 %v4014
        %v4076 = vpop.xlane.xlu0 %4075
        %4077 = vadd.xlane.f32.xlu0 %v4015
        %v4078 = vpop.xlane.xlu0 %4077
        %4079 = vadd.xlane.f32.xlu0 %v4016
        %v4080 = vpop.xlane.xlu0 %4079
        %v4081 = vrcp.pop %v4018
        %v4082 = vrcp.pop %v4020
        %v4083 = vrcp.pop %v4022
        %v4084 = vrcp.pop %v4024
        %v4085 = vrcp.pop %v4026
        %v4086 = vrcp.pop %v4028
        %v4087 = vrcp.pop %v4030
        %v4088 = vrcp.pop %v4032
        %v4089 = vrcp.pop %v4034
        %v4090 = vrcp.pop %v4036
        %v4091 = vrcp.pop %v4038
        %v4092 = vrcp.pop %v4040
        %v4093 = vrcp.pop %v4042
        %v4094 = vrcp.pop %v4044
        %v4095 = vrcp.pop %v4046
        %v4096 = vrcp.pop %v4048
        %v4097 = vrcp.pop %v4050
        %v4098 = vrcp.pop %v4052
        %v4099 = vrcp.pop %v4054
        %v4100 = vrcp.pop %v4056
        %v4101 = vrcp.pop %v4058
        %v4102 = vrcp.pop %v4060
        %v4103 = vrcp.pop %v4062
        %v4104 = vrcp.pop %v4064
        %v4105 = vrcp.pop %v4066
        %v4106 = vrcp.pop %v4068
        %v4107 = vrcp.pop %v4070
        %v4108 = vrcp.pop %v4072
        %v4109 = vrcp.pop %v4074
        %v4110 = vrcp.pop %v4076
        %v4111 = vrcp.pop %v4078
        %v4112 = vrcp.pop %v4080
        %v4113 = vmul.f32 %v3985, %v4081
        %v4114 = vmul.f32 %v3986, %v4082
        %v4115 = vmul.f32 %v3987, %v4083
        %v4116 = vmul.f32 %v3988, %v4084
        %v4117 = vmul.f32 %v3989, %v4085
        %v4118 = vmul.f32 %v3990, %v4086
        %v4119 = vmul.f32 %v3991, %v4087
        %v4120 = vmul.f32 %v3992, %v4088
        %v4121 = vmul.f32 %v3993, %v4089
        %v4122 = vmul.f32 %v3994, %v4090
        %v4123 = vmul.f32 %v3995, %v4091
        %v4124 = vmul.f32 %v3996, %v4092
        %v4125 = vmul.f32 %v3997, %v4093
        %v4126 = vmul.f32 %v3998, %v4094
        %v4127 = vmul.f32 %v3999, %v4095
        %v4128 = vmul.f32 %v4000, %v4096
        %v4129 = vmul.f32 %v4001, %v4097
        %v4130 = vmul.f32 %v4002, %v4098
        %v4131 = vmul.f32 %v4003, %v4099
        %v4132 = vmul.f32 %v4004, %v4100
        %v4133 = vmul.f32 %v4005, %v4101
        %v4134 = vmul.f32 %v4006, %v4102
        %v4135 = vmul.f32 %v4007, %v4103
        %v4136 = vmul.f32 %v4008, %v4104
        %v4137 = vmul.f32 %v4009, %v4105
        %v4138 = vmul.f32 %v4010, %v4106
        %v4139 = vmul.f32 %v4011, %v4107
        %v4140 = vmul.f32 %v4012, %v4108
        %v4141 = vmul.f32 %v4013, %v4109
        %v4142 = vmul.f32 %v4014, %v4110
        %v4143 = vmul.f32 %v4015, %v4111
        %v4144 = vmul.f32 %v4016, %v4112
        %v4145 = vpack.c.bf16 %v4113, %v4113
        %v4146 = vpack.c.bf16 %v4114, %v4114
        %v4147 = vpack.c.bf16 %v4115, %v4115
        %v4148 = vpack.c.bf16 %v4116, %v4116
        %v4149 = vpack.c.bf16 %v4117, %v4117
        %v4150 = vpack.c.bf16 %v4118, %v4118
        %v4151 = vpack.c.bf16 %v4119, %v4119
        %v4152 = vpack.c.bf16 %v4120, %v4120
        %v4153 = vpack.c.bf16 %v4121, %v4121
        %v4154 = vpack.c.bf16 %v4122, %v4122
        %v4155 = vpack.c.bf16 %v4123, %v4123
        %v4156 = vpack.c.bf16 %v4124, %v4124
        %v4157 = vpack.c.bf16 %v4125, %v4125
        %v4158 = vpack.c.bf16 %v4126, %v4126
        %v4159 = vpack.c.bf16 %v4127, %v4127
        %v4160 = vpack.c.bf16 %v4128, %v4128
        %v4161 = vpack.c.bf16 %v4129, %v4129
        %v4162 = vpack.c.bf16 %v4130, %v4130
        %v4163 = vpack.c.bf16 %v4131, %v4131
        %v4164 = vpack.c.bf16 %v4132, %v4132
        %v4165 = vpack.c.bf16 %v4133, %v4133
        %v4166 = vpack.c.bf16 %v4134, %v4134
        %v4167 = vpack.c.bf16 %v4135, %v4135
        %v4168 = vpack.c.bf16 %v4136, %v4136
        %v4169 = vpack.c.bf16 %v4137, %v4137
        %v4170 = vpack.c.bf16 %v4138, %v4138
        %v4171 = vpack.c.bf16 %v4139, %v4139
        %v4172 = vpack.c.bf16 %v4140, %v4140
        %v4173 = vpack.c.bf16 %v4141, %v4141
        %v4174 = vpack.c.bf16 %v4142, %v4142
        %v4175 = vpack.c.bf16 %v4143, %v4143
        %v4176 = vpack.c.bf16 %v4144, %v4144
        %v4193 = vunpack.c.l.b16 %v4145
        %v4194 = vunpack.c.l.b16 %v4146
        %v4195 = vunpack.c.l.b16 %v4147
        %v4196 = vunpack.c.l.b16 %v4148
        %v4197 = vunpack.c.l.b16 %v4149
        %v4198 = vunpack.c.l.b16 %v4150
        %v4199 = vunpack.c.l.b16 %v4151
        %v4200 = vunpack.c.l.b16 %v4152
        %v4201 = vunpack.c.l.b16 %v4153
        %v4202 = vunpack.c.l.b16 %v4154
        %v4203 = vunpack.c.l.b16 %v4155
        %v4204 = vunpack.c.l.b16 %v4156
        %v4205 = vunpack.c.l.b16 %v4157
        %v4206 = vunpack.c.l.b16 %v4158
        %v4207 = vunpack.c.l.b16 %v4159
        %v4208 = vunpack.c.l.b16 %v4160
        %v4209 = vpack.c.b16 %v4194, %v4193
        %v4210 = vpack.c.b16 %v4196, %v4195
        %v4211 = vpack.c.b16 %v4198, %v4197
        %v4212 = vpack.c.b16 %v4200, %v4199
        %v4213 = vpack.c.b16 %v4202, %v4201
        %v4214 = vpack.c.b16 %v4204, %v4203
        %v4215 = vpack.c.b16 %v4206, %v4205
        %v4216 = vpack.c.b16 %v4208, %v4207
        %4225 = vrot.lane.b32.xlu0 %v2249, 64
        %v4226 = vpop.permute.xlu0 %4225
        %4227 = vrot.lane.b32.xlu0 %v2250, 64
        %v4228 = vpop.permute.xlu0 %4227
        %4229 = vrot.lane.b32.xlu0 %v2251, 64
        %v4230 = vpop.permute.xlu0 %4229
        %4231 = vrot.lane.b32.xlu0 %v2252, 64
        %v4232 = vpop.permute.xlu0 %4231
        %4233 = vrot.lane.b32.xlu0 %v2253, 64
        %v4234 = vpop.permute.xlu0 %4233
        %4235 = vrot.lane.b32.xlu0 %v2254, 64
        %v4236 = vpop.permute.xlu0 %4235
        %4237 = vrot.lane.b32.xlu0 %v2255, 64
        %v4238 = vpop.permute.xlu0 %4237
        %4239 = vrot.lane.b32.xlu0 %v2256, 64
        %v4240 = vpop.permute.xlu0 %4239
        %4249 = vmatpush.bf16.msra.mxu0 %v4240
        %4250 = vmatpush.bf16.msra.mxu0 %v4238
        %4251 = vmatpush.bf16.msra.mxu0 %v4236
        %4252 = vmatpush.bf16.msra.mxu0 %v4234
        %4253 = vmatpush.bf16.msra.mxu0 %v4232
        %4254 = vmatpush.bf16.msra.mxu0 %v4230
        %4255 = vmatpush.bf16.msra.mxu0 %v4228
        %4256 = vmatpush.bf16.msra.mxu0 %v4226
        %4257 = vmatmul.bf16.gmra.mxu0 %v4209
        %v4258 = vpop.f32.mrf.mxu0
        %v4259 = vadd.f32 0.0, %v4258
        %v4260 = vpop.f32.mrf.mxu0
        %v4261 = vadd.f32 0.0, %v4260
        %4262 = vmatmul.bf16.gmra.mxu0 %v4210
        %v4263 = vpop.f32.mrf.mxu0
        %v4264 = vadd.f32 0.0, %v4263
        %v4265 = vpop.f32.mrf.mxu0
        %v4266 = vadd.f32 0.0, %v4265
        %4267 = vmatmul.bf16.gmra.mxu0 %v4211
        %v4268 = vpop.f32.mrf.mxu0
        %v4269 = vadd.f32 0.0, %v4268
        %v4270 = vpop.f32.mrf.mxu0
        %v4271 = vadd.f32 0.0, %v4270
        %4272 = vmatmul.bf16.gmra.mxu0 %v4212
        %v4273 = vpop.f32.mrf.mxu0
        %v4274 = vadd.f32 0.0, %v4273
        %v4275 = vpop.f32.mrf.mxu0
        %v4276 = vadd.f32 0.0, %v4275
        %4277 = vmatmul.bf16.gmra.mxu0 %v4213
        %v4278 = vpop.f32.mrf.mxu0
        %v4279 = vadd.f32 0.0, %v4278
        %v4280 = vpop.f32.mrf.mxu0
        %v4281 = vadd.f32 0.0, %v4280
        %4282 = vmatmul.bf16.gmra.mxu0 %v4214
        %v4283 = vpop.f32.mrf.mxu0
        %v4284 = vadd.f32 0.0, %v4283
        %v4285 = vpop.f32.mrf.mxu0
        %v4286 = vadd.f32 0.0, %v4285
        %4287 = vmatmul.bf16.gmra.mxu0 %v4215
        %v4288 = vpop.f32.mrf.mxu0
        %v4289 = vadd.f32 0.0, %v4288
        %v4290 = vpop.f32.mrf.mxu0
        %v4291 = vadd.f32 0.0, %v4290
        %4292 = vmatmul.bf16.gmra.mxu0 %v4216
        %v4293 = vpop.f32.mrf.mxu0
        %v4294 = vadd.f32 0.0, %v4293
        %v4295 = vpop.f32.mrf.mxu0
        %v4296 = vadd.f32 0.0, %v4295
        %4297 = vdwg.mxu0
        %v4314 = vunpack.c.l.b16 %v4161
        %v4315 = vunpack.c.l.b16 %v4162
        %v4316 = vunpack.c.l.b16 %v4163
        %v4317 = vunpack.c.l.b16 %v4164
        %v4318 = vunpack.c.l.b16 %v4165
        %v4319 = vunpack.c.l.b16 %v4166
        %v4320 = vunpack.c.l.b16 %v4167
        %v4321 = vunpack.c.l.b16 %v4168
        %v4322 = vunpack.c.l.b16 %v4169
        %v4323 = vunpack.c.l.b16 %v4170
        %v4324 = vunpack.c.l.b16 %v4171
        %v4325 = vunpack.c.l.b16 %v4172
        %v4326 = vunpack.c.l.b16 %v4173
        %v4327 = vunpack.c.l.b16 %v4174
        %v4328 = vunpack.c.l.b16 %v4175
        %v4329 = vunpack.c.l.b16 %v4176
        %v4330 = vpack.c.b16 %v4315, %v4314
        %v4331 = vpack.c.b16 %v4317, %v4316
        %v4332 = vpack.c.b16 %v4319, %v4318
        %v4333 = vpack.c.b16 %v4321, %v4320
        %v4334 = vpack.c.b16 %v4323, %v4322
        %v4335 = vpack.c.b16 %v4325, %v4324
        %v4336 = vpack.c.b16 %v4327, %v4326
        %v4337 = vpack.c.b16 %v4329, %v4328
        %4346 = vrot.lane.b32.xlu0 %v2394, 64
        %v4347 = vpop.permute.xlu0 %4346
        %4348 = vrot.lane.b32.xlu0 %v2395, 64
        %v4349 = vpop.permute.xlu0 %4348
        %4350 = vrot.lane.b32.xlu0 %v2396, 64
        %v4351 = vpop.permute.xlu0 %4350
        %4352 = vrot.lane.b32.xlu0 %v2397, 64
        %v4353 = vpop.permute.xlu0 %4352
        %4354 = vrot.lane.b32.xlu0 %v2398, 64
        %v4355 = vpop.permute.xlu0 %4354
        %4356 = vrot.lane.b32.xlu0 %v2399, 64
        %v4357 = vpop.permute.xlu0 %4356
        %4358 = vrot.lane.b32.xlu0 %v2400, 64
        %v4359 = vpop.permute.xlu0 %4358
        %4360 = vrot.lane.b32.xlu0 %v2401, 64
        %v4361 = vpop.permute.xlu0 %4360
        %4370 = vmatpush.bf16.msra.mxu0 %v4361
        %4371 = vmatpush.bf16.msra.mxu0 %v4359
        %4372 = vmatpush.bf16.msra.mxu0 %v4357
        %4373 = vmatpush.bf16.msra.mxu0 %v4355
        %4374 = vmatpush.bf16.msra.mxu0 %v4353
        %4375 = vmatpush.bf16.msra.mxu0 %v4351
        %4376 = vmatpush.bf16.msra.mxu0 %v4349
        %4377 = vmatpush.bf16.msra.mxu0 %v4347
        %4378 = vmatmul.bf16.gmra.mxu0 %v4330
        %v4379 = vpop.f32.mrf.mxu0
        %v4380 = vadd.f32 0.0, %v4379
        %v4381 = vpop.f32.mrf.mxu0
        %v4382 = vadd.f32 0.0, %v4381
        %4383 = vmatmul.bf16.gmra.mxu0 %v4331
        %v4384 = vpop.f32.mrf.mxu0
        %v4385 = vadd.f32 0.0, %v4384
        %v4386 = vpop.f32.mrf.mxu0
        %v4387 = vadd.f32 0.0, %v4386
        %4388 = vmatmul.bf16.gmra.mxu0 %v4332
        %v4389 = vpop.f32.mrf.mxu0
        %v4390 = vadd.f32 0.0, %v4389
        %v4391 = vpop.f32.mrf.mxu0
        %v4392 = vadd.f32 0.0, %v4391
        %4393 = vmatmul.bf16.gmra.mxu0 %v4333
        %v4394 = vpop.f32.mrf.mxu0
        %v4395 = vadd.f32 0.0, %v4394
        %v4396 = vpop.f32.mrf.mxu0
        %v4397 = vadd.f32 0.0, %v4396
        %4398 = vmatmul.bf16.gmra.mxu0 %v4334
        %v4399 = vpop.f32.mrf.mxu0
        %v4400 = vadd.f32 0.0, %v4399
        %v4401 = vpop.f32.mrf.mxu0
        %v4402 = vadd.f32 0.0, %v4401
        %4403 = vmatmul.bf16.gmra.mxu0 %v4335
        %v4404 = vpop.f32.mrf.mxu0
        %v4405 = vadd.f32 0.0, %v4404
        %v4406 = vpop.f32.mrf.mxu0
        %v4407 = vadd.f32 0.0, %v4406
        %4408 = vmatmul.bf16.gmra.mxu0 %v4336
        %v4409 = vpop.f32.mrf.mxu0
        %v4410 = vadd.f32 0.0, %v4409
        %v4411 = vpop.f32.mrf.mxu0
        %v4412 = vadd.f32 0.0, %v4411
        %4413 = vmatmul.bf16.gmra.mxu0 %v4337
        %v4414 = vpop.f32.mrf.mxu0
        %v4415 = vadd.f32 0.0, %v4414
        %v4416 = vpop.f32.mrf.mxu0
        %v4417 = vadd.f32 0.0, %v4416
        %4418 = vdwg.mxu0
        %v4419 = vpack.c.bf16 %v4259, %v4259
        %v4420 = vpack.c.bf16 %v4261, %v4261
        %v4421 = vpack.c.bf16 %v4264, %v4264
        %v4422 = vpack.c.bf16 %v4266, %v4266
        %v4423 = vpack.c.bf16 %v4269, %v4269
        %v4424 = vpack.c.bf16 %v4271, %v4271
        %v4425 = vpack.c.bf16 %v4274, %v4274
        %v4426 = vpack.c.bf16 %v4276, %v4276
        %v4427 = vpack.c.bf16 %v4279, %v4279
        %v4428 = vpack.c.bf16 %v4281, %v4281
        %v4429 = vpack.c.bf16 %v4284, %v4284
        %v4430 = vpack.c.bf16 %v4286, %v4286
        %v4431 = vpack.c.bf16 %v4289, %v4289
        %v4432 = vpack.c.bf16 %v4291, %v4291
        %v4433 = vpack.c.bf16 %v4294, %v4294
        %v4434 = vpack.c.bf16 %v4296, %v4296
        %v4435 = vpack.c.bf16 %v4380, %v4380
        %v4436 = vpack.c.bf16 %v4382, %v4382
        %v4437 = vpack.c.bf16 %v4385, %v4385
        %v4438 = vpack.c.bf16 %v4387, %v4387
        %v4439 = vpack.c.bf16 %v4390, %v4390
        %v4440 = vpack.c.bf16 %v4392, %v4392
        %v4441 = vpack.c.bf16 %v4395, %v4395
        %v4442 = vpack.c.bf16 %v4397, %v4397
        %v4443 = vpack.c.bf16 %v4400, %v4400
        %v4444 = vpack.c.bf16 %v4402, %v4402
        %v4445 = vpack.c.bf16 %v4405, %v4405
        %v4446 = vpack.c.bf16 %v4407, %v4407
        %v4447 = vpack.c.bf16 %v4410, %v4410
        %v4448 = vpack.c.bf16 %v4412, %v4412
        %v4449 = vpack.c.bf16 %v4415, %v4415
        %v4450 = vpack.c.bf16 %v4417, %v4417
        %4451 = vrot.lane.b32.xlu0 %v1398, 32
        %v4452 = vpop.permute.xlu0 %4451
        %4453 = vrot.lane.b32.xlu0 %v1399, 32
        %v4454 = vpop.permute.xlu0 %4453
        %4455 = vrot.lane.b32.xlu0 %v1400, 32
        %v4456 = vpop.permute.xlu0 %4455
        %4457 = vrot.lane.b32.xlu0 %v1401, 32
        %v4458 = vpop.permute.xlu0 %4457
        %4459 = vrot.lane.b32.xlu0 %v1402, 32
        %v4460 = vpop.permute.xlu0 %4459
        %4461 = vrot.lane.b32.xlu0 %v1403, 32
        %v4462 = vpop.permute.xlu0 %4461
        %4463 = vrot.lane.b32.xlu0 %v1404, 32
        %v4464 = vpop.permute.xlu0 %4463
        %4465 = vrot.lane.b32.xlu0 %v1405, 32
        %v4466 = vpop.permute.xlu0 %4465
        %4467 = vrot.lane.b32.xlu0 %v1438, 32
        %v4468 = vpop.permute.xlu0 %4467
        %4469 = vrot.lane.b32.xlu0 %v1439, 32
        %v4470 = vpop.permute.xlu0 %4469
        %4471 = vrot.lane.b32.xlu0 %v1440, 32
        %v4472 = vpop.permute.xlu0 %4471
        %4473 = vrot.lane.b32.xlu0 %v1441, 32
        %v4474 = vpop.permute.xlu0 %4473
        %4475 = vrot.lane.b32.xlu0 %v1442, 32
        %v4476 = vpop.permute.xlu0 %4475
        %4477 = vrot.lane.b32.xlu0 %v1443, 32
        %v4478 = vpop.permute.xlu0 %4477
        %4479 = vrot.lane.b32.xlu0 %v1444, 32
        %v4480 = vpop.permute.xlu0 %4479
        %4481 = vrot.lane.b32.xlu0 %v1445, 32
        %v4482 = vpop.permute.xlu0 %4481
        %v4484 = vsel %vm1446, %v4452, 0
        %v4487 = vsel %vm1446, %v4454, 0
        %v4490 = vsel %vm1446, %v4456, 0
        %v4493 = vsel %vm1446, %v4458, 0
        %v4496 = vsel %vm1446, %v4460, 0
        %v4499 = vsel %vm1446, %v4462, 0
        %v4502 = vsel %vm1446, %v4464, 0
        %v4505 = vsel %vm1446, %v4466, 0
        %v4508 = vsel %vm1446, %v4468, 0
        %v4511 = vsel %vm1446, %v4470, 0
        %v4514 = vsel %vm1446, %v4472, 0
        %v4517 = vsel %vm1446, %v4474, 0
        %v4520 = vsel %vm1446, %v4476, 0
        %v4523 = vsel %vm1446, %v4478, 0
        %v4526 = vsel %vm1446, %v4480, 0
        %v4529 = vsel %vm1446, %v4482, 0
        %4531 = vmatpush.bf16.xpose.msra.mxu0 %v4529
        %4532 = vmatpush.bf16.xpose.msra.mxu0 %v4526
        %4533 = vmatpush.bf16.xpose.msra.mxu0 %v4523
        %4534 = vmatpush.bf16.xpose.msra.mxu0 %v4520
        %4535 = vmatpush.bf16.xpose.msra.mxu0 %v4517
        %4536 = vmatpush.bf16.xpose.msra.mxu0 %v4514
        %4537 = vmatpush.bf16.xpose.msra.mxu0 %v4511
        %4538 = vmatpush.bf16.xpose.msra.mxu0 %v4508
        %4539 = vmatmul.bf16.gmra.mxu0 %v4484
        %v4540 = vpop.f32.mrf.mxu0
        %v4541 = vadd.f32 0.0, %v4540
        %v4542 = vpop.f32.mrf.mxu0
        %v4543 = vadd.f32 0.0, %v4542
        %4544 = vmatmul.bf16.gmra.mxu0 %v4487
        %v4545 = vpop.f32.mrf.mxu0
        %v4546 = vadd.f32 0.0, %v4545
        %v4547 = vpop.f32.mrf.mxu0
        %v4548 = vadd.f32 0.0, %v4547
        %4549 = vmatmul.bf16.gmra.mxu0 %v4490
        %v4550 = vpop.f32.mrf.mxu0
        %v4551 = vadd.f32 0.0, %v4550
        %v4552 = vpop.f32.mrf.mxu0
        %v4553 = vadd.f32 0.0, %v4552
        %4554 = vmatmul.bf16.gmra.mxu0 %v4493
        %v4555 = vpop.f32.mrf.mxu0
        %v4556 = vadd.f32 0.0, %v4555
        %v4557 = vpop.f32.mrf.mxu0
        %v4558 = vadd.f32 0.0, %v4557
        %4559 = vmatmul.bf16.gmra.mxu0 %v4496
        %v4560 = vpop.f32.mrf.mxu0
        %v4561 = vadd.f32 0.0, %v4560
        %v4562 = vpop.f32.mrf.mxu0
        %v4563 = vadd.f32 0.0, %v4562
        %4564 = vmatmul.bf16.gmra.mxu0 %v4499
        %v4565 = vpop.f32.mrf.mxu0
        %v4566 = vadd.f32 0.0, %v4565
        %v4567 = vpop.f32.mrf.mxu0
        %v4568 = vadd.f32 0.0, %v4567
        %4569 = vmatmul.bf16.gmra.mxu0 %v4502
        %v4570 = vpop.f32.mrf.mxu0
        %v4571 = vadd.f32 0.0, %v4570
        %v4572 = vpop.f32.mrf.mxu0
        %v4573 = vadd.f32 0.0, %v4572
        %4574 = vmatmul.bf16.gmra.mxu0 %v4505
        %v4575 = vpop.f32.mrf.mxu0
        %v4576 = vadd.f32 0.0, %v4575
        %v4577 = vpop.f32.mrf.mxu0
        %v4578 = vadd.f32 0.0, %v4577
        %4579 = vdwg.mxu0
        %4580 = vrot.lane.b32.xlu0 %v1576, 32
        %v4581 = vpop.permute.xlu0 %4580
        %4582 = vrot.lane.b32.xlu0 %v1577, 32
        %v4583 = vpop.permute.xlu0 %4582
        %4584 = vrot.lane.b32.xlu0 %v1578, 32
        %v4585 = vpop.permute.xlu0 %4584
        %4586 = vrot.lane.b32.xlu0 %v1579, 32
        %v4587 = vpop.permute.xlu0 %4586
        %4588 = vrot.lane.b32.xlu0 %v1580, 32
        %v4589 = vpop.permute.xlu0 %4588
        %4590 = vrot.lane.b32.xlu0 %v1581, 32
        %v4591 = vpop.permute.xlu0 %4590
        %4592 = vrot.lane.b32.xlu0 %v1582, 32
        %v4593 = vpop.permute.xlu0 %4592
        %4594 = vrot.lane.b32.xlu0 %v1583, 32
        %v4595 = vpop.permute.xlu0 %4594
        %4596 = vrot.lane.b32.xlu0 %v1616, 32
        %v4597 = vpop.permute.xlu0 %4596
        %4598 = vrot.lane.b32.xlu0 %v1617, 32
        %v4599 = vpop.permute.xlu0 %4598
        %4600 = vrot.lane.b32.xlu0 %v1618, 32
        %v4601 = vpop.permute.xlu0 %4600
        %4602 = vrot.lane.b32.xlu0 %v1619, 32
        %v4603 = vpop.permute.xlu0 %4602
        %4604 = vrot.lane.b32.xlu0 %v1620, 32
        %v4605 = vpop.permute.xlu0 %4604
        %4606 = vrot.lane.b32.xlu0 %v1621, 32
        %v4607 = vpop.permute.xlu0 %4606
        %4608 = vrot.lane.b32.xlu0 %v1622, 32
        %v4609 = vpop.permute.xlu0 %4608
        %4610 = vrot.lane.b32.xlu0 %v1623, 32
        %v4611 = vpop.permute.xlu0 %4610
        %v4613 = vsel %vm1446, %v4581, 0
        %v4616 = vsel %vm1446, %v4583, 0
        %v4619 = vsel %vm1446, %v4585, 0
        %v4622 = vsel %vm1446, %v4587, 0
        %v4625 = vsel %vm1446, %v4589, 0
        %v4628 = vsel %vm1446, %v4591, 0
        %v4631 = vsel %vm1446, %v4593, 0
        %v4634 = vsel %vm1446, %v4595, 0
        %v4637 = vsel %vm1446, %v4597, 0
        %v4640 = vsel %vm1446, %v4599, 0
        %v4643 = vsel %vm1446, %v4601, 0
        %v4646 = vsel %vm1446, %v4603, 0
        %v4649 = vsel %vm1446, %v4605, 0
        %v4652 = vsel %vm1446, %v4607, 0
        %v4655 = vsel %vm1446, %v4609, 0
        %v4658 = vsel %vm1446, %v4611, 0
        %4660 = vmatpush.bf16.xpose.msra.mxu0 %v4658
        %4661 = vmatpush.bf16.xpose.msra.mxu0 %v4655
        %4662 = vmatpush.bf16.xpose.msra.mxu0 %v4652
        %4663 = vmatpush.bf16.xpose.msra.mxu0 %v4649
        %4664 = vmatpush.bf16.xpose.msra.mxu0 %v4646
        %4665 = vmatpush.bf16.xpose.msra.mxu0 %v4643
        %4666 = vmatpush.bf16.xpose.msra.mxu0 %v4640
        %4667 = vmatpush.bf16.xpose.msra.mxu0 %v4637
        %4668 = vmatmul.bf16.gmra.mxu0 %v4613
        %v4669 = vpop.f32.mrf.mxu0
        %v4670 = vadd.f32 0.0, %v4669
        %v4671 = vpop.f32.mrf.mxu0
        %v4672 = vadd.f32 0.0, %v4671
        %4673 = vmatmul.bf16.gmra.mxu0 %v4616
        %v4674 = vpop.f32.mrf.mxu0
        %v4675 = vadd.f32 0.0, %v4674
        %v4676 = vpop.f32.mrf.mxu0
        %v4677 = vadd.f32 0.0, %v4676
        %4678 = vmatmul.bf16.gmra.mxu0 %v4619
        %v4679 = vpop.f32.mrf.mxu0
        %v4680 = vadd.f32 0.0, %v4679
        %v4681 = vpop.f32.mrf.mxu0
        %v4682 = vadd.f32 0.0, %v4681
        %4683 = vmatmul.bf16.gmra.mxu0 %v4622
        %v4684 = vpop.f32.mrf.mxu0
        %v4685 = vadd.f32 0.0, %v4684
        %v4686 = vpop.f32.mrf.mxu0
        %v4687 = vadd.f32 0.0, %v4686
        %4688 = vmatmul.bf16.gmra.mxu0 %v4625
        %v4689 = vpop.f32.mrf.mxu0
        %v4690 = vadd.f32 0.0, %v4689
        %v4691 = vpop.f32.mrf.mxu0
        %v4692 = vadd.f32 0.0, %v4691
        %4693 = vmatmul.bf16.gmra.mxu0 %v4628
        %v4694 = vpop.f32.mrf.mxu0
        %v4695 = vadd.f32 0.0, %v4694
        %v4696 = vpop.f32.mrf.mxu0
        %v4697 = vadd.f32 0.0, %v4696
        %4698 = vmatmul.bf16.gmra.mxu0 %v4631
        %v4699 = vpop.f32.mrf.mxu0
        %v4700 = vadd.f32 0.0, %v4699
        %v4701 = vpop.f32.mrf.mxu0
        %v4702 = vadd.f32 0.0, %v4701
        %4703 = vmatmul.bf16.gmra.mxu0 %v4634
        %v4704 = vpop.f32.mrf.mxu0
        %v4705 = vadd.f32 0.0, %v4704
        %v4706 = vpop.f32.mrf.mxu0
        %v4707 = vadd.f32 0.0, %v4706
        %4708 = vdwg.mxu0
        %4709 = vmax.xlane.f32.xlu0 %v4541
        %v4710 = vpop.xlane.xlu0 %4709
        %4711 = vmax.xlane.f32.xlu0 %v4543
        %v4712 = vpop.xlane.xlu0 %4711
        %4713 = vmax.xlane.f32.xlu0 %v4546
        %v4714 = vpop.xlane.xlu0 %4713
        %4715 = vmax.xlane.f32.xlu0 %v4548
        %v4716 = vpop.xlane.xlu0 %4715
        %4717 = vmax.xlane.f32.xlu0 %v4551
        %v4718 = vpop.xlane.xlu0 %4717
        %4719 = vmax.xlane.f32.xlu0 %v4553
        %v4720 = vpop.xlane.xlu0 %4719
        %4721 = vmax.xlane.f32.xlu0 %v4556
        %v4722 = vpop.xlane.xlu0 %4721
        %4723 = vmax.xlane.f32.xlu0 %v4558
        %v4724 = vpop.xlane.xlu0 %4723
        %4725 = vmax.xlane.f32.xlu0 %v4561
        %v4726 = vpop.xlane.xlu0 %4725
        %4727 = vmax.xlane.f32.xlu0 %v4563
        %v4728 = vpop.xlane.xlu0 %4727
        %4729 = vmax.xlane.f32.xlu0 %v4566
        %v4730 = vpop.xlane.xlu0 %4729
        %4731 = vmax.xlane.f32.xlu0 %v4568
        %v4732 = vpop.xlane.xlu0 %4731
        %4733 = vmax.xlane.f32.xlu0 %v4571
        %v4734 = vpop.xlane.xlu0 %4733
        %4735 = vmax.xlane.f32.xlu0 %v4573
        %v4736 = vpop.xlane.xlu0 %4735
        %4737 = vmax.xlane.f32.xlu0 %v4576
        %v4738 = vpop.xlane.xlu0 %4737
        %4739 = vmax.xlane.f32.xlu0 %v4578
        %v4740 = vpop.xlane.xlu0 %4739
        %4741 = vmax.xlane.f32.xlu0 %v4670
        %v4742 = vpop.xlane.xlu0 %4741
        %4743 = vmax.xlane.f32.xlu0 %v4672
        %v4744 = vpop.xlane.xlu0 %4743
        %4745 = vmax.xlane.f32.xlu0 %v4675
        %v4746 = vpop.xlane.xlu0 %4745
        %4747 = vmax.xlane.f32.xlu0 %v4677
        %v4748 = vpop.xlane.xlu0 %4747
        %4749 = vmax.xlane.f32.xlu0 %v4680
        %v4750 = vpop.xlane.xlu0 %4749
        %4751 = vmax.xlane.f32.xlu0 %v4682
        %v4752 = vpop.xlane.xlu0 %4751
        %4753 = vmax.xlane.f32.xlu0 %v4685
        %v4754 = vpop.xlane.xlu0 %4753
        %4755 = vmax.xlane.f32.xlu0 %v4687
        %v4756 = vpop.xlane.xlu0 %4755
        %4757 = vmax.xlane.f32.xlu0 %v4690
        %v4758 = vpop.xlane.xlu0 %4757
        %4759 = vmax.xlane.f32.xlu0 %v4692
        %v4760 = vpop.xlane.xlu0 %4759
        %4761 = vmax.xlane.f32.xlu0 %v4695
        %v4762 = vpop.xlane.xlu0 %4761
        %4763 = vmax.xlane.f32.xlu0 %v4697
        %v4764 = vpop.xlane.xlu0 %4763
        %4765 = vmax.xlane.f32.xlu0 %v4700
        %v4766 = vpop.xlane.xlu0 %4765
        %4767 = vmax.xlane.f32.xlu0 %v4702
        %v4768 = vpop.xlane.xlu0 %4767
        %4769 = vmax.xlane.f32.xlu0 %v4705
        %v4770 = vpop.xlane.xlu0 %4769
        %4771 = vmax.xlane.f32.xlu0 %v4707
        %v4772 = vpop.xlane.xlu0 %4771
        %v4773 = vsub.f32 %v4541, %v4710
        %v4774 = vsub.f32 %v4543, %v4712
        %v4775 = vsub.f32 %v4546, %v4714
        %v4776 = vsub.f32 %v4548, %v4716
        %v4777 = vsub.f32 %v4551, %v4718
        %v4778 = vsub.f32 %v4553, %v4720
        %v4779 = vsub.f32 %v4556, %v4722
        %v4780 = vsub.f32 %v4558, %v4724
        %v4781 = vsub.f32 %v4561, %v4726
        %v4782 = vsub.f32 %v4563, %v4728
        %v4783 = vsub.f32 %v4566, %v4730
        %v4784 = vsub.f32 %v4568, %v4732
        %v4785 = vsub.f32 %v4571, %v4734
        %v4786 = vsub.f32 %v4573, %v4736
        %v4787 = vsub.f32 %v4576, %v4738
        %v4788 = vsub.f32 %v4578, %v4740
        %v4789 = vsub.f32 %v4670, %v4742
        %v4790 = vsub.f32 %v4672, %v4744
        %v4791 = vsub.f32 %v4675, %v4746
        %v4792 = vsub.f32 %v4677, %v4748
        %v4793 = vsub.f32 %v4680, %v4750
        %v4794 = vsub.f32 %v4682, %v4752
        %v4795 = vsub.f32 %v4685, %v4754
        %v4796 = vsub.f32 %v4687, %v4756
        %v4797 = vsub.f32 %v4690, %v4758
        %v4798 = vsub.f32 %v4692, %v4760
        %v4799 = vsub.f32 %v4695, %v4762
        %v4800 = vsub.f32 %v4697, %v4764
        %v4801 = vsub.f32 %v4700, %v4766
        %v4802 = vsub.f32 %v4702, %v4768
        %v4803 = vsub.f32 %v4705, %v4770
        %v4804 = vsub.f32 %v4707, %v4772
        %v4805 = vpack.c.bf16 %v4773, %v4773
        %v4806 = vpack.c.bf16 %v4774, %v4774
        %v4807 = vpack.c.bf16 %v4775, %v4775
        %v4808 = vpack.c.bf16 %v4776, %v4776
        %v4809 = vpack.c.bf16 %v4777, %v4777
        %v4810 = vpack.c.bf16 %v4778, %v4778
        %v4811 = vpack.c.bf16 %v4779, %v4779
        %v4812 = vpack.c.bf16 %v4780, %v4780
        %v4813 = vpack.c.bf16 %v4781, %v4781
        %v4814 = vpack.c.bf16 %v4782, %v4782
        %v4815 = vpack.c.bf16 %v4783, %v4783
        %v4816 = vpack.c.bf16 %v4784, %v4784
        %v4817 = vpack.c.bf16 %v4785, %v4785
        %v4818 = vpack.c.bf16 %v4786, %v4786
        %v4819 = vpack.c.bf16 %v4787, %v4787
        %v4820 = vpack.c.bf16 %v4788, %v4788
        %v4821 = vpack.c.bf16 %v4789, %v4789
        %v4822 = vpack.c.bf16 %v4790, %v4790
        %v4823 = vpack.c.bf16 %v4791, %v4791
        %v4824 = vpack.c.bf16 %v4792, %v4792
        %v4825 = vpack.c.bf16 %v4793, %v4793
        %v4826 = vpack.c.bf16 %v4794, %v4794
        %v4827 = vpack.c.bf16 %v4795, %v4795
        %v4828 = vpack.c.bf16 %v4796, %v4796
        %v4829 = vpack.c.bf16 %v4797, %v4797
        %v4830 = vpack.c.bf16 %v4798, %v4798
        %v4831 = vpack.c.bf16 %v4799, %v4799
        %v4832 = vpack.c.bf16 %v4800, %v4800
        %v4833 = vpack.c.bf16 %v4801, %v4801
        %v4834 = vpack.c.bf16 %v4802, %v4802
        %v4835 = vpack.c.bf16 %v4803, %v4803
        %v4836 = vpack.c.bf16 %v4804, %v4804
        %v4837 = vunpack.c.l.bf16 %v4805
        %v4838 = vunpack.c.l.bf16 %v4806
        %v4839 = vunpack.c.l.bf16 %v4807
        %v4840 = vunpack.c.l.bf16 %v4808
        %v4841 = vunpack.c.l.bf16 %v4809
        %v4842 = vunpack.c.l.bf16 %v4810
        %v4843 = vunpack.c.l.bf16 %v4811
        %v4844 = vunpack.c.l.bf16 %v4812
        %v4845 = vunpack.c.l.bf16 %v4813
        %v4846 = vunpack.c.l.bf16 %v4814
        %v4847 = vunpack.c.l.bf16 %v4815
        %v4848 = vunpack.c.l.bf16 %v4816
        %v4849 = vunpack.c.l.bf16 %v4817
        %v4850 = vunpack.c.l.bf16 %v4818
        %v4851 = vunpack.c.l.bf16 %v4819
        %v4852 = vunpack.c.l.bf16 %v4820
        %v4853 = vunpack.c.l.bf16 %v4821
        %v4854 = vunpack.c.l.bf16 %v4822
        %v4855 = vunpack.c.l.bf16 %v4823
        %v4856 = vunpack.c.l.bf16 %v4824
        %v4857 = vunpack.c.l.bf16 %v4825
        %v4858 = vunpack.c.l.bf16 %v4826
        %v4859 = vunpack.c.l.bf16 %v4827
        %v4860 = vunpack.c.l.bf16 %v4828
        %v4861 = vunpack.c.l.bf16 %v4829
        %v4862 = vunpack.c.l.bf16 %v4830
        %v4863 = vunpack.c.l.bf16 %v4831
        %v4864 = vunpack.c.l.bf16 %v4832
        %v4865 = vunpack.c.l.bf16 %v4833
        %v4866 = vunpack.c.l.bf16 %v4834
        %v4867 = vunpack.c.l.bf16 %v4835
        %v4868 = vunpack.c.l.bf16 %v4836
        %v4869 = vmul.f32 %v4837, 1.442695
        %v4870 = vpow.pop %v4869
        %v4871 = vmul.f32 %v4838, 1.442695
        %v4872 = vpow.pop %v4871
        %v4873 = vmul.f32 %v4839, 1.442695
        %v4874 = vpow.pop %v4873
        %v4875 = vmul.f32 %v4840, 1.442695
        %v4876 = vpow.pop %v4875
        %v4877 = vmul.f32 %v4841, 1.442695
        %v4878 = vpow.pop %v4877
        %v4879 = vmul.f32 %v4842, 1.442695
        %v4880 = vpow.pop %v4879
        %v4881 = vmul.f32 %v4843, 1.442695
        %v4882 = vpow.pop %v4881
        %v4883 = vmul.f32 %v4844, 1.442695
        %v4884 = vpow.pop %v4883
        %v4885 = vmul.f32 %v4845, 1.442695
        %v4886 = vpow.pop %v4885
        %v4887 = vmul.f32 %v4846, 1.442695
        %v4888 = vpow.pop %v4887
        %v4889 = vmul.f32 %v4847, 1.442695
        %v4890 = vpow.pop %v4889
        %v4891 = vmul.f32 %v4848, 1.442695
        %v4892 = vpow.pop %v4891
        %v4893 = vmul.f32 %v4849, 1.442695
        %v4894 = vpow.pop %v4893
        %v4895 = vmul.f32 %v4850, 1.442695
        %v4896 = vpow.pop %v4895
        %v4897 = vmul.f32 %v4851, 1.442695
        %v4898 = vpow.pop %v4897
        %v4899 = vmul.f32 %v4852, 1.442695
        %v4900 = vpow.pop %v4899
        %v4901 = vmul.f32 %v4853, 1.442695
        %v4902 = vpow.pop %v4901
        %v4903 = vmul.f32 %v4854, 1.442695
        %v4904 = vpow.pop %v4903
        %v4905 = vmul.f32 %v4855, 1.442695
        %v4906 = vpow.pop %v4905
        %v4907 = vmul.f32 %v4856, 1.442695
        %v4908 = vpow.pop %v4907
        %v4909 = vmul.f32 %v4857, 1.442695
        %v4910 = vpow.pop %v4909
        %v4911 = vmul.f32 %v4858, 1.442695
        %v4912 = vpow.pop %v4911
        %v4913 = vmul.f32 %v4859, 1.442695
        %v4914 = vpow.pop %v4913
        %v4915 = vmul.f32 %v4860, 1.442695
        %v4916 = vpow.pop %v4915
        %v4917 = vmul.f32 %v4861, 1.442695
        %v4918 = vpow.pop %v4917
        %v4919 = vmul.f32 %v4862, 1.442695
        %v4920 = vpow.pop %v4919
        %v4921 = vmul.f32 %v4863, 1.442695
        %v4922 = vpow.pop %v4921
        %v4923 = vmul.f32 %v4864, 1.442695
        %v4924 = vpow.pop %v4923
        %v4925 = vmul.f32 %v4865, 1.442695
        %v4926 = vpow.pop %v4925
        %v4927 = vmul.f32 %v4866, 1.442695
        %v4928 = vpow.pop %v4927
        %v4929 = vmul.f32 %v4867, 1.442695
        %v4930 = vpow.pop %v4929
        %v4931 = vmul.f32 %v4868, 1.442695
        %v4932 = vpow.pop %v4931
        %v4933 = vpack.c.bf16 %v4870, %v4870
        %v4934 = vpack.c.bf16 %v4872, %v4872
        %v4935 = vpack.c.bf16 %v4874, %v4874
        %v4936 = vpack.c.bf16 %v4876, %v4876
        %v4937 = vpack.c.bf16 %v4878, %v4878
        %v4938 = vpack.c.bf16 %v4880, %v4880
        %v4939 = vpack.c.bf16 %v4882, %v4882
        %v4940 = vpack.c.bf16 %v4884, %v4884
        %v4941 = vpack.c.bf16 %v4886, %v4886
        %v4942 = vpack.c.bf16 %v4888, %v4888
        %v4943 = vpack.c.bf16 %v4890, %v4890
        %v4944 = vpack.c.bf16 %v4892, %v4892
        %v4945 = vpack.c.bf16 %v4894, %v4894
        %v4946 = vpack.c.bf16 %v4896, %v4896
        %v4947 = vpack.c.bf16 %v4898, %v4898
        %v4948 = vpack.c.bf16 %v4900, %v4900
        %v4949 = vpack.c.bf16 %v4902, %v4902
        %v4950 = vpack.c.bf16 %v4904, %v4904
        %v4951 = vpack.c.bf16 %v4906, %v4906
        %v4952 = vpack.c.bf16 %v4908, %v4908
        %v4953 = vpack.c.bf16 %v4910, %v4910
        %v4954 = vpack.c.bf16 %v4912, %v4912
        %v4955 = vpack.c.bf16 %v4914, %v4914
        %v4956 = vpack.c.bf16 %v4916, %v4916
        %v4957 = vpack.c.bf16 %v4918, %v4918
        %v4958 = vpack.c.bf16 %v4920, %v4920
        %v4959 = vpack.c.bf16 %v4922, %v4922
        %v4960 = vpack.c.bf16 %v4924, %v4924
        %v4961 = vpack.c.bf16 %v4926, %v4926
        %v4962 = vpack.c.bf16 %v4928, %v4928
        %v4963 = vpack.c.bf16 %v4930, %v4930
        %v4964 = vpack.c.bf16 %v4932, %v4932
        %v4965 = vunpack.c.l.bf16 %v4933
        %v4966 = vunpack.c.l.bf16 %v4934
        %v4967 = vunpack.c.l.bf16 %v4935
        %v4968 = vunpack.c.l.bf16 %v4936
        %v4969 = vunpack.c.l.bf16 %v4937
        %v4970 = vunpack.c.l.bf16 %v4938
        %v4971 = vunpack.c.l.bf16 %v4939
        %v4972 = vunpack.c.l.bf16 %v4940
        %v4973 = vunpack.c.l.bf16 %v4941
        %v4974 = vunpack.c.l.bf16 %v4942
        %v4975 = vunpack.c.l.bf16 %v4943
        %v4976 = vunpack.c.l.bf16 %v4944
        %v4977 = vunpack.c.l.bf16 %v4945
        %v4978 = vunpack.c.l.bf16 %v4946
        %v4979 = vunpack.c.l.bf16 %v4947
        %v4980 = vunpack.c.l.bf16 %v4948
        %v4981 = vunpack.c.l.bf16 %v4949
        %v4982 = vunpack.c.l.bf16 %v4950
        %v4983 = vunpack.c.l.bf16 %v4951
        %v4984 = vunpack.c.l.bf16 %v4952
        %v4985 = vunpack.c.l.bf16 %v4953
        %v4986 = vunpack.c.l.bf16 %v4954
        %v4987 = vunpack.c.l.bf16 %v4955
        %v4988 = vunpack.c.l.bf16 %v4956
        %v4989 = vunpack.c.l.bf16 %v4957
        %v4990 = vunpack.c.l.bf16 %v4958
        %v4991 = vunpack.c.l.bf16 %v4959
        %v4992 = vunpack.c.l.bf16 %v4960
        %v4993 = vunpack.c.l.bf16 %v4961
        %v4994 = vunpack.c.l.bf16 %v4962
        %v4995 = vunpack.c.l.bf16 %v4963
        %v4996 = vunpack.c.l.bf16 %v4964
        %4997 = vadd.xlane.f32.xlu0 %v4965
        %v4998 = vpop.xlane.xlu0 %4997
        %4999 = vadd.xlane.f32.xlu0 %v4966
        %v5000 = vpop.xlane.xlu0 %4999
        %5001 = vadd.xlane.f32.xlu0 %v4967
        %v5002 = vpop.xlane.xlu0 %5001
        %5003 = vadd.xlane.f32.xlu0 %v4968
        %v5004 = vpop.xlane.xlu0 %5003
        %5005 = vadd.xlane.f32.xlu0 %v4969
        %v5006 = vpop.xlane.xlu0 %5005
        %5007 = vadd.xlane.f32.xlu0 %v4970
        %v5008 = vpop.xlane.xlu0 %5007
        %5009 = vadd.xlane.f32.xlu0 %v4971
        %v5010 = vpop.xlane.xlu0 %5009
        %5011 = vadd.xlane.f32.xlu0 %v4972
        %v5012 = vpop.xlane.xlu0 %5011
        %5013 = vadd.xlane.f32.xlu0 %v4973
        %v5014 = vpop.xlane.xlu0 %5013
        %5015 = vadd.xlane.f32.xlu0 %v4974
        %v5016 = vpop.xlane.xlu0 %5015
        %5017 = vadd.xlane.f32.xlu0 %v4975
        %v5018 = vpop.xlane.xlu0 %5017
        %5019 = vadd.xlane.f32.xlu0 %v4976
        %v5020 = vpop.xlane.xlu0 %5019
        %5021 = vadd.xlane.f32.xlu0 %v4977
        %v5022 = vpop.xlane.xlu0 %5021
        %5023 = vadd.xlane.f32.xlu0 %v4978
        %v5024 = vpop.xlane.xlu0 %5023
        %5025 = vadd.xlane.f32.xlu0 %v4979
        %v5026 = vpop.xlane.xlu0 %5025
        %5027 = vadd.xlane.f32.xlu0 %v4980
        %v5028 = vpop.xlane.xlu0 %5027
        %5029 = vadd.xlane.f32.xlu0 %v4981
        %v5030 = vpop.xlane.xlu0 %5029
        %5031 = vadd.xlane.f32.xlu0 %v4982
        %v5032 = vpop.xlane.xlu0 %5031
        %5033 = vadd.xlane.f32.xlu0 %v4983
        %v5034 = vpop.xlane.xlu0 %5033
        %5035 = vadd.xlane.f32.xlu0 %v4984
        %v5036 = vpop.xlane.xlu0 %5035
        %5037 = vadd.xlane.f32.xlu0 %v4985
        %v5038 = vpop.xlane.xlu0 %5037
        %5039 = vadd.xlane.f32.xlu0 %v4986
        %v5040 = vpop.xlane.xlu0 %5039
        %5041 = vadd.xlane.f32.xlu0 %v4987
        %v5042 = vpop.xlane.xlu0 %5041
        %5043 = vadd.xlane.f32.xlu0 %v4988
        %v5044 = vpop.xlane.xlu0 %5043
        %5045 = vadd.xlane.f32.xlu0 %v4989
        %v5046 = vpop.xlane.xlu0 %5045
        %5047 = vadd.xlane.f32.xlu0 %v4990
        %v5048 = vpop.xlane.xlu0 %5047
        %5049 = vadd.xlane.f32.xlu0 %v4991
        %v5050 = vpop.xlane.xlu0 %5049
        %5051 = vadd.xlane.f32.xlu0 %v4992
        %v5052 = vpop.xlane.xlu0 %5051
        %5053 = vadd.xlane.f32.xlu0 %v4993
        %v5054 = vpop.xlane.xlu0 %5053
        %5055 = vadd.xlane.f32.xlu0 %v4994
        %v5056 = vpop.xlane.xlu0 %5055
        %5057 = vadd.xlane.f32.xlu0 %v4995
        %v5058 = vpop.xlane.xlu0 %5057
        %5059 = vadd.xlane.f32.xlu0 %v4996
        %v5060 = vpop.xlane.xlu0 %5059
        %v5061 = vrcp.pop %v4998
        %v5062 = vrcp.pop %v5000
        %v5063 = vrcp.pop %v5002
        %v5064 = vrcp.pop %v5004
        %v5065 = vrcp.pop %v5006
        %v5066 = vrcp.pop %v5008
        %v5067 = vrcp.pop %v5010
        %v5068 = vrcp.pop %v5012
        %v5069 = vrcp.pop %v5014
        %v5070 = vrcp.pop %v5016
        %v5071 = vrcp.pop %v5018
        %v5072 = vrcp.pop %v5020
        %v5073 = vrcp.pop %v5022
        %v5074 = vrcp.pop %v5024
        %v5075 = vrcp.pop %v5026
        %v5076 = vrcp.pop %v5028
        %v5077 = vrcp.pop %v5030
        %v5078 = vrcp.pop %v5032
        %v5079 = vrcp.pop %v5034
        %v5080 = vrcp.pop %v5036
        %v5081 = vrcp.pop %v5038
        %v5082 = vrcp.pop %v5040
        %v5083 = vrcp.pop %v5042
        %v5084 = vrcp.pop %v5044
        %v5085 = vrcp.pop %v5046
        %v5086 = vrcp.pop %v5048
        %v5087 = vrcp.pop %v5050
        %v5088 = vrcp.pop %v5052
        %v5089 = vrcp.pop %v5054
        %v5090 = vrcp.pop %v5056
        %v5091 = vrcp.pop %v5058
        %v5092 = vrcp.pop %v5060
        %v5093 = vmul.f32 %v4965, %v5061
        %v5094 = vmul.f32 %v4966, %v5062
        %v5095 = vmul.f32 %v4967, %v5063
        %v5096 = vmul.f32 %v4968, %v5064
        %v5097 = vmul.f32 %v4969, %v5065
        %v5098 = vmul.f32 %v4970, %v5066
        %v5099 = vmul.f32 %v4971, %v5067
        %v5100 = vmul.f32 %v4972, %v5068
        %v5101 = vmul.f32 %v4973, %v5069
        %v5102 = vmul.f32 %v4974, %v5070
        %v5103 = vmul.f32 %v4975, %v5071
        %v5104 = vmul.f32 %v4976, %v5072
        %v5105 = vmul.f32 %v4977, %v5073
        %v5106 = vmul.f32 %v4978, %v5074
        %v5107 = vmul.f32 %v4979, %v5075
        %v5108 = vmul.f32 %v4980, %v5076
        %v5109 = vmul.f32 %v4981, %v5077
        %v5110 = vmul.f32 %v4982, %v5078
        %v5111 = vmul.f32 %v4983, %v5079
        %v5112 = vmul.f32 %v4984, %v5080
        %v5113 = vmul.f32 %v4985, %v5081
        %v5114 = vmul.f32 %v4986, %v5082
        %v5115 = vmul.f32 %v4987, %v5083
        %v5116 = vmul.f32 %v4988, %v5084
        %v5117 = vmul.f32 %v4989, %v5085
        %v5118 = vmul.f32 %v4990, %v5086
        %v5119 = vmul.f32 %v4991, %v5087
        %v5120 = vmul.f32 %v4992, %v5088
        %v5121 = vmul.f32 %v4993, %v5089
        %v5122 = vmul.f32 %v4994, %v5090
        %v5123 = vmul.f32 %v4995, %v5091
        %v5124 = vmul.f32 %v4996, %v5092
        %v5125 = vpack.c.bf16 %v5093, %v5093
        %v5126 = vpack.c.bf16 %v5094, %v5094
        %v5127 = vpack.c.bf16 %v5095, %v5095
        %v5128 = vpack.c.bf16 %v5096, %v5096
        %v5129 = vpack.c.bf16 %v5097, %v5097
        %v5130 = vpack.c.bf16 %v5098, %v5098
        %v5131 = vpack.c.bf16 %v5099, %v5099
        %v5132 = vpack.c.bf16 %v5100, %v5100
        %v5133 = vpack.c.bf16 %v5101, %v5101
        %v5134 = vpack.c.bf16 %v5102, %v5102
        %v5135 = vpack.c.bf16 %v5103, %v5103
        %v5136 = vpack.c.bf16 %v5104, %v5104
        %v5137 = vpack.c.bf16 %v5105, %v5105
        %v5138 = vpack.c.bf16 %v5106, %v5106
        %v5139 = vpack.c.bf16 %v5107, %v5107
        %v5140 = vpack.c.bf16 %v5108, %v5108
        %v5141 = vpack.c.bf16 %v5109, %v5109
        %v5142 = vpack.c.bf16 %v5110, %v5110
        %v5143 = vpack.c.bf16 %v5111, %v5111
        %v5144 = vpack.c.bf16 %v5112, %v5112
        %v5145 = vpack.c.bf16 %v5113, %v5113
        %v5146 = vpack.c.bf16 %v5114, %v5114
        %v5147 = vpack.c.bf16 %v5115, %v5115
        %v5148 = vpack.c.bf16 %v5116, %v5116
        %v5149 = vpack.c.bf16 %v5117, %v5117
        %v5150 = vpack.c.bf16 %v5118, %v5118
        %v5151 = vpack.c.bf16 %v5119, %v5119
        %v5152 = vpack.c.bf16 %v5120, %v5120
        %v5153 = vpack.c.bf16 %v5121, %v5121
        %v5154 = vpack.c.bf16 %v5122, %v5122
        %v5155 = vpack.c.bf16 %v5123, %v5123
        %v5156 = vpack.c.bf16 %v5124, %v5124
        %v5173 = vunpack.c.l.b16 %v5125
        %v5174 = vunpack.c.l.b16 %v5126
        %v5175 = vunpack.c.l.b16 %v5127
        %v5176 = vunpack.c.l.b16 %v5128
        %v5177 = vunpack.c.l.b16 %v5129
        %v5178 = vunpack.c.l.b16 %v5130
        %v5179 = vunpack.c.l.b16 %v5131
        %v5180 = vunpack.c.l.b16 %v5132
        %v5181 = vunpack.c.l.b16 %v5133
        %v5182 = vunpack.c.l.b16 %v5134
        %v5183 = vunpack.c.l.b16 %v5135
        %v5184 = vunpack.c.l.b16 %v5136
        %v5185 = vunpack.c.l.b16 %v5137
        %v5186 = vunpack.c.l.b16 %v5138
        %v5187 = vunpack.c.l.b16 %v5139
        %v5188 = vunpack.c.l.b16 %v5140
        %v5189 = vpack.c.b16 %v5174, %v5173
        %v5190 = vpack.c.b16 %v5176, %v5175
        %v5191 = vpack.c.b16 %v5178, %v5177
        %v5192 = vpack.c.b16 %v5180, %v5179
        %v5193 = vpack.c.b16 %v5182, %v5181
        %v5194 = vpack.c.b16 %v5184, %v5183
        %v5195 = vpack.c.b16 %v5186, %v5185
        %v5196 = vpack.c.b16 %v5188, %v5187
        %5205 = vrot.lane.b32.xlu0 %v2249, 32
        %v5206 = vpop.permute.xlu0 %5205
        %5207 = vrot.lane.b32.xlu0 %v2250, 32
        %v5208 = vpop.permute.xlu0 %5207
        %5209 = vrot.lane.b32.xlu0 %v2251, 32
        %v5210 = vpop.permute.xlu0 %5209
        %5211 = vrot.lane.b32.xlu0 %v2252, 32
        %v5212 = vpop.permute.xlu0 %5211
        %5213 = vrot.lane.b32.xlu0 %v2253, 32
        %v5214 = vpop.permute.xlu0 %5213
        %5215 = vrot.lane.b32.xlu0 %v2254, 32
        %v5216 = vpop.permute.xlu0 %5215
        %5217 = vrot.lane.b32.xlu0 %v2255, 32
        %v5218 = vpop.permute.xlu0 %5217
        %5219 = vrot.lane.b32.xlu0 %v2256, 32
        %v5220 = vpop.permute.xlu0 %5219
        %5229 = vmatpush.bf16.msra.mxu0 %v5220
        %5230 = vmatpush.bf16.msra.mxu0 %v5218
        %5231 = vmatpush.bf16.msra.mxu0 %v5216
        %5232 = vmatpush.bf16.msra.mxu0 %v5214
        %5233 = vmatpush.bf16.msra.mxu0 %v5212
        %5234 = vmatpush.bf16.msra.mxu0 %v5210
        %5235 = vmatpush.bf16.msra.mxu0 %v5208
        %5236 = vmatpush.bf16.msra.mxu0 %v5206
        %5237 = vmatmul.bf16.gmra.mxu0 %v5189
        %v5238 = vpop.f32.mrf.mxu0
        %v5239 = vadd.f32 0.0, %v5238
        %v5240 = vpop.f32.mrf.mxu0
        %v5241 = vadd.f32 0.0, %v5240
        %5242 = vmatmul.bf16.gmra.mxu0 %v5190
        %v5243 = vpop.f32.mrf.mxu0
        %v5244 = vadd.f32 0.0, %v5243
        %v5245 = vpop.f32.mrf.mxu0
        %v5246 = vadd.f32 0.0, %v5245
        %5247 = vmatmul.bf16.gmra.mxu0 %v5191
        %v5248 = vpop.f32.mrf.mxu0
        %v5249 = vadd.f32 0.0, %v5248
        %v5250 = vpop.f32.mrf.mxu0
        %v5251 = vadd.f32 0.0, %v5250
        %5252 = vmatmul.bf16.gmra.mxu0 %v5192
        %v5253 = vpop.f32.mrf.mxu0
        %v5254 = vadd.f32 0.0, %v5253
        %v5255 = vpop.f32.mrf.mxu0
        %v5256 = vadd.f32 0.0, %v5255
        %5257 = vmatmul.bf16.gmra.mxu0 %v5193
        %v5258 = vpop.f32.mrf.mxu0
        %v5259 = vadd.f32 0.0, %v5258
        %v5260 = vpop.f32.mrf.mxu0
        %v5261 = vadd.f32 0.0, %v5260
        %5262 = vmatmul.bf16.gmra.mxu0 %v5194
        %v5263 = vpop.f32.mrf.mxu0
        %v5264 = vadd.f32 0.0, %v5263
        %v5265 = vpop.f32.mrf.mxu0
        %v5266 = vadd.f32 0.0, %v5265
        %5267 = vmatmul.bf16.gmra.mxu0 %v5195
        %v5268 = vpop.f32.mrf.mxu0
        %v5269 = vadd.f32 0.0, %v5268
        %v5270 = vpop.f32.mrf.mxu0
        %v5271 = vadd.f32 0.0, %v5270
        %5272 = vmatmul.bf16.gmra.mxu0 %v5196
        %v5273 = vpop.f32.mrf.mxu0
        %v5274 = vadd.f32 0.0, %v5273
        %v5275 = vpop.f32.mrf.mxu0
        %v5276 = vadd.f32 0.0, %v5275
        %5277 = vdwg.mxu0
        %v5294 = vunpack.c.l.b16 %v5141
        %v5295 = vunpack.c.l.b16 %v5142
        %v5296 = vunpack.c.l.b16 %v5143
        %v5297 = vunpack.c.l.b16 %v5144
        %v5298 = vunpack.c.l.b16 %v5145
        %v5299 = vunpack.c.l.b16 %v5146
        %v5300 = vunpack.c.l.b16 %v5147
        %v5301 = vunpack.c.l.b16 %v5148
        %v5302 = vunpack.c.l.b16 %v5149
        %v5303 = vunpack.c.l.b16 %v5150
        %v5304 = vunpack.c.l.b16 %v5151
        %v5305 = vunpack.c.l.b16 %v5152
        %v5306 = vunpack.c.l.b16 %v5153
        %v5307 = vunpack.c.l.b16 %v5154
        %v5308 = vunpack.c.l.b16 %v5155
        %v5309 = vunpack.c.l.b16 %v5156
        %v5310 = vpack.c.b16 %v5295, %v5294
        %v5311 = vpack.c.b16 %v5297, %v5296
        %v5312 = vpack.c.b16 %v5299, %v5298
        %v5313 = vpack.c.b16 %v5301, %v5300
        %v5314 = vpack.c.b16 %v5303, %v5302
        %v5315 = vpack.c.b16 %v5305, %v5304
        %v5316 = vpack.c.b16 %v5307, %v5306
        %v5317 = vpack.c.b16 %v5309, %v5308
        %5326 = vrot.lane.b32.xlu0 %v2394, 32
        %v5327 = vpop.permute.xlu0 %5326
        %5328 = vrot.lane.b32.xlu0 %v2395, 32
        %v5329 = vpop.permute.xlu0 %5328
        %5330 = vrot.lane.b32.xlu0 %v2396, 32
        %v5331 = vpop.permute.xlu0 %5330
        %5332 = vrot.lane.b32.xlu0 %v2397, 32
        %v5333 = vpop.permute.xlu0 %5332
        %5334 = vrot.lane.b32.xlu0 %v2398, 32
        %v5335 = vpop.permute.xlu0 %5334
        %5336 = vrot.lane.b32.xlu0 %v2399, 32
        %v5337 = vpop.permute.xlu0 %5336
        %5338 = vrot.lane.b32.xlu0 %v2400, 32
        %v5339 = vpop.permute.xlu0 %5338
        %5340 = vrot.lane.b32.xlu0 %v2401, 32
        %v5341 = vpop.permute.xlu0 %5340
        %5350 = vmatpush.bf16.msra.mxu0 %v5341
        %5351 = vmatpush.bf16.msra.mxu0 %v5339
        %5352 = vmatpush.bf16.msra.mxu0 %v5337
        %5353 = vmatpush.bf16.msra.mxu0 %v5335
        %5354 = vmatpush.bf16.msra.mxu0 %v5333
        %5355 = vmatpush.bf16.msra.mxu0 %v5331
        %5356 = vmatpush.bf16.msra.mxu0 %v5329
        %5357 = vmatpush.bf16.msra.mxu0 %v5327
        %5358 = vmatmul.bf16.gmra.mxu0 %v5310
        %v5359 = vpop.f32.mrf.mxu0
        %v5360 = vadd.f32 0.0, %v5359
        %v5361 = vpop.f32.mrf.mxu0
        %v5362 = vadd.f32 0.0, %v5361
        %5363 = vmatmul.bf16.gmra.mxu0 %v5311
        %v5364 = vpop.f32.mrf.mxu0
        %v5365 = vadd.f32 0.0, %v5364
        %v5366 = vpop.f32.mrf.mxu0
        %v5367 = vadd.f32 0.0, %v5366
        %5368 = vmatmul.bf16.gmra.mxu0 %v5312
        %v5369 = vpop.f32.mrf.mxu0
        %v5370 = vadd.f32 0.0, %v5369
        %v5371 = vpop.f32.mrf.mxu0
        %v5372 = vadd.f32 0.0, %v5371
        %5373 = vmatmul.bf16.gmra.mxu0 %v5313
        %v5374 = vpop.f32.mrf.mxu0
        %v5375 = vadd.f32 0.0, %v5374
        %v5376 = vpop.f32.mrf.mxu0
        %v5377 = vadd.f32 0.0, %v5376
        %5378 = vmatmul.bf16.gmra.mxu0 %v5314
        %v5379 = vpop.f32.mrf.mxu0
        %v5380 = vadd.f32 0.0, %v5379
        %v5381 = vpop.f32.mrf.mxu0
        %v5382 = vadd.f32 0.0, %v5381
        %5383 = vmatmul.bf16.gmra.mxu0 %v5315
        %v5384 = vpop.f32.mrf.mxu0
        %v5385 = vadd.f32 0.0, %v5384
        %v5386 = vpop.f32.mrf.mxu0
        %v5387 = vadd.f32 0.0, %v5386
        %5388 = vmatmul.bf16.gmra.mxu0 %v5316
        %v5389 = vpop.f32.mrf.mxu0
        %v5390 = vadd.f32 0.0, %v5389
        %v5391 = vpop.f32.mrf.mxu0
        %v5392 = vadd.f32 0.0, %v5391
        %5393 = vmatmul.bf16.gmra.mxu0 %v5317
        %v5394 = vpop.f32.mrf.mxu0
        %v5395 = vadd.f32 0.0, %v5394
        %v5396 = vpop.f32.mrf.mxu0
        %v5397 = vadd.f32 0.0, %v5396
        %5398 = vdwg.mxu0
        %v5399 = vpack.c.bf16 %v5239, %v5239
        %v5400 = vpack.c.bf16 %v5241, %v5241
        %v5401 = vpack.c.bf16 %v5244, %v5244
        %v5402 = vpack.c.bf16 %v5246, %v5246
        %v5403 = vpack.c.bf16 %v5249, %v5249
        %v5404 = vpack.c.bf16 %v5251, %v5251
        %v5405 = vpack.c.bf16 %v5254, %v5254
        %v5406 = vpack.c.bf16 %v5256, %v5256
        %v5407 = vpack.c.bf16 %v5259, %v5259
        %v5408 = vpack.c.bf16 %v5261, %v5261
        %v5409 = vpack.c.bf16 %v5264, %v5264
        %v5410 = vpack.c.bf16 %v5266, %v5266
        %v5411 = vpack.c.bf16 %v5269, %v5269
        %v5412 = vpack.c.bf16 %v5271, %v5271
        %v5413 = vpack.c.bf16 %v5274, %v5274
        %v5414 = vpack.c.bf16 %v5276, %v5276
        %v5415 = vpack.c.bf16 %v5360, %v5360
        %v5416 = vpack.c.bf16 %v5362, %v5362
        %v5417 = vpack.c.bf16 %v5365, %v5365
        %v5418 = vpack.c.bf16 %v5367, %v5367
        %v5419 = vpack.c.bf16 %v5370, %v5370
        %v5420 = vpack.c.bf16 %v5372, %v5372
        %v5421 = vpack.c.bf16 %v5375, %v5375
        %v5422 = vpack.c.bf16 %v5377, %v5377
        %v5423 = vpack.c.bf16 %v5380, %v5380
        %v5424 = vpack.c.bf16 %v5382, %v5382
        %v5425 = vpack.c.bf16 %v5385, %v5385
        %v5426 = vpack.c.bf16 %v5387, %v5387
        %v5427 = vpack.c.bf16 %v5390, %v5390
        %v5428 = vpack.c.bf16 %v5392, %v5392
        %v5429 = vpack.c.bf16 %v5395, %v5395
        %v5430 = vpack.c.bf16 %v5397, %v5397
        %v5463 = vunpack.c.l.b16 %v2459
        %v5464 = vunpack.c.l.b16 %v2460
        %v5465 = vunpack.c.l.b16 %v2461
        %v5466 = vunpack.c.l.b16 %v2462
        %v5467 = vunpack.c.l.b16 %v2463
        %v5468 = vunpack.c.l.b16 %v2464
        %v5469 = vunpack.c.l.b16 %v2465
        %v5470 = vunpack.c.l.b16 %v2466
        %v5471 = vunpack.c.l.b16 %v2467
        %v5472 = vunpack.c.l.b16 %v2468
        %v5473 = vunpack.c.l.b16 %v2469
        %v5474 = vunpack.c.l.b16 %v2470
        %v5475 = vunpack.c.l.b16 %v2471
        %v5476 = vunpack.c.l.b16 %v2472
        %v5477 = vunpack.c.l.b16 %v2473
        %v5478 = vunpack.c.l.b16 %v2474
        %v5479 = vunpack.c.l.b16 %v2475
        %v5480 = vunpack.c.l.b16 %v2476
        %v5481 = vunpack.c.l.b16 %v2477
        %v5482 = vunpack.c.l.b16 %v2478
        %v5483 = vunpack.c.l.b16 %v2479
        %v5484 = vunpack.c.l.b16 %v2480
        %v5485 = vunpack.c.l.b16 %v2481
        %v5486 = vunpack.c.l.b16 %v2482
        %v5487 = vunpack.c.l.b16 %v2483
        %v5488 = vunpack.c.l.b16 %v2484
        %v5489 = vunpack.c.l.b16 %v2485
        %v5490 = vunpack.c.l.b16 %v2486
        %v5491 = vunpack.c.l.b16 %v2487
        %v5492 = vunpack.c.l.b16 %v2488
        %v5493 = vunpack.c.l.b16 %v2489
        %v5494 = vunpack.c.l.b16 %v2490
        %v5495 = vpack.c.b16 %v5464, %v5463
        %v5496 = vpack.c.b16 %v5466, %v5465
        %v5497 = vpack.c.b16 %v5468, %v5467
        %v5498 = vpack.c.b16 %v5470, %v5469
        %v5499 = vpack.c.b16 %v5472, %v5471
        %v5500 = vpack.c.b16 %v5474, %v5473
        %v5501 = vpack.c.b16 %v5476, %v5475
        %v5502 = vpack.c.b16 %v5478, %v5477
        %v5503 = vpack.c.b16 %v5480, %v5479
        %v5504 = vpack.c.b16 %v5482, %v5481
        %v5505 = vpack.c.b16 %v5484, %v5483
        %v5506 = vpack.c.b16 %v5486, %v5485
        %v5507 = vpack.c.b16 %v5488, %v5487
        %v5508 = vpack.c.b16 %v5490, %v5489
        %v5509 = vpack.c.b16 %v5492, %v5491
        %v5510 = vpack.c.b16 %v5494, %v5493
        %v5543 = vunpack.c.l.b16 %v3439
        %v5544 = vunpack.c.l.b16 %v3440
        %v5545 = vunpack.c.l.b16 %v3441
        %v5546 = vunpack.c.l.b16 %v3442
        %v5547 = vunpack.c.l.b16 %v3443
        %v5548 = vunpack.c.l.b16 %v3444
        %v5549 = vunpack.c.l.b16 %v3445
        %v5550 = vunpack.c.l.b16 %v3446
        %v5551 = vunpack.c.l.b16 %v3447
        %v5552 = vunpack.c.l.b16 %v3448
        %v5553 = vunpack.c.l.b16 %v3449
        %v5554 = vunpack.c.l.b16 %v3450
        %v5555 = vunpack.c.l.b16 %v3451
        %v5556 = vunpack.c.l.b16 %v3452
        %v5557 = vunpack.c.l.b16 %v3453
        %v5558 = vunpack.c.l.b16 %v3454
        %v5559 = vunpack.c.l.b16 %v3455
        %v5560 = vunpack.c.l.b16 %v3456
        %v5561 = vunpack.c.l.b16 %v3457
        %v5562 = vunpack.c.l.b16 %v3458
        %v5563 = vunpack.c.l.b16 %v3459
        %v5564 = vunpack.c.l.b16 %v3460
        %v5565 = vunpack.c.l.b16 %v3461
        %v5566 = vunpack.c.l.b16 %v3462
        %v5567 = vunpack.c.l.b16 %v3463
        %v5568 = vunpack.c.l.b16 %v3464
        %v5569 = vunpack.c.l.b16 %v3465
        %v5570 = vunpack.c.l.b16 %v3466
        %v5571 = vunpack.c.l.b16 %v3467
        %v5572 = vunpack.c.l.b16 %v3468
        %v5573 = vunpack.c.l.b16 %v3469
        %v5574 = vunpack.c.l.b16 %v3470
        %v5575 = vpack.c.b16 %v5544, %v5543
        %v5576 = vpack.c.b16 %v5546, %v5545
        %v5577 = vpack.c.b16 %v5548, %v5547
        %v5578 = vpack.c.b16 %v5550, %v5549
        %v5579 = vpack.c.b16 %v5552, %v5551
        %v5580 = vpack.c.b16 %v5554, %v5553
        %v5581 = vpack.c.b16 %v5556, %v5555
        %v5582 = vpack.c.b16 %v5558, %v5557
        %v5583 = vpack.c.b16 %v5560, %v5559
        %v5584 = vpack.c.b16 %v5562, %v5561
        %v5585 = vpack.c.b16 %v5564, %v5563
        %v5586 = vpack.c.b16 %v5566, %v5565
        %v5587 = vpack.c.b16 %v5568, %v5567
        %v5588 = vpack.c.b16 %v5570, %v5569
        %v5589 = vpack.c.b16 %v5572, %v5571
        %v5590 = vpack.c.b16 %v5574, %v5573
        %5591 = vrot.lane.b32.xlu0 %v5575, 32
        %v5592 = vpop.permute.xlu0 %5591
        %5593 = vrot.lane.b32.xlu0 %v5576, 32
        %v5594 = vpop.permute.xlu0 %5593
        %5595 = vrot.lane.b32.xlu0 %v5577, 32
        %v5596 = vpop.permute.xlu0 %5595
        %5597 = vrot.lane.b32.xlu0 %v5578, 32
        %v5598 = vpop.permute.xlu0 %5597
        %5599 = vrot.lane.b32.xlu0 %v5579, 32
        %v5600 = vpop.permute.xlu0 %5599
        %5601 = vrot.lane.b32.xlu0 %v5580, 32
        %v5602 = vpop.permute.xlu0 %5601
        %5603 = vrot.lane.b32.xlu0 %v5581, 32
        %v5604 = vpop.permute.xlu0 %5603
        %5605 = vrot.lane.b32.xlu0 %v5582, 32
        %v5606 = vpop.permute.xlu0 %5605
        %5607 = vrot.lane.b32.xlu0 %v5583, 32
        %v5608 = vpop.permute.xlu0 %5607
        %5609 = vrot.lane.b32.xlu0 %v5584, 32
        %v5610 = vpop.permute.xlu0 %5609
        %5611 = vrot.lane.b32.xlu0 %v5585, 32
        %v5612 = vpop.permute.xlu0 %5611
        %5613 = vrot.lane.b32.xlu0 %v5586, 32
        %v5614 = vpop.permute.xlu0 %5613
        %5615 = vrot.lane.b32.xlu0 %v5587, 32
        %v5616 = vpop.permute.xlu0 %5615
        %5617 = vrot.lane.b32.xlu0 %v5588, 32
        %v5618 = vpop.permute.xlu0 %5617
        %5619 = vrot.lane.b32.xlu0 %v5589, 32
        %v5620 = vpop.permute.xlu0 %5619
        %5621 = vrot.lane.b32.xlu0 %v5590, 32
        %v5622 = vpop.permute.xlu0 %5621
        %v5655 = vunpack.c.l.b16 %v4419
        %v5656 = vunpack.c.l.b16 %v4420
        %v5657 = vunpack.c.l.b16 %v4421
        %v5658 = vunpack.c.l.b16 %v4422
        %v5659 = vunpack.c.l.b16 %v4423
        %v5660 = vunpack.c.l.b16 %v4424
        %v5661 = vunpack.c.l.b16 %v4425
        %v5662 = vunpack.c.l.b16 %v4426
        %v5663 = vunpack.c.l.b16 %v4427
        %v5664 = vunpack.c.l.b16 %v4428
        %v5665 = vunpack.c.l.b16 %v4429
        %v5666 = vunpack.c.l.b16 %v4430
        %v5667 = vunpack.c.l.b16 %v4431
        %v5668 = vunpack.c.l.b16 %v4432
        %v5669 = vunpack.c.l.b16 %v4433
        %v5670 = vunpack.c.l.b16 %v4434
        %v5671 = vunpack.c.l.b16 %v4435
        %v5672 = vunpack.c.l.b16 %v4436
        %v5673 = vunpack.c.l.b16 %v4437
        %v5674 = vunpack.c.l.b16 %v4438
        %v5675 = vunpack.c.l.b16 %v4439
        %v5676 = vunpack.c.l.b16 %v4440
        %v5677 = vunpack.c.l.b16 %v4441
        %v5678 = vunpack.c.l.b16 %v4442
        %v5679 = vunpack.c.l.b16 %v4443
        %v5680 = vunpack.c.l.b16 %v4444
        %v5681 = vunpack.c.l.b16 %v4445
        %v5682 = vunpack.c.l.b16 %v4446
        %v5683 = vunpack.c.l.b16 %v4447
        %v5684 = vunpack.c.l.b16 %v4448
        %v5685 = vunpack.c.l.b16 %v4449
        %v5686 = vunpack.c.l.b16 %v4450
        %v5687 = vpack.c.b16 %v5656, %v5655
        %v5688 = vpack.c.b16 %v5658, %v5657
        %v5689 = vpack.c.b16 %v5660, %v5659
        %v5690 = vpack.c.b16 %v5662, %v5661
        %v5691 = vpack.c.b16 %v5664, %v5663
        %v5692 = vpack.c.b16 %v5666, %v5665
        %v5693 = vpack.c.b16 %v5668, %v5667
        %v5694 = vpack.c.b16 %v5670, %v5669
        %v5695 = vpack.c.b16 %v5672, %v5671
        %v5696 = vpack.c.b16 %v5674, %v5673
        %v5697 = vpack.c.b16 %v5676, %v5675
        %v5698 = vpack.c.b16 %v5678, %v5677
        %v5699 = vpack.c.b16 %v5680, %v5679
        %v5700 = vpack.c.b16 %v5682, %v5681
        %v5701 = vpack.c.b16 %v5684, %v5683
        %v5702 = vpack.c.b16 %v5686, %v5685
        %5703 = vrot.lane.b32.xlu0 %v5687, 64
        %v5704 = vpop.permute.xlu0 %5703
        %5705 = vrot.lane.b32.xlu0 %v5688, 64
        %v5706 = vpop.permute.xlu0 %5705
        %5707 = vrot.lane.b32.xlu0 %v5689, 64
        %v5708 = vpop.permute.xlu0 %5707
        %5709 = vrot.lane.b32.xlu0 %v5690, 64
        %v5710 = vpop.permute.xlu0 %5709
        %5711 = vrot.lane.b32.xlu0 %v5691, 64
        %v5712 = vpop.permute.xlu0 %5711
        %5713 = vrot.lane.b32.xlu0 %v5692, 64
        %v5714 = vpop.permute.xlu0 %5713
        %5715 = vrot.lane.b32.xlu0 %v5693, 64
        %v5716 = vpop.permute.xlu0 %5715
        %5717 = vrot.lane.b32.xlu0 %v5694, 64
        %v5718 = vpop.permute.xlu0 %5717
        %5719 = vrot.lane.b32.xlu0 %v5695, 64
        %v5720 = vpop.permute.xlu0 %5719
        %5721 = vrot.lane.b32.xlu0 %v5696, 64
        %v5722 = vpop.permute.xlu0 %5721
        %5723 = vrot.lane.b32.xlu0 %v5697, 64
        %v5724 = vpop.permute.xlu0 %5723
        %5725 = vrot.lane.b32.xlu0 %v5698, 64
        %v5726 = vpop.permute.xlu0 %5725
        %5727 = vrot.lane.b32.xlu0 %v5699, 64
        %v5728 = vpop.permute.xlu0 %5727
        %5729 = vrot.lane.b32.xlu0 %v5700, 64
        %v5730 = vpop.permute.xlu0 %5729
        %5731 = vrot.lane.b32.xlu0 %v5701, 64
        %v5732 = vpop.permute.xlu0 %5731
        %5733 = vrot.lane.b32.xlu0 %v5702, 64
        %v5734 = vpop.permute.xlu0 %5733
        %v5767 = vunpack.c.l.b16 %v5399
        %v5768 = vunpack.c.l.b16 %v5400
        %v5769 = vunpack.c.l.b16 %v5401
        %v5770 = vunpack.c.l.b16 %v5402
        %v5771 = vunpack.c.l.b16 %v5403
        %v5772 = vunpack.c.l.b16 %v5404
        %v5773 = vunpack.c.l.b16 %v5405
        %v5774 = vunpack.c.l.b16 %v5406
        %v5775 = vunpack.c.l.b16 %v5407
        %v5776 = vunpack.c.l.b16 %v5408
        %v5777 = vunpack.c.l.b16 %v5409
        %v5778 = vunpack.c.l.b16 %v5410
        %v5779 = vunpack.c.l.b16 %v5411
        %v5780 = vunpack.c.l.b16 %v5412
        %v5781 = vunpack.c.l.b16 %v5413
        %v5782 = vunpack.c.l.b16 %v5414
        %v5783 = vunpack.c.l.b16 %v5415
        %v5784 = vunpack.c.l.b16 %v5416
        %v5785 = vunpack.c.l.b16 %v5417
        %v5786 = vunpack.c.l.b16 %v5418
        %v5787 = vunpack.c.l.b16 %v5419
        %v5788 = vunpack.c.l.b16 %v5420
        %v5789 = vunpack.c.l.b16 %v5421
        %v5790 = vunpack.c.l.b16 %v5422
        %v5791 = vunpack.c.l.b16 %v5423
        %v5792 = vunpack.c.l.b16 %v5424
        %v5793 = vunpack.c.l.b16 %v5425
        %v5794 = vunpack.c.l.b16 %v5426
        %v5795 = vunpack.c.l.b16 %v5427
        %v5796 = vunpack.c.l.b16 %v5428
        %v5797 = vunpack.c.l.b16 %v5429
        %v5798 = vunpack.c.l.b16 %v5430
        %v5799 = vpack.c.b16 %v5768, %v5767
        %v5800 = vpack.c.b16 %v5770, %v5769
        %v5801 = vpack.c.b16 %v5772, %v5771
        %v5802 = vpack.c.b16 %v5774, %v5773
        %v5803 = vpack.c.b16 %v5776, %v5775
        %v5804 = vpack.c.b16 %v5778, %v5777
        %v5805 = vpack.c.b16 %v5780, %v5779
        %v5806 = vpack.c.b16 %v5782, %v5781
        %v5807 = vpack.c.b16 %v5784, %v5783
        %v5808 = vpack.c.b16 %v5786, %v5785
        %v5809 = vpack.c.b16 %v5788, %v5787
        %v5810 = vpack.c.b16 %v5790, %v5789
        %v5811 = vpack.c.b16 %v5792, %v5791
        %v5812 = vpack.c.b16 %v5794, %v5793
        %v5813 = vpack.c.b16 %v5796, %v5795
        %v5814 = vpack.c.b16 %v5798, %v5797
        %5815 = vrot.lane.b32.xlu0 %v5799, 96
        %v5816 = vpop.permute.xlu0 %5815
        %5817 = vrot.lane.b32.xlu0 %v5800, 96
        %v5818 = vpop.permute.xlu0 %5817
        %5819 = vrot.lane.b32.xlu0 %v5801, 96
        %v5820 = vpop.permute.xlu0 %5819
        %5821 = vrot.lane.b32.xlu0 %v5802, 96
        %v5822 = vpop.permute.xlu0 %5821
        %5823 = vrot.lane.b32.xlu0 %v5803, 96
        %v5824 = vpop.permute.xlu0 %5823
        %5825 = vrot.lane.b32.xlu0 %v5804, 96
        %v5826 = vpop.permute.xlu0 %5825
        %5827 = vrot.lane.b32.xlu0 %v5805, 96
        %v5828 = vpop.permute.xlu0 %5827
        %5829 = vrot.lane.b32.xlu0 %v5806, 96
        %v5830 = vpop.permute.xlu0 %5829
        %5831 = vrot.lane.b32.xlu0 %v5807, 96
        %v5832 = vpop.permute.xlu0 %5831
        %5833 = vrot.lane.b32.xlu0 %v5808, 96
        %v5834 = vpop.permute.xlu0 %5833
        %5835 = vrot.lane.b32.xlu0 %v5809, 96
        %v5836 = vpop.permute.xlu0 %5835
        %5837 = vrot.lane.b32.xlu0 %v5810, 96
        %v5838 = vpop.permute.xlu0 %5837
        %5839 = vrot.lane.b32.xlu0 %v5811, 96
        %v5840 = vpop.permute.xlu0 %5839
        %5841 = vrot.lane.b32.xlu0 %v5812, 96
        %v5842 = vpop.permute.xlu0 %5841
        %5843 = vrot.lane.b32.xlu0 %v5813, 96
        %v5844 = vpop.permute.xlu0 %5843
        %5845 = vrot.lane.b32.xlu0 %v5814, 96
        %v5846 = vpop.permute.xlu0 %5845
        %v5849 = vsel %vm1446, %v5495, %v5592
        %v5852 = vsel %vm1446, %v5496, %v5594
        %v5855 = vsel %vm1446, %v5497, %v5596
        %v5858 = vsel %vm1446, %v5498, %v5598
        %v5861 = vsel %vm1446, %v5499, %v5600
        %v5864 = vsel %vm1446, %v5500, %v5602
        %v5867 = vsel %vm1446, %v5501, %v5604
        %v5870 = vsel %vm1446, %v5502, %v5606
        %v5873 = vsel %vm1446, %v5503, %v5608
        %v5876 = vsel %vm1446, %v5504, %v5610
        %v5879 = vsel %vm1446, %v5505, %v5612
        %v5882 = vsel %vm1446, %v5506, %v5614
        %v5885 = vsel %vm1446, %v5507, %v5616
        %v5888 = vsel %vm1446, %v5508, %v5618
        %v5891 = vsel %vm1446, %v5509, %v5620
        %v5894 = vsel %vm1446, %v5510, %v5622
        %vm5895 = vcmask 523264
        %v5897 = vsel %vm5895, %v5849, %v5704
        %v5899 = vsel %vm5895, %v5852, %v5706
        %v5901 = vsel %vm5895, %v5855, %v5708
        %v5903 = vsel %vm5895, %v5858, %v5710
        %v5905 = vsel %vm5895, %v5861, %v5712
        %v5907 = vsel %vm5895, %v5864, %v5714
        %v5909 = vsel %vm5895, %v5867, %v5716
        %v5911 = vsel %vm5895, %v5870, %v5718
        %v5913 = vsel %vm5895, %v5873, %v5720
        %v5915 = vsel %vm5895, %v5876, %v5722
        %v5917 = vsel %vm5895, %v5879, %v5724
        %v5919 = vsel %vm5895, %v5882, %v5726
        %v5921 = vsel %vm5895, %v5885, %v5728
        %v5923 = vsel %vm5895, %v5888, %v5730
        %v5925 = vsel %vm5895, %v5891, %v5732
        %v5927 = vsel %vm5895, %v5894, %v5734
        %vm5928 = vcmask 785408
        %v5930 = vsel %vm5928, %v5897, %v5816
        %v5933 = vsel %vm5928, %v5899, %v5818
        %v5936 = vsel %vm5928, %v5901, %v5820
        %v5939 = vsel %vm5928, %v5903, %v5822
        %v5942 = vsel %vm5928, %v5905, %v5824
        %v5945 = vsel %vm5928, %v5907, %v5826
        %v5948 = vsel %vm5928, %v5909, %v5828
        %v5951 = vsel %vm5928, %v5911, %v5830
        %v5954 = vsel %vm5928, %v5913, %v5832
        %v5957 = vsel %vm5928, %v5915, %v5834
        %v5960 = vsel %vm5928, %v5917, %v5836
        %v5963 = vsel %vm5928, %v5919, %v5838
        %v5966 = vsel %vm5928, %v5921, %v5840
        %v5969 = vsel %vm5928, %v5923, %v5842
        %v5972 = vsel %vm5928, %v5925, %v5844
        %v5975 = vsel %vm5928, %v5927, %v5846
        %v5977 = vld [vmem:[#allocation13] sm:$0xf]
        %v5978 = vld [vmem:[#allocation13 + $0x4] sm:$0xf]
        %v5979 = vld [vmem:[#allocation13 + $0x8] sm:$0xf]
        %v5980 = vld [vmem:[#allocation13 + $0xc] sm:$0xf]
        %v5981 = vld [vmem:[#allocation13 + $0x10] sm:$0xf]
        %v5982 = vld [vmem:[#allocation13 + $0x14] sm:$0xf]
        %v5983 = vld [vmem:[#allocation13 + $0x18] sm:$0xf]
        %v5984 = vld [vmem:[#allocation13 + $0x1c] sm:$0xf]
        %v5985 = vld [vmem:[#allocation13 + $0x20] sm:$0xf]
        %v5986 = vld [vmem:[#allocation13 + $0x24] sm:$0xf]
        %v5987 = vld [vmem:[#allocation13 + $0x28] sm:$0xf]
        %v5988 = vld [vmem:[#allocation13 + $0x2c] sm:$0xf]
        %v5989 = vld [vmem:[#allocation13 + $0x30] sm:$0xf]
        %v5990 = vld [vmem:[#allocation13 + $0x34] sm:$0xf]
        %v5991 = vld [vmem:[#allocation13 + $0x38] sm:$0xf]
        %v5992 = vld [vmem:[#allocation13 + $0x3c] sm:$0xf]
        %v6009 = vunpack.c.l.b16 %v5977
        %v6010 = vunpack.c.l.b16 %v5978
        %v6011 = vunpack.c.l.b16 %v5979
        %v6012 = vunpack.c.l.b16 %v5980
        %v6013 = vunpack.c.l.b16 %v5981
        %v6014 = vunpack.c.l.b16 %v5982
        %v6015 = vunpack.c.l.b16 %v5983
        %v6016 = vunpack.c.l.b16 %v5984
        %v6017 = vunpack.c.l.b16 %v5985
        %v6018 = vunpack.c.l.b16 %v5986
        %v6019 = vunpack.c.l.b16 %v5987
        %v6020 = vunpack.c.l.b16 %v5988
        %v6021 = vunpack.c.l.b16 %v5989
        %v6022 = vunpack.c.l.b16 %v5990
        %v6023 = vunpack.c.l.b16 %v5991
        %v6024 = vunpack.c.l.b16 %v5992
        %v6025 = vpack.c.b16 %v6010, %v6009
        %v6026 = vpack.c.b16 %v6012, %v6011
        %v6027 = vpack.c.b16 %v6014, %v6013
        %v6028 = vpack.c.b16 %v6016, %v6015
        %v6029 = vpack.c.b16 %v6018, %v6017
        %v6030 = vpack.c.b16 %v6020, %v6019
        %v6031 = vpack.c.b16 %v6022, %v6021
        %v6032 = vpack.c.b16 %v6024, %v6023
        %6041 = vmatpush.bf16.msra.mxu0 %v6032
        %6042 = vmatpush.bf16.msra.mxu0 %v6031
        %6043 = vmatpush.bf16.msra.mxu0 %v6030
        %6044 = vmatpush.bf16.msra.mxu0 %v6029
        %6045 = vmatpush.bf16.msra.mxu0 %v6028
        %6046 = vmatpush.bf16.msra.mxu0 %v6027
        %6047 = vmatpush.bf16.msra.mxu0 %v6026
        %6048 = vmatpush.bf16.msra.mxu0 %v6025
        %6049 = vmatmul.bf16.gmra.mxu0 %v5930
        %v6050 = vpop.f32.mrf.mxu0
        %v6051 = vadd.f32 %v507, %v6050
        %v6052 = vpop.f32.mrf.mxu0
        %v6053 = vadd.f32 %v508, %v6052
        %6054 = vmatmul.bf16.gmra.mxu0 %v5933
        %v6055 = vpop.f32.mrf.mxu0
        %v6056 = vadd.f32 %v509, %v6055
        %v6057 = vpop.f32.mrf.mxu0
        %v6058 = vadd.f32 %v510, %v6057
        %6059 = vmatmul.bf16.gmra.mxu0 %v5936
        %v6060 = vpop.f32.mrf.mxu0
        %v6061 = vadd.f32 %v511, %v6060
        %v6062 = vpop.f32.mrf.mxu0
        %v6063 = vadd.f32 %v512, %v6062
        %6064 = vmatmul.bf16.gmra.mxu0 %v5939
        %v6065 = vpop.f32.mrf.mxu0
        %v6066 = vadd.f32 %v513, %v6065
        %v6067 = vpop.f32.mrf.mxu0
        %v6068 = vadd.f32 %v514, %v6067
        %6069 = vmatmul.bf16.gmra.mxu0 %v5942
        %v6070 = vpop.f32.mrf.mxu0
        %v6071 = vadd.f32 %v515, %v6070
        %v6072 = vpop.f32.mrf.mxu0
        %v6073 = vadd.f32 %v516, %v6072
        %6074 = vmatmul.bf16.gmra.mxu0 %v5945
        %v6075 = vpop.f32.mrf.mxu0
        %v6076 = vadd.f32 %v517, %v6075
        %v6077 = vpop.f32.mrf.mxu0
        %v6078 = vadd.f32 %v518, %v6077
        %6079 = vmatmul.bf16.gmra.mxu0 %v5948
        %v6080 = vpop.f32.mrf.mxu0
        %v6081 = vadd.f32 %v519, %v6080
        %v6082 = vpop.f32.mrf.mxu0
        %v6083 = vadd.f32 %v520, %v6082
        %6084 = vmatmul.bf16.gmra.mxu0 %v5951
        %v6085 = vpop.f32.mrf.mxu0
        %v6086 = vadd.f32 %v521, %v6085
        %v6087 = vpop.f32.mrf.mxu0
        %v6088 = vadd.f32 %v522, %v6087
        %6089 = vmatmul.bf16.gmra.mxu0 %v5954
        %v6090 = vpop.f32.mrf.mxu0
        %v6091 = vadd.f32 %v523, %v6090
        %v6092 = vpop.f32.mrf.mxu0
        %v6093 = vadd.f32 %v524, %v6092
        %6094 = vmatmul.bf16.gmra.mxu0 %v5957
        %v6095 = vpop.f32.mrf.mxu0
        %v6096 = vadd.f32 %v525, %v6095
        %v6097 = vpop.f32.mrf.mxu0
        %v6098 = vadd.f32 %v526, %v6097
        %6099 = vmatmul.bf16.gmra.mxu0 %v5960
        %v6100 = vpop.f32.mrf.mxu0
        %v6101 = vadd.f32 %v527, %v6100
        %v6102 = vpop.f32.mrf.mxu0
        %v6103 = vadd.f32 %v528, %v6102
        %6104 = vmatmul.bf16.gmra.mxu0 %v5963
        %v6105 = vpop.f32.mrf.mxu0
        %v6106 = vadd.f32 %v529, %v6105
        %v6107 = vpop.f32.mrf.mxu0
        %v6108 = vadd.f32 %v530, %v6107
        %6109 = vmatmul.bf16.gmra.mxu0 %v5966
        %v6110 = vpop.f32.mrf.mxu0
        %v6111 = vadd.f32 %v531, %v6110
        %v6112 = vpop.f32.mrf.mxu0
        %v6113 = vadd.f32 %v532, %v6112
        %6114 = vmatmul.bf16.gmra.mxu0 %v5969
        %v6115 = vpop.f32.mrf.mxu0
        %v6116 = vadd.f32 %v533, %v6115
        %v6117 = vpop.f32.mrf.mxu0
        %v6118 = vadd.f32 %v534, %v6117
        %6119 = vmatmul.bf16.gmra.mxu0 %v5972
        %v6120 = vpop.f32.mrf.mxu0
        %v6121 = vadd.f32 %v535, %v6120
        %v6122 = vpop.f32.mrf.mxu0
        %v6123 = vadd.f32 %v536, %v6122
        %6124 = vmatmul.bf16.gmra.mxu0 %v5975
        %v6125 = vpop.f32.mrf.mxu0
        %v6126 = vadd.f32 %v537, %v6125
        %v6127 = vpop.f32.mrf.mxu0
        %v6128 = vadd.f32 %v538, %v6127
        %6129 = vdwg.mxu0
        %6130 = vadd.xlane.f32.xlu0 %v6051
        %v6131 = vpop.xlane.xlu0 %6130
        %6132 = vadd.xlane.f32.xlu0 %v6053
        %v6133 = vpop.xlane.xlu0 %6132
        %6134 = vadd.xlane.f32.xlu0 %v6056
        %v6135 = vpop.xlane.xlu0 %6134
        %6136 = vadd.xlane.f32.xlu0 %v6058
        %v6137 = vpop.xlane.xlu0 %6136
        %6138 = vadd.xlane.f32.xlu0 %v6061
        %v6139 = vpop.xlane.xlu0 %6138
        %6140 = vadd.xlane.f32.xlu0 %v6063
        %v6141 = vpop.xlane.xlu0 %6140
        %6142 = vadd.xlane.f32.xlu0 %v6066
        %v6143 = vpop.xlane.xlu0 %6142
        %6144 = vadd.xlane.f32.xlu0 %v6068
        %v6145 = vpop.xlane.xlu0 %6144
        %6146 = vadd.xlane.f32.xlu0 %v6071
        %v6147 = vpop.xlane.xlu0 %6146
        %6148 = vadd.xlane.f32.xlu0 %v6073
        %v6149 = vpop.xlane.xlu0 %6148
        %6150 = vadd.xlane.f32.xlu0 %v6076
        %v6151 = vpop.xlane.xlu0 %6150
        %6152 = vadd.xlane.f32.xlu0 %v6078
        %v6153 = vpop.xlane.xlu0 %6152
        %6154 = vadd.xlane.f32.xlu0 %v6081
        %v6155 = vpop.xlane.xlu0 %6154
        %6156 = vadd.xlane.f32.xlu0 %v6083
        %v6157 = vpop.xlane.xlu0 %6156
        %6158 = vadd.xlane.f32.xlu0 %v6086
        %v6159 = vpop.xlane.xlu0 %6158
        %6160 = vadd.xlane.f32.xlu0 %v6088
        %v6161 = vpop.xlane.xlu0 %6160
        %6162 = vadd.xlane.f32.xlu0 %v6091
        %v6163 = vpop.xlane.xlu0 %6162
        %6164 = vadd.xlane.f32.xlu0 %v6093
        %v6165 = vpop.xlane.xlu0 %6164
        %6166 = vadd.xlane.f32.xlu0 %v6096
        %v6167 = vpop.xlane.xlu0 %6166
        %6168 = vadd.xlane.f32.xlu0 %v6098
        %v6169 = vpop.xlane.xlu0 %6168
        %6170 = vadd.xlane.f32.xlu0 %v6101
        %v6171 = vpop.xlane.xlu0 %6170
        %6172 = vadd.xlane.f32.xlu0 %v6103
        %v6173 = vpop.xlane.xlu0 %6172
        %6174 = vadd.xlane.f32.xlu0 %v6106
        %v6175 = vpop.xlane.xlu0 %6174
        %6176 = vadd.xlane.f32.xlu0 %v6108
        %v6177 = vpop.xlane.xlu0 %6176
        %6178 = vadd.xlane.f32.xlu0 %v6111
        %v6179 = vpop.xlane.xlu0 %6178
        %6180 = vadd.xlane.f32.xlu0 %v6113
        %v6181 = vpop.xlane.xlu0 %6180
        %6182 = vadd.xlane.f32.xlu0 %v6116
        %v6183 = vpop.xlane.xlu0 %6182
        %6184 = vadd.xlane.f32.xlu0 %v6118
        %v6185 = vpop.xlane.xlu0 %6184
        %6186 = vadd.xlane.f32.xlu0 %v6121
        %v6187 = vpop.xlane.xlu0 %6186
        %6188 = vadd.xlane.f32.xlu0 %v6123
        %v6189 = vpop.xlane.xlu0 %6188
        %6190 = vadd.xlane.f32.xlu0 %v6126
        %v6191 = vpop.xlane.xlu0 %6190
        %6192 = vadd.xlane.f32.xlu0 %v6128
        %v6193 = vpop.xlane.xlu0 %6192
        %v6194 = vrcp.pop 128.0
        %v6195 = vmul.f32 128.0, %v6194
        %v6196 = vsub.f32 1.0, %v6195
        %v6197 = vmul.f32 %v6194, %v6196
        %v6198 = vadd.f32 %v6194, %v6197
        %vm6199 = vweird.f32 %v6194
        %v6200 = vsel %vm6199, %v6194, %v6198
        %v6201 = vmul.f32 %v6131, %v6200
        %v6202 = vmul.f32 %v6133, %v6200
        %v6203 = vmul.f32 %v6135, %v6200
        %v6204 = vmul.f32 %v6137, %v6200
        %v6205 = vmul.f32 %v6139, %v6200
        %v6206 = vmul.f32 %v6141, %v6200
        %v6207 = vmul.f32 %v6143, %v6200
        %v6208 = vmul.f32 %v6145, %v6200
        %v6209 = vmul.f32 %v6147, %v6200
        %v6210 = vmul.f32 %v6149, %v6200
        %v6211 = vmul.f32 %v6151, %v6200
        %v6212 = vmul.f32 %v6153, %v6200
        %v6213 = vmul.f32 %v6155, %v6200
        %v6214 = vmul.f32 %v6157, %v6200
        %v6215 = vmul.f32 %v6159, %v6200
        %v6216 = vmul.f32 %v6161, %v6200
        %v6217 = vmul.f32 %v6163, %v6200
        %v6218 = vmul.f32 %v6165, %v6200
        %v6219 = vmul.f32 %v6167, %v6200
        %v6220 = vmul.f32 %v6169, %v6200
        %v6221 = vmul.f32 %v6171, %v6200
        %v6222 = vmul.f32 %v6173, %v6200
        %v6223 = vmul.f32 %v6175, %v6200
        %v6224 = vmul.f32 %v6177, %v6200
        %v6225 = vmul.f32 %v6179, %v6200
        %v6226 = vmul.f32 %v6181, %v6200
        %v6227 = vmul.f32 %v6183, %v6200
        %v6228 = vmul.f32 %v6185, %v6200
        %v6229 = vmul.f32 %v6187, %v6200
        %v6230 = vmul.f32 %v6189, %v6200
        %v6231 = vmul.f32 %v6191, %v6200
        %v6232 = vmul.f32 %v6193, %v6200
        %v6233 = vsub.f32 %v6051, %v6201
        %v6234 = vsub.f32 %v6053, %v6202
        %v6235 = vsub.f32 %v6056, %v6203
        %v6236 = vsub.f32 %v6058, %v6204
        %v6237 = vsub.f32 %v6061, %v6205
        %v6238 = vsub.f32 %v6063, %v6206
        %v6239 = vsub.f32 %v6066, %v6207
        %v6240 = vsub.f32 %v6068, %v6208
        %v6241 = vsub.f32 %v6071, %v6209
        %v6242 = vsub.f32 %v6073, %v6210
        %v6243 = vsub.f32 %v6076, %v6211
        %v6244 = vsub.f32 %v6078, %v6212
        %v6245 = vsub.f32 %v6081, %v6213
        %v6246 = vsub.f32 %v6083, %v6214
        %v6247 = vsub.f32 %v6086, %v6215
        %v6248 = vsub.f32 %v6088, %v6216
        %v6249 = vsub.f32 %v6091, %v6217
        %v6250 = vsub.f32 %v6093, %v6218
        %v6251 = vsub.f32 %v6096, %v6219
        %v6252 = vsub.f32 %v6098, %v6220
        %v6253 = vsub.f32 %v6101, %v6221
        %v6254 = vsub.f32 %v6103, %v6222
        %v6255 = vsub.f32 %v6106, %v6223
        %v6256 = vsub.f32 %v6108, %v6224
        %v6257 = vsub.f32 %v6111, %v6225
        %v6258 = vsub.f32 %v6113, %v6226
        %v6259 = vsub.f32 %v6116, %v6227
        %v6260 = vsub.f32 %v6118, %v6228
        %v6261 = vsub.f32 %v6121, %v6229
        %v6262 = vsub.f32 %v6123, %v6230
        %v6263 = vsub.f32 %v6126, %v6231
        %v6264 = vsub.f32 %v6128, %v6232
        %v6265 = vmul.f32 %v6233, %v6233
        %v6266 = vmul.f32 %v6234, %v6234
        %v6267 = vmul.f32 %v6235, %v6235
        %v6268 = vmul.f32 %v6236, %v6236
        %v6269 = vmul.f32 %v6237, %v6237
        %v6270 = vmul.f32 %v6238, %v6238
        %v6271 = vmul.f32 %v6239, %v6239
        %v6272 = vmul.f32 %v6240, %v6240
        %v6273 = vmul.f32 %v6241, %v6241
        %v6274 = vmul.f32 %v6242, %v6242
        %v6275 = vmul.f32 %v6243, %v6243
        %v6276 = vmul.f32 %v6244, %v6244
        %v6277 = vmul.f32 %v6245, %v6245
        %v6278 = vmul.f32 %v6246, %v6246
        %v6279 = vmul.f32 %v6247, %v6247
        %v6280 = vmul.f32 %v6248, %v6248
        %v6281 = vmul.f32 %v6249, %v6249
        %v6282 = vmul.f32 %v6250, %v6250
        %v6283 = vmul.f32 %v6251, %v6251
        %v6284 = vmul.f32 %v6252, %v6252
        %v6285 = vmul.f32 %v6253, %v6253
        %v6286 = vmul.f32 %v6254, %v6254
        %v6287 = vmul.f32 %v6255, %v6255
        %v6288 = vmul.f32 %v6256, %v6256
        %v6289 = vmul.f32 %v6257, %v6257
        %v6290 = vmul.f32 %v6258, %v6258
        %v6291 = vmul.f32 %v6259, %v6259
        %v6292 = vmul.f32 %v6260, %v6260
        %v6293 = vmul.f32 %v6261, %v6261
        %v6294 = vmul.f32 %v6262, %v6262
        %v6295 = vmul.f32 %v6263, %v6263
        %v6296 = vmul.f32 %v6264, %v6264
        %6297 = vadd.xlane.f32.xlu0 %v6265
        %v6298 = vpop.xlane.xlu0 %6297
        %6299 = vadd.xlane.f32.xlu0 %v6266
        %v6300 = vpop.xlane.xlu0 %6299
        %6301 = vadd.xlane.f32.xlu0 %v6267
        %v6302 = vpop.xlane.xlu0 %6301
        %6303 = vadd.xlane.f32.xlu0 %v6268
        %v6304 = vpop.xlane.xlu0 %6303
        %6305 = vadd.xlane.f32.xlu0 %v6269
        %v6306 = vpop.xlane.xlu0 %6305
        %6307 = vadd.xlane.f32.xlu0 %v6270
        %v6308 = vpop.xlane.xlu0 %6307
        %6309 = vadd.xlane.f32.xlu0 %v6271
        %v6310 = vpop.xlane.xlu0 %6309
        %6311 = vadd.xlane.f32.xlu0 %v6272
        %v6312 = vpop.xlane.xlu0 %6311
        %6313 = vadd.xlane.f32.xlu0 %v6273
        %v6314 = vpop.xlane.xlu0 %6313
        %6315 = vadd.xlane.f32.xlu0 %v6274
        %v6316 = vpop.xlane.xlu0 %6315
        %6317 = vadd.xlane.f32.xlu0 %v6275
        %v6318 = vpop.xlane.xlu0 %6317
        %6319 = vadd.xlane.f32.xlu0 %v6276
        %v6320 = vpop.xlane.xlu0 %6319
        %6321 = vadd.xlane.f32.xlu0 %v6277
        %v6322 = vpop.xlane.xlu0 %6321
        %6323 = vadd.xlane.f32.xlu0 %v6278
        %v6324 = vpop.xlane.xlu0 %6323
        %6325 = vadd.xlane.f32.xlu0 %v6279
        %v6326 = vpop.xlane.xlu0 %6325
        %6327 = vadd.xlane.f32.xlu0 %v6280
        %v6328 = vpop.xlane.xlu0 %6327
        %6329 = vadd.xlane.f32.xlu0 %v6281
        %v6330 = vpop.xlane.xlu0 %6329
        %6331 = vadd.xlane.f32.xlu0 %v6282
        %v6332 = vpop.xlane.xlu0 %6331
        %6333 = vadd.xlane.f32.xlu0 %v6283
        %v6334 = vpop.xlane.xlu0 %6333
        %6335 = vadd.xlane.f32.xlu0 %v6284
        %v6336 = vpop.xlane.xlu0 %6335
        %6337 = vadd.xlane.f32.xlu0 %v6285
        %v6338 = vpop.xlane.xlu0 %6337
        %6339 = vadd.xlane.f32.xlu0 %v6286
        %v6340 = vpop.xlane.xlu0 %6339
        %6341 = vadd.xlane.f32.xlu0 %v6287
        %v6342 = vpop.xlane.xlu0 %6341
        %6343 = vadd.xlane.f32.xlu0 %v6288
        %v6344 = vpop.xlane.xlu0 %6343
        %6345 = vadd.xlane.f32.xlu0 %v6289
        %v6346 = vpop.xlane.xlu0 %6345
        %6347 = vadd.xlane.f32.xlu0 %v6290
        %v6348 = vpop.xlane.xlu0 %6347
        %6349 = vadd.xlane.f32.xlu0 %v6291
        %v6350 = vpop.xlane.xlu0 %6349
        %6351 = vadd.xlane.f32.xlu0 %v6292
        %v6352 = vpop.xlane.xlu0 %6351
        %6353 = vadd.xlane.f32.xlu0 %v6293
        %v6354 = vpop.xlane.xlu0 %6353
        %6355 = vadd.xlane.f32.xlu0 %v6294
        %v6356 = vpop.xlane.xlu0 %6355
        %6357 = vadd.xlane.f32.xlu0 %v6295
        %v6358 = vpop.xlane.xlu0 %6357
        %6359 = vadd.xlane.f32.xlu0 %v6296
        %v6360 = vpop.xlane.xlu0 %6359
        %v6361 = vmul.f32 %v6298, %v6200
        %v6362 = vmul.f32 %v6300, %v6200
        %v6363 = vmul.f32 %v6302, %v6200
        %v6364 = vmul.f32 %v6304, %v6200
        %v6365 = vmul.f32 %v6306, %v6200
        %v6366 = vmul.f32 %v6308, %v6200
        %v6367 = vmul.f32 %v6310, %v6200
        %v6368 = vmul.f32 %v6312, %v6200
        %v6369 = vmul.f32 %v6314, %v6200
        %v6370 = vmul.f32 %v6316, %v6200
        %v6371 = vmul.f32 %v6318, %v6200
        %v6372 = vmul.f32 %v6320, %v6200
        %v6373 = vmul.f32 %v6322, %v6200
        %v6374 = vmul.f32 %v6324, %v6200
        %v6375 = vmul.f32 %v6326, %v6200
        %v6376 = vmul.f32 %v6328, %v6200
        %v6377 = vmul.f32 %v6330, %v6200
        %v6378 = vmul.f32 %v6332, %v6200
        %v6379 = vmul.f32 %v6334, %v6200
        %v6380 = vmul.f32 %v6336, %v6200
        %v6381 = vmul.f32 %v6338, %v6200
        %v6382 = vmul.f32 %v6340, %v6200
        %v6383 = vmul.f32 %v6342, %v6200
        %v6384 = vmul.f32 %v6344, %v6200
        %v6385 = vmul.f32 %v6346, %v6200
        %v6386 = vmul.f32 %v6348, %v6200
        %v6387 = vmul.f32 %v6350, %v6200
        %v6388 = vmul.f32 %v6352, %v6200
        %v6389 = vmul.f32 %v6354, %v6200
        %v6390 = vmul.f32 %v6356, %v6200
        %v6391 = vmul.f32 %v6358, %v6200
        %v6392 = vmul.f32 %v6360, %v6200
        %v6393 = vadd.f32 %v6361, 1e-06
        %v6394 = vadd.f32 %v6362, 1e-06
        %v6395 = vadd.f32 %v6363, 1e-06
        %v6396 = vadd.f32 %v6364, 1e-06
        %v6397 = vadd.f32 %v6365, 1e-06
        %v6398 = vadd.f32 %v6366, 1e-06
        %v6399 = vadd.f32 %v6367, 1e-06
        %v6400 = vadd.f32 %v6368, 1e-06
        %v6401 = vadd.f32 %v6369, 1e-06
        %v6402 = vadd.f32 %v6370, 1e-06
        %v6403 = vadd.f32 %v6371, 1e-06
        %v6404 = vadd.f32 %v6372, 1e-06
        %v6405 = vadd.f32 %v6373, 1e-06
        %v6406 = vadd.f32 %v6374, 1e-06
        %v6407 = vadd.f32 %v6375, 1e-06
        %v6408 = vadd.f32 %v6376, 1e-06
        %v6409 = vadd.f32 %v6377, 1e-06
        %v6410 = vadd.f32 %v6378, 1e-06
        %v6411 = vadd.f32 %v6379, 1e-06
        %v6412 = vadd.f32 %v6380, 1e-06
        %v6413 = vadd.f32 %v6381, 1e-06
        %v6414 = vadd.f32 %v6382, 1e-06
        %v6415 = vadd.f32 %v6383, 1e-06
        %v6416 = vadd.f32 %v6384, 1e-06
        %v6417 = vadd.f32 %v6385, 1e-06
        %v6418 = vadd.f32 %v6386, 1e-06
        %v6419 = vadd.f32 %v6387, 1e-06
        %v6420 = vadd.f32 %v6388, 1e-06
        %v6421 = vadd.f32 %v6389, 1e-06
        %v6422 = vadd.f32 %v6390, 1e-06
        %v6423 = vadd.f32 %v6391, 1e-06
        %v6424 = vadd.f32 %v6392, 1e-06
        %v6425 = vrsqrt.pop %v6393
        %v6426 = vmul.f32 %v6425, %v6393
        %v6427 = vmul.f32 %v6426, %v6425
        %v6428 = vmul.f32 0.5, %v6427
        %v6429 = vsub.f32 1.5, %v6428
        %v6430 = vmul.f32 %v6425, %v6429
        %vm6431 = vweird.f32 %v6393
        %vm6432 = vweird.f32 %v6425
        %vm6433 = vmor %vm6431, %vm6432
        %v6434 = vsel %vm6433, %v6425, %v6430
        %v6435 = vrsqrt.pop %v6394
        %v6436 = vmul.f32 %v6435, %v6394
        %v6437 = vmul.f32 %v6436, %v6435
        %v6438 = vmul.f32 0.5, %v6437
        %v6439 = vsub.f32 1.5, %v6438
        %v6440 = vmul.f32 %v6435, %v6439
        %vm6441 = vweird.f32 %v6394
        %vm6442 = vweird.f32 %v6435
        %vm6443 = vmor %vm6441, %vm6442
        %v6444 = vsel %vm6443, %v6435, %v6440
        %v6445 = vrsqrt.pop %v6395
        %v6446 = vmul.f32 %v6445, %v6395
        %v6447 = vmul.f32 %v6446, %v6445
        %v6448 = vmul.f32 0.5, %v6447
        %v6449 = vsub.f32 1.5, %v6448
        %v6450 = vmul.f32 %v6445, %v6449
        %vm6451 = vweird.f32 %v6395
        %vm6452 = vweird.f32 %v6445
        %vm6453 = vmor %vm6451, %vm6452
        %v6454 = vsel %vm6453, %v6445, %v6450
        %v6455 = vrsqrt.pop %v6396
        %v6456 = vmul.f32 %v6455, %v6396
        %v6457 = vmul.f32 %v6456, %v6455
        %v6458 = vmul.f32 0.5, %v6457
        %v6459 = vsub.f32 1.5, %v6458
        %v6460 = vmul.f32 %v6455, %v6459
        %vm6461 = vweird.f32 %v6396
        %vm6462 = vweird.f32 %v6455
        %vm6463 = vmor %vm6461, %vm6462
        %v6464 = vsel %vm6463, %v6455, %v6460
        %v6465 = vrsqrt.pop %v6397
        %v6466 = vmul.f32 %v6465, %v6397
        %v6467 = vmul.f32 %v6466, %v6465
        %v6468 = vmul.f32 0.5, %v6467
        %v6469 = vsub.f32 1.5, %v6468
        %v6470 = vmul.f32 %v6465, %v6469
        %vm6471 = vweird.f32 %v6397
        %vm6472 = vweird.f32 %v6465
        %vm6473 = vmor %vm6471, %vm6472
        %v6474 = vsel %vm6473, %v6465, %v6470
        %v6475 = vrsqrt.pop %v6398
        %v6476 = vmul.f32 %v6475, %v6398
        %v6477 = vmul.f32 %v6476, %v6475
        %v6478 = vmul.f32 0.5, %v6477
        %v6479 = vsub.f32 1.5, %v6478
        %v6480 = vmul.f32 %v6475, %v6479
        %vm6481 = vweird.f32 %v6398
        %vm6482 = vweird.f32 %v6475
        %vm6483 = vmor %vm6481, %vm6482
        %v6484 = vsel %vm6483, %v6475, %v6480
        %v6485 = vrsqrt.pop %v6399
        %v6486 = vmul.f32 %v6485, %v6399
        %v6487 = vmul.f32 %v6486, %v6485
        %v6488 = vmul.f32 0.5, %v6487
        %v6489 = vsub.f32 1.5, %v6488
        %v6490 = vmul.f32 %v6485, %v6489
        %vm6491 = vweird.f32 %v6399
        %vm6492 = vweird.f32 %v6485
        %vm6493 = vmor %vm6491, %vm6492
        %v6494 = vsel %vm6493, %v6485, %v6490
        %v6495 = vrsqrt.pop %v6400
        %v6496 = vmul.f32 %v6495, %v6400
        %v6497 = vmul.f32 %v6496, %v6495
        %v6498 = vmul.f32 0.5, %v6497
        %v6499 = vsub.f32 1.5, %v6498
        %v6500 = vmul.f32 %v6495, %v6499
        %vm6501 = vweird.f32 %v6400
        %vm6502 = vweird.f32 %v6495
        %vm6503 = vmor %vm6501, %vm6502
        %v6504 = vsel %vm6503, %v6495, %v6500
        %v6505 = vrsqrt.pop %v6401
        %v6506 = vmul.f32 %v6505, %v6401
        %v6507 = vmul.f32 %v6506, %v6505
        %v6508 = vmul.f32 0.5, %v6507
        %v6509 = vsub.f32 1.5, %v6508
        %v6510 = vmul.f32 %v6505, %v6509
        %vm6511 = vweird.f32 %v6401
        %vm6512 = vweird.f32 %v6505
        %vm6513 = vmor %vm6511, %vm6512
        %v6514 = vsel %vm6513, %v6505, %v6510
        %v6515 = vrsqrt.pop %v6402
        %v6516 = vmul.f32 %v6515, %v6402
        %v6517 = vmul.f32 %v6516, %v6515
        %v6518 = vmul.f32 0.5, %v6517
        %v6519 = vsub.f32 1.5, %v6518
        %v6520 = vmul.f32 %v6515, %v6519
        %vm6521 = vweird.f32 %v6402
        %vm6522 = vweird.f32 %v6515
        %vm6523 = vmor %vm6521, %vm6522
        %v6524 = vsel %vm6523, %v6515, %v6520
        %v6525 = vrsqrt.pop %v6403
        %v6526 = vmul.f32 %v6525, %v6403
        %v6527 = vmul.f32 %v6526, %v6525
        %v6528 = vmul.f32 0.5, %v6527
        %v6529 = vsub.f32 1.5, %v6528
        %v6530 = vmul.f32 %v6525, %v6529
        %vm6531 = vweird.f32 %v6403
        %vm6532 = vweird.f32 %v6525
        %vm6533 = vmor %vm6531, %vm6532
        %v6534 = vsel %vm6533, %v6525, %v6530
        %v6535 = vrsqrt.pop %v6404
        %v6536 = vmul.f32 %v6535, %v6404
        %v6537 = vmul.f32 %v6536, %v6535
        %v6538 = vmul.f32 0.5, %v6537
        %v6539 = vsub.f32 1.5, %v6538
        %v6540 = vmul.f32 %v6535, %v6539
        %vm6541 = vweird.f32 %v6404
        %vm6542 = vweird.f32 %v6535
        %vm6543 = vmor %vm6541, %vm6542
        %v6544 = vsel %vm6543, %v6535, %v6540
        %v6545 = vrsqrt.pop %v6405
        %v6546 = vmul.f32 %v6545, %v6405
        %v6547 = vmul.f32 %v6546, %v6545
        %v6548 = vmul.f32 0.5, %v6547
        %v6549 = vsub.f32 1.5, %v6548
        %v6550 = vmul.f32 %v6545, %v6549
        %vm6551 = vweird.f32 %v6405
        %vm6552 = vweird.f32 %v6545
        %vm6553 = vmor %vm6551, %vm6552
        %v6554 = vsel %vm6553, %v6545, %v6550
        %v6555 = vrsqrt.pop %v6406
        %v6556 = vmul.f32 %v6555, %v6406
        %v6557 = vmul.f32 %v6556, %v6555
        %v6558 = vmul.f32 0.5, %v6557
        %v6559 = vsub.f32 1.5, %v6558
        %v6560 = vmul.f32 %v6555, %v6559
        %vm6561 = vweird.f32 %v6406
        %vm6562 = vweird.f32 %v6555
        %vm6563 = vmor %vm6561, %vm6562
        %v6564 = vsel %vm6563, %v6555, %v6560
        %v6565 = vrsqrt.pop %v6407
        %v6566 = vmul.f32 %v6565, %v6407
        %v6567 = vmul.f32 %v6566, %v6565
        %v6568 = vmul.f32 0.5, %v6567
        %v6569 = vsub.f32 1.5, %v6568
        %v6570 = vmul.f32 %v6565, %v6569
        %vm6571 = vweird.f32 %v6407
        %vm6572 = vweird.f32 %v6565
        %vm6573 = vmor %vm6571, %vm6572
        %v6574 = vsel %vm6573, %v6565, %v6570
        %v6575 = vrsqrt.pop %v6408
        %v6576 = vmul.f32 %v6575, %v6408
        %v6577 = vmul.f32 %v6576, %v6575
        %v6578 = vmul.f32 0.5, %v6577
        %v6579 = vsub.f32 1.5, %v6578
        %v6580 = vmul.f32 %v6575, %v6579
        %vm6581 = vweird.f32 %v6408
        %vm6582 = vweird.f32 %v6575
        %vm6583 = vmor %vm6581, %vm6582
        %v6584 = vsel %vm6583, %v6575, %v6580
        %v6585 = vrsqrt.pop %v6409
        %v6586 = vmul.f32 %v6585, %v6409
        %v6587 = vmul.f32 %v6586, %v6585
        %v6588 = vmul.f32 0.5, %v6587
        %v6589 = vsub.f32 1.5, %v6588
        %v6590 = vmul.f32 %v6585, %v6589
        %vm6591 = vweird.f32 %v6409
        %vm6592 = vweird.f32 %v6585
        %vm6593 = vmor %vm6591, %vm6592
        %v6594 = vsel %vm6593, %v6585, %v6590
        %v6595 = vrsqrt.pop %v6410
        %v6596 = vmul.f32 %v6595, %v6410
        %v6597 = vmul.f32 %v6596, %v6595
        %v6598 = vmul.f32 0.5, %v6597
        %v6599 = vsub.f32 1.5, %v6598
        %v6600 = vmul.f32 %v6595, %v6599
        %vm6601 = vweird.f32 %v6410
        %vm6602 = vweird.f32 %v6595
        %vm6603 = vmor %vm6601, %vm6602
        %v6604 = vsel %vm6603, %v6595, %v6600
        %v6605 = vrsqrt.pop %v6411
        %v6606 = vmul.f32 %v6605, %v6411
        %v6607 = vmul.f32 %v6606, %v6605
        %v6608 = vmul.f32 0.5, %v6607
        %v6609 = vsub.f32 1.5, %v6608
        %v6610 = vmul.f32 %v6605, %v6609
        %vm6611 = vweird.f32 %v6411
        %vm6612 = vweird.f32 %v6605
        %vm6613 = vmor %vm6611, %vm6612
        %v6614 = vsel %vm6613, %v6605, %v6610
        %v6615 = vrsqrt.pop %v6412
        %v6616 = vmul.f32 %v6615, %v6412
        %v6617 = vmul.f32 %v6616, %v6615
        %v6618 = vmul.f32 0.5, %v6617
        %v6619 = vsub.f32 1.5, %v6618
        %v6620 = vmul.f32 %v6615, %v6619
        %vm6621 = vweird.f32 %v6412
        %vm6622 = vweird.f32 %v6615
        %vm6623 = vmor %vm6621, %vm6622
        %v6624 = vsel %vm6623, %v6615, %v6620
        %v6625 = vrsqrt.pop %v6413
        %v6626 = vmul.f32 %v6625, %v6413
        %v6627 = vmul.f32 %v6626, %v6625
        %v6628 = vmul.f32 0.5, %v6627
        %v6629 = vsub.f32 1.5, %v6628
        %v6630 = vmul.f32 %v6625, %v6629
        %vm6631 = vweird.f32 %v6413
        %vm6632 = vweird.f32 %v6625
        %vm6633 = vmor %vm6631, %vm6632
        %v6634 = vsel %vm6633, %v6625, %v6630
        %v6635 = vrsqrt.pop %v6414
        %v6636 = vmul.f32 %v6635, %v6414
        %v6637 = vmul.f32 %v6636, %v6635
        %v6638 = vmul.f32 0.5, %v6637
        %v6639 = vsub.f32 1.5, %v6638
        %v6640 = vmul.f32 %v6635, %v6639
        %vm6641 = vweird.f32 %v6414
        %vm6642 = vweird.f32 %v6635
        %vm6643 = vmor %vm6641, %vm6642
        %v6644 = vsel %vm6643, %v6635, %v6640
        %v6645 = vrsqrt.pop %v6415
        %v6646 = vmul.f32 %v6645, %v6415
        %v6647 = vmul.f32 %v6646, %v6645
        %v6648 = vmul.f32 0.5, %v6647
        %v6649 = vsub.f32 1.5, %v6648
        %v6650 = vmul.f32 %v6645, %v6649
        %vm6651 = vweird.f32 %v6415
        %vm6652 = vweird.f32 %v6645
        %vm6653 = vmor %vm6651, %vm6652
        %v6654 = vsel %vm6653, %v6645, %v6650
        %v6655 = vrsqrt.pop %v6416
        %v6656 = vmul.f32 %v6655, %v6416
        %v6657 = vmul.f32 %v6656, %v6655
        %v6658 = vmul.f32 0.5, %v6657
        %v6659 = vsub.f32 1.5, %v6658
        %v6660 = vmul.f32 %v6655, %v6659
        %vm6661 = vweird.f32 %v6416
        %vm6662 = vweird.f32 %v6655
        %vm6663 = vmor %vm6661, %vm6662
        %v6664 = vsel %vm6663, %v6655, %v6660
        %v6665 = vrsqrt.pop %v6417
        %v6666 = vmul.f32 %v6665, %v6417
        %v6667 = vmul.f32 %v6666, %v6665
        %v6668 = vmul.f32 0.5, %v6667
        %v6669 = vsub.f32 1.5, %v6668
        %v6670 = vmul.f32 %v6665, %v6669
        %vm6671 = vweird.f32 %v6417
        %vm6672 = vweird.f32 %v6665
        %vm6673 = vmor %vm6671, %vm6672
        %v6674 = vsel %vm6673, %v6665, %v6670
        %v6675 = vrsqrt.pop %v6418
        %v6676 = vmul.f32 %v6675, %v6418
        %v6677 = vmul.f32 %v6676, %v6675
        %v6678 = vmul.f32 0.5, %v6677
        %v6679 = vsub.f32 1.5, %v6678
        %v6680 = vmul.f32 %v6675, %v6679
        %vm6681 = vweird.f32 %v6418
        %vm6682 = vweird.f32 %v6675
        %vm6683 = vmor %vm6681, %vm6682
        %v6684 = vsel %vm6683, %v6675, %v6680
        %v6685 = vrsqrt.pop %v6419
        %v6686 = vmul.f32 %v6685, %v6419
        %v6687 = vmul.f32 %v6686, %v6685
        %v6688 = vmul.f32 0.5, %v6687
        %v6689 = vsub.f32 1.5, %v6688
        %v6690 = vmul.f32 %v6685, %v6689
        %vm6691 = vweird.f32 %v6419
        %vm6692 = vweird.f32 %v6685
        %vm6693 = vmor %vm6691, %vm6692
        %v6694 = vsel %vm6693, %v6685, %v6690
        %v6695 = vrsqrt.pop %v6420
        %v6696 = vmul.f32 %v6695, %v6420
        %v6697 = vmul.f32 %v6696, %v6695
        %v6698 = vmul.f32 0.5, %v6697
        %v6699 = vsub.f32 1.5, %v6698
        %v6700 = vmul.f32 %v6695, %v6699
        %vm6701 = vweird.f32 %v6420
        %vm6702 = vweird.f32 %v6695
        %vm6703 = vmor %vm6701, %vm6702
        %v6704 = vsel %vm6703, %v6695, %v6700
        %v6705 = vrsqrt.pop %v6421
        %v6706 = vmul.f32 %v6705, %v6421
        %v6707 = vmul.f32 %v6706, %v6705
        %v6708 = vmul.f32 0.5, %v6707
        %v6709 = vsub.f32 1.5, %v6708
        %v6710 = vmul.f32 %v6705, %v6709
        %vm6711 = vweird.f32 %v6421
        %vm6712 = vweird.f32 %v6705
        %vm6713 = vmor %vm6711, %vm6712
        %v6714 = vsel %vm6713, %v6705, %v6710
        %v6715 = vrsqrt.pop %v6422
        %v6716 = vmul.f32 %v6715, %v6422
        %v6717 = vmul.f32 %v6716, %v6715
        %v6718 = vmul.f32 0.5, %v6717
        %v6719 = vsub.f32 1.5, %v6718
        %v6720 = vmul.f32 %v6715, %v6719
        %vm6721 = vweird.f32 %v6422
        %vm6722 = vweird.f32 %v6715
        %vm6723 = vmor %vm6721, %vm6722
        %v6724 = vsel %vm6723, %v6715, %v6720
        %v6725 = vrsqrt.pop %v6423
        %v6726 = vmul.f32 %v6725, %v6423
        %v6727 = vmul.f32 %v6726, %v6725
        %v6728 = vmul.f32 0.5, %v6727
        %v6729 = vsub.f32 1.5, %v6728
        %v6730 = vmul.f32 %v6725, %v6729
        %vm6731 = vweird.f32 %v6423
        %vm6732 = vweird.f32 %v6725
        %vm6733 = vmor %vm6731, %vm6732
        %v6734 = vsel %vm6733, %v6725, %v6730
        %v6735 = vrsqrt.pop %v6424
        %v6736 = vmul.f32 %v6735, %v6424
        %v6737 = vmul.f32 %v6736, %v6735
        %v6738 = vmul.f32 0.5, %v6737
        %v6739 = vsub.f32 1.5, %v6738
        %v6740 = vmul.f32 %v6735, %v6739
        %vm6741 = vweird.f32 %v6424
        %vm6742 = vweird.f32 %v6735
        %vm6743 = vmor %vm6741, %vm6742
        %v6744 = vsel %vm6743, %v6735, %v6740
        %v6745 = vmul.f32 %v6233, %v6434
        %v6746 = vmul.f32 %v6234, %v6444
        %v6747 = vmul.f32 %v6235, %v6454
        %v6748 = vmul.f32 %v6236, %v6464
        %v6749 = vmul.f32 %v6237, %v6474
        %v6750 = vmul.f32 %v6238, %v6484
        %v6751 = vmul.f32 %v6239, %v6494
        %v6752 = vmul.f32 %v6240, %v6504
        %v6753 = vmul.f32 %v6241, %v6514
        %v6754 = vmul.f32 %v6242, %v6524
        %v6755 = vmul.f32 %v6243, %v6534
        %v6756 = vmul.f32 %v6244, %v6544
        %v6757 = vmul.f32 %v6245, %v6554
        %v6758 = vmul.f32 %v6246, %v6564
        %v6759 = vmul.f32 %v6247, %v6574
        %v6760 = vmul.f32 %v6248, %v6584
        %v6761 = vmul.f32 %v6249, %v6594
        %v6762 = vmul.f32 %v6250, %v6604
        %v6763 = vmul.f32 %v6251, %v6614
        %v6764 = vmul.f32 %v6252, %v6624
        %v6765 = vmul.f32 %v6253, %v6634
        %v6766 = vmul.f32 %v6254, %v6644
        %v6767 = vmul.f32 %v6255, %v6654
        %v6768 = vmul.f32 %v6256, %v6664
        %v6769 = vmul.f32 %v6257, %v6674
        %v6770 = vmul.f32 %v6258, %v6684
        %v6771 = vmul.f32 %v6259, %v6694
        %v6772 = vmul.f32 %v6260, %v6704
        %v6773 = vmul.f32 %v6261, %v6714
        %v6774 = vmul.f32 %v6262, %v6724
        %v6775 = vmul.f32 %v6263, %v6734
        %v6776 = vmul.f32 %v6264, %v6744
        %v6777 = vld [vmem:[%s7] sm:$0x1]
        %v6779 = vperm.slane %v6777, 0
        %v6781 = vmul.f32 %v6745, %v6779
        %v6782 = vmul.f32 %v6746, %v6779
        %v6783 = vmul.f32 %v6747, %v6779
        %v6784 = vmul.f32 %v6748, %v6779
        %v6785 = vmul.f32 %v6749, %v6779
        %v6786 = vmul.f32 %v6750, %v6779
        %v6787 = vmul.f32 %v6751, %v6779
        %v6788 = vmul.f32 %v6752, %v6779
        %v6789 = vmul.f32 %v6753, %v6779
        %v6790 = vmul.f32 %v6754, %v6779
        %v6791 = vmul.f32 %v6755, %v6779
        %v6792 = vmul.f32 %v6756, %v6779
        %v6793 = vmul.f32 %v6757, %v6779
        %v6794 = vmul.f32 %v6758, %v6779
        %v6795 = vmul.f32 %v6759, %v6779
        %v6796 = vmul.f32 %v6760, %v6779
        %v6797 = vmul.f32 %v6761, %v6779
        %v6798 = vmul.f32 %v6762, %v6779
        %v6799 = vmul.f32 %v6763, %v6779
        %v6800 = vmul.f32 %v6764, %v6779
        %v6801 = vmul.f32 %v6765, %v6779
        %v6802 = vmul.f32 %v6766, %v6779
        %v6803 = vmul.f32 %v6767, %v6779
        %v6804 = vmul.f32 %v6768, %v6779
        %v6805 = vmul.f32 %v6769, %v6779
        %v6806 = vmul.f32 %v6770, %v6779
        %v6807 = vmul.f32 %v6771, %v6779
        %v6808 = vmul.f32 %v6772, %v6779
        %v6809 = vmul.f32 %v6773, %v6779
        %v6810 = vmul.f32 %v6774, %v6779
        %v6811 = vmul.f32 %v6775, %v6779
        %v6812 = vmul.f32 %v6776, %v6779
        %v6813 = vld [vmem:[%s8] sm:$0x1]
        %v6815 = vperm.slane %v6813, 0
        %v6817 = vadd.f32 %v6781, %v6815
        %v6818 = vadd.f32 %v6782, %v6815
        %v6819 = vadd.f32 %v6783, %v6815
        %v6820 = vadd.f32 %v6784, %v6815
        %v6821 = vadd.f32 %v6785, %v6815
        %v6822 = vadd.f32 %v6786, %v6815
        %v6823 = vadd.f32 %v6787, %v6815
        %v6824 = vadd.f32 %v6788, %v6815
        %v6825 = vadd.f32 %v6789, %v6815
        %v6826 = vadd.f32 %v6790, %v6815
        %v6827 = vadd.f32 %v6791, %v6815
        %v6828 = vadd.f32 %v6792, %v6815
        %v6829 = vadd.f32 %v6793, %v6815
        %v6830 = vadd.f32 %v6794, %v6815
        %v6831 = vadd.f32 %v6795, %v6815
        %v6832 = vadd.f32 %v6796, %v6815
        %v6833 = vadd.f32 %v6797, %v6815
        %v6834 = vadd.f32 %v6798, %v6815
        %v6835 = vadd.f32 %v6799, %v6815
        %v6836 = vadd.f32 %v6800, %v6815
        %v6837 = vadd.f32 %v6801, %v6815
        %v6838 = vadd.f32 %v6802, %v6815
        %v6839 = vadd.f32 %v6803, %v6815
        %v6840 = vadd.f32 %v6804, %v6815
        %v6841 = vadd.f32 %v6805, %v6815
        %v6842 = vadd.f32 %v6806, %v6815
        %v6843 = vadd.f32 %v6807, %v6815
        %v6844 = vadd.f32 %v6808, %v6815
        %v6845 = vadd.f32 %v6809, %v6815
        %v6846 = vadd.f32 %v6810, %v6815
        %v6847 = vadd.f32 %v6811, %v6815
        %v6848 = vadd.f32 %v6812, %v6815
        %6849 = vst [vmem:[%s502] sm:$0xff] %v6817
        %6850 = vst [vmem:[%s502 + $0x8] sm:$0xff] %v6818
        %6851 = vst [vmem:[%s502 + $0x10] sm:$0xff] %v6819
        %6852 = vst [vmem:[%s502 + $0x18] sm:$0xff] %v6820
        %6853 = vst [vmem:[%s502 + $0x20] sm:$0xff] %v6821
        %6854 = vst [vmem:[%s502 + $0x28] sm:$0xff] %v6822
        %6855 = vst [vmem:[%s502 + $0x30] sm:$0xff] %v6823
        %6856 = vst [vmem:[%s502 + $0x38] sm:$0xff] %v6824
        %6857 = vst [vmem:[%s502 + $0x40] sm:$0xff] %v6825
        %6858 = vst [vmem:[%s502 + $0x48] sm:$0xff] %v6826
        %6859 = vst [vmem:[%s502 + $0x50] sm:$0xff] %v6827
        %6860 = vst [vmem:[%s502 + $0x58] sm:$0xff] %v6828
        %6861 = vst [vmem:[%s502 + $0x60] sm:$0xff] %v6829
        %6862 = vst [vmem:[%s502 + $0x68] sm:$0xff] %v6830
        %6863 = vst [vmem:[%s502 + $0x70] sm:$0xff] %v6831
        %6864 = vst [vmem:[%s502 + $0x78] sm:$0xff] %v6832
        %6865 = vst [vmem:[%s502 + $0x80] sm:$0xff] %v6833
        %6866 = vst [vmem:[%s502 + $0x88] sm:$0xff] %v6834
        %6867 = vst [vmem:[%s502 + $0x90] sm:$0xff] %v6835
        %6868 = vst [vmem:[%s502 + $0x98] sm:$0xff] %v6836
        %6869 = vst [vmem:[%s502 + $0xa0] sm:$0xff] %v6837
        %6870 = vst [vmem:[%s502 + $0xa8] sm:$0xff] %v6838
        %6871 = vst [vmem:[%s502 + $0xb0] sm:$0xff] %v6839
        %6872 = vst [vmem:[%s502 + $0xb8] sm:$0xff] %v6840
        %6873 = vst [vmem:[%s502 + $0xc0] sm:$0xff] %v6841
        %6874 = vst [vmem:[%s502 + $0xc8] sm:$0xff] %v6842
        %6875 = vst [vmem:[%s502 + $0xd0] sm:$0xff] %v6843
        %6876 = vst [vmem:[%s502 + $0xd8] sm:$0xff] %v6844
        %6877 = vst [vmem:[%s502 + $0xe0] sm:$0xff] %v6845
        %6878 = vst [vmem:[%s502 + $0xe8] sm:$0xff] %v6846
        %6879 = vst [vmem:[%s502 + $0xf0] sm:$0xff] %v6847
        %6880 = vst [vmem:[%s502 + $0xf8] sm:$0xff] %v6848
        %s6881 = sand.u32 %s243, 1
        %s6882 = scalar_lea.sflag [#allocation4], %s6881
        %s6883 = sand.u32 %s243, 1
        %s6884 = smul.addr %s6883, 256
        %s6885 = scalar_lea.vmem [#allocation14], %s6884
        // Predicated region
        $region85: #{tpu_custom_call.1} parent=55 // pred_check
          %p6886 = pneg %p253
        $region86: #{tpu_custom_call.1} parent=55 // pred_check_branch
          %6888 = sbr.rel (%p6886) target = $region88
        $region87: #{tpu_custom_call.1} parent=55 // pred_region
          %s6889 = smul.u32 2, %s31
          %6891 = vsyncadd %s6882, 0
          %s6892 = smul.addr %s6889, 16
          %s6893 = smul.addr %s6892, 8
          %s6894 = scalar_lea.hbm %s9, %s6893
          %s6895 = sshll.u32 %s6885, 4
          %s6896 = int_to_ptr.vmem [resolvable:$true] %s6895
          %s6897 = sshll.u32 %s6894, 4
          %s6898 = int_to_ptr.hbm [resolvable:$true] %s6897
          %6903 = dma.vmem_to_hbm [thread:$0]  %s6896, 4096, %s6898, %s6882, 128, 128, 8
        $region88: #{tpu_custom_call.1} parent=55 // pred_fallthru
          _
      $region56: #{tpu_custom_call.1} parent=5 // pred_fallthru
        _
      %p6904 = scmp.le.s32.totalorder 2, %s26
      // Predicated region
      $region89: #{tpu_custom_call.1} parent=5 // pred_check
        %p6905 = pneg %p6904
      $region90: #{tpu_custom_call.1} parent=5 // pred_check_branch
        %6907 = sbr.rel (%p6905) target = $region92
      $region91: #{tpu_custom_call.1} parent=5 // pred_region
        %s6908 = ssub.s32 %s26, 2
        // Predicated region
        $region93: #{tpu_custom_call.1} parent=91 // pred_check
          %p6909 = pneg %p259
        $region94: #{tpu_custom_call.1} parent=91 // pred_check_branch
          %6911 = sbr.rel (%p6909) target = $region96
        $region95: #{tpu_custom_call.1} parent=91 // pred_region
          %s6912 = sand.u32 %s244, 1
          %s6913 = scalar_lea.sflag [#allocation4], %s6912
          %s6914 = sand.u32 %s244, 1
          %s6915 = smul.addr %s6914, 256
          %s6916 = scalar_lea.vmem [#allocation14], %s6915
          %6918 = dma.done %s6913, 4096
        $region96: #{tpu_custom_call.1} parent=91 // pred_fallthru
          _
      $region92: #{tpu_custom_call.1} parent=5 // pred_fallthru
        _
    $region6: #{tpu_custom_call.1} parent=1 // loop_footer
      %s30 = sadd.s32 1, %s26
    $region7: #{tpu_custom_call.1} parent=1 // loop_footer_branch
      %25 = sbr.rel target = $region3
    $region8: #{tpu_custom_call.1} parent=1 // loop_exit
      _
    %6919 = vsyncpa [#allocation3], 1
    %s6920 = scalar_lea.sflag [#allocation3], 1
    %6921 = vsyncpa %s6920, 1
    %6922 = vsyncpa [#allocation6], 1
    %s6923 = scalar_lea.sflag [#allocation6], 1
    %6924 = vsyncpa %s6923, 1
    %6925 = vsyncpa [#allocation9], 1
    %6926 = vsyncpa [#allocation12], 1
    %6927 = vsyncpa [#allocation4], 1
    %s6928 = scalar_lea.sflag [#allocation4], 1
    %6929 = vsyncpa %s6928, 1

</llo_original>
